<compile_context>
chip_gen: v5e
topology: v5e:2x2
jax: 0.10.0
libtpu: 0.0.40
codegen_flags: <defaults>
</compile_context>

<pallas_src>
import jax
import jax.numpy as jnp
import numpy as np
from jax.experimental import pallas as pl
from jax.experimental.pallas import tpu as pltpu

INPUT_SIZE = 7
HIDDEN = 64
HALF = HIDDEN // 2        # 32 (task LSTMCell hidden)
QUARTER = HIDDEN // 4     # 16 (head hidden)
OUT_ATT = OUT_VEL = OUT_POS = 3
OUT_W = OUT_ATT + OUT_VEL + OUT_POS     # 9
G_SH = 4 * HIDDEN                       # 256  shared gate width
G_T = 4 * HALF                          # 128  task-cell gate width
XG_W = G_SH + 2 * G_T                   # 512  [shared | att-x | vel-x] precomputed gates
HEAD2_W = G_T + OUT_W                   # 137  [feedback(128) | out9] composed head-2
UNROLL = 4                              # sweep candidate: 8 (check bundle dump for spills)
CHUNK_DEFAULT = 128


def _round_up(v, m):
    return ((v + m - 1) // m) * m


# ---------------------------------------------------------------------------
# Kernel
# ---------------------------------------------------------------------------
def mtinn_kernel(xg_ref, sh_whh, w_sh2t, w_hh, po_gb, w1p, b1p, h2p, b_out,
                 out_ref,
                 sh_h_s, sh_c_s, hp_s, cp_s):
    Tc = xg_ref.shape[0]
    bf = jnp.bfloat16

    # Zero the recurrent state at the start of each batch block's time sweep.
    # (program_id(1) is the TIME-chunk axis; keying on it keeps batch blocks independent.)
    @pl.when(pl.program_id(1) == 0)
    def _():
        sh_h_s[...] = jnp.zeros_like(sh_h_s)
        sh_c_s[...] = jnp.zeros_like(sh_c_s)
        hp_s[...] = jnp.zeros_like(hp_s)
        cp_s[...] = jnp.zeros_like(cp_s)

    def gates(g, c, hs):
        """PyTorch LSTM gate math, order (i, f, g, o); all f32."""
        i = jax.nn.sigmoid(g[:, 0 * hs:1 * hs])
        f = jax.nn.sigmoid(g[:, 1 * hs:2 * hs])
        gg = jnp.tanh(g[:, 2 * hs:3 * hs])
        o = jax.nn.sigmoid(g[:, 3 * hs:4 * hs])
        c_new = f * c + i * gg
        return o * jnp.tanh(c_new), c_new

    def head(h, idx):
        """Linear->ReLU->(Dropout=identity)->[composed feedback | Linear2].
        Returns (feedback_contribution(128), out9)."""
        z = jnp.maximum(
            jnp.dot(h.astype(bf), w1p[idx], preferred_element_type=jnp.float32)
            + b1p[idx], 0.0)
        r = jnp.dot(z.astype(bf), h2p[idx], preferred_element_type=jnp.float32)
        return r[:, 0:G_T], r[:, G_T:G_T + OUT_W]

    def step(t, carry):
        sh_h, sh_c, hp, at_c, ve_c, po_c = carry
        xg_t = xg_ref[t]                                  # (Bblk, 512) bf16

        # Fused block-diagonal recurrence for all three task cells (3 -> 1 MXU push),
        # issued from state available at step start.
        hh = jnp.dot(hp.astype(bf), w_hh[...], preferred_element_type=jnp.float32)

        # shared 1-layer LSTM step (x-part + biases precomputed in xg)
        g_sh = xg_t[:, 0:G_SH] + jnp.dot(sh_h.astype(bf), sh_whh[...],
                                         preferred_element_type=jnp.float32)
        sh_h, sh_c = gates(g_sh, sh_c, HIDDEN)

        # shared-output contribution to all three task cells (fused 3 -> 1 MXU push)
        sh2 = jnp.dot(sh_h.astype(bf), w_sh2t[...], preferred_element_type=jnp.float32)

        # attitude branch
        g_at = xg_t[:, G_SH:G_SH + G_T] + sh2[:, 0:G_T] + hh[:, 0:G_T]
        at_h, at_c = gates(g_at, at_c, HALF)
        fb_ve, o_att = head(at_h, 0)                      # d_att in lanes 0:3

        # velocity branch (d_att feedback arrives composed through the head)
        g_ve = (xg_t[:, G_SH + G_T:G_SH + 2 * G_T]
                + sh2[:, G_T:2 * G_T] + hh[:, G_T:2 * G_T] + fb_ve)
        ve_h, ve_c = gates(g_ve, ve_c, HALF)
        fb_po, o_vel = head(ve_h, 1)                      # d_vel in lanes 3:6

        # position branch (no x input; folded bias passed separately)
        g_po = po_gb[...] + sh2[:, 2 * G_T:3 * G_T] + hh[:, 2 * G_T:3 * G_T] + fb_po
        po_h, po_c = gates(g_po, po_c, HALF)
        _, o_pos = head(po_h, 2)                          # d_pos in lanes 6:9

        # one lane-contiguous (Bblk, 9) store per step
        out_ref[t] = o_att + o_vel + o_pos + b_out[...]

        # repack next-step recurrence LHS (cheap 3x32-lane concat; XLU work only)
        hp = jnp.concatenate([at_h, ve_h, po_h], axis=1)
        return (sh_h, sh_c, hp, at_c, ve_c, po_c)

    carry = (sh_h_s[...], sh_c_s[...], hp_s[...],
             cp_s[:, 0:HALF], cp_s[:, HALF:2 * HALF], cp_s[:, 2 * HALF:3 * HALF])

    def unrolled_body(j, carry):
        base = pl.multiple_of(j * UNROLL, UNROLL)
        for k in range(UNROLL):                 # manual unroll for LLO visibility
            carry = step(base + k, carry)
        return carry

    carry = jax.lax.fori_loop(0, Tc // UNROLL, unrolled_body, carry)

    # persist recurrent state for the next time-chunk (grid step)
    sh_h_s[...] = carry[0]
    sh_c_s[...] = carry[1]
    hp_s[...] = carry[2]
    cp_s[...] = jnp.concatenate([carry[3], carry[4], carry[5]], axis=1)


# ---------------------------------------------------------------------------
# Parameters (deterministic synthetic init; shapes match the nn.Module)
# ---------------------------------------------------------------------------
PARAM_ORDER = [
    "sh_wih", "sh_whh", "sh_b",
    "at_wih", "at_whh", "at_b",
    "ve_wih", "ve_whh", "ve_b",
    "po_wih", "po_whh", "po_b",
    "fa_w1", "fa_b1", "fa_w2", "fa_b2",
    "fv_w1", "fv_b1", "fv_w2", "fv_b2",
    "fp_w1", "fp_b1", "fp_w2", "fp_b2",
]


def init_params(key):
    """Weights stored pre-transposed (in_dim, out_dim); LSTM biases are
    b_ih + b_hh folded into a single (1, 4H) row."""
    shapes = {
        "sh_wih": (INPUT_SIZE, 4 * HIDDEN),
        "sh_whh": (HIDDEN, 4 * HIDDEN),
        "sh_b":   (1, 4 * HIDDEN),
        "at_wih": (HIDDEN + INPUT_SIZE, 4 * HALF),
        "at_whh": (HALF, 4 * HALF),
        "at_b":   (1, 4 * HALF),
        "ve_wih": (HIDDEN + OUT_ATT + INPUT_SIZE, 4 * HALF),
        "ve_whh": (HALF, 4 * HALF),
        "ve_b":   (1, 4 * HALF),
        "po_wih": (HIDDEN + OUT_VEL, 4 * HALF),
        "po_whh": (HALF, 4 * HALF),
        "po_b":   (1, 4 * HALF),
        "fa_w1": (HALF, QUARTER), "fa_b1": (1, QUARTER),
        "fa_w2": (QUARTER, OUT_ATT), "fa_b2": (1, OUT_ATT),
        "fv_w1": (HALF, QUARTER), "fv_b1": (1, QUARTER),
        "fv_w2": (QUARTER, OUT_VEL), "fv_b2": (1, OUT_VEL),
        "fp_w1": (HALF, QUARTER), "fp_b1": (1, QUARTER),
        "fp_w2": (QUARTER, OUT_POS), "fp_b2": (1, OUT_POS),
    }
    keys = jax.random.split(key, len(PARAM_ORDER))
    return {name: 0.1 * jax.random.normal(k, shapes[name], dtype=jnp.float32)
            for name, k in zip(PARAM_ORDER, keys)}


def prepare_params(p):
    """Pack/fuse module parameters into kernel tensors (bf16 MXU operands)."""
    H, Hh, Q, I = HIDDEN, HALF, QUARTER, INPUT_SIZE
    f32, bf16 = jnp.float32, jnp.bfloat16

    ve_fb = p["ve_wih"][H:H + OUT_ATT, :]     # (3,128) rows hit by d_att feedback
    po_fb = p["po_wih"][H:H + OUT_VEL, :]     # (3,128) rows hit by d_vel feedback

    # Hoisted x-projection (wrapper-side, f32): [shared | attitude-x | velocity-x].
    W_x = jnp.concatenate(
        [p["sh_wih"],                                    # (I, 256)
         p["at_wih"][H:H + I, :],                        # (I, 128)
         p["ve_wih"][H + OUT_ATT:H + OUT_ATT + I, :]],   # (I, 128)
        axis=1)                                          # (I, 512)
    # Velocity gate bias absorbs the composed-feedback bias term fa_b2 @ ve_fb.
    b_x = jnp.concatenate(
        [p["sh_b"], p["at_b"], p["ve_b"] + p["fa_b2"] @ ve_fb], axis=1)   # (1, 512)

    # Fused sh_h -> task-gate projection, 128-lane-aligned per cell.
    w_sh2t = jnp.concatenate(
        [p["at_wih"][0:H, :], p["ve_wih"][0:H, :], p["po_wih"][0:H, :]],
        axis=1).astype(bf16)                                              # (64, 384)

    # Block-diagonal fused task recurrence on packed [at_h | ve_h | po_h].
    w_hh = jnp.zeros((3 * Hh, 3 * G_T), f32)
    w_hh = w_hh.at[0:Hh, 0:G_T].set(p["at_whh"])
    w_hh = w_hh.at[Hh:2 * Hh, G_T:2 * G_T].set(p["ve_whh"])
    w_hh = w_hh.at[2 * Hh:3 * Hh, 2 * G_T:3 * G_T].set(p["po_whh"])
    w_hh = w_hh.astype(bf16)                                              # (96, 384)

    # Position gate bias (+ composed-feedback bias term fv_b2 @ po_fb).
    po_gb = (p["po_b"] + p["fv_b2"] @ po_fb).astype(f32)                  # (1, 128)

    # Head first Linear (packed per head).
    w1p = jnp.stack([p["fa_w1"], p["fv_w1"], p["fp_w1"]]).astype(bf16)    # (3, 32, 16)
    b1p = jnp.stack([p["fa_b1"], p["fv_b1"], p["fp_b1"]]).astype(f32)     # (3, 1, 16)

    # Head second Linear composed with downstream feedback:
    #   cols 0:128   = w2 @ W_feedback   (gate contribution; zeros for position head)
    #   cols 128:137 = w2 placed at its output lanes (0:3 / 3:6 / 6:9)
    def head2(w2, fb, col):
        h = jnp.zeros((Q, HEAD2_W), f32)
        if fb is not None:
            h = h.at[:, 0:G_T].set(w2 @ fb)
        return h.at[:, G_T + col:G_T + col + 3].set(w2)

    h2p = jnp.stack([head2(p["fa_w2"], ve_fb, 0),
                     head2(p["fv_w2"], po_fb, 3),
                     head2(p["fp_w2"], None, 6)]).astype(bf16)            # (3, 16, 137)

    b_out = jnp.concatenate([p["fa_b2"], p["fv_b2"], p["fp_b2"]],
                            axis=1).astype(f32)                           # (1, 9)

    weights = [p["sh_whh"].astype(bf16), w_sh2t, w_hh, po_gb,
               w1p, b1p, h2p, b_out]
    return W_x, b_x, weights


# ---------------------------------------------------------------------------
# Wrapper
# ---------------------------------------------------------------------------
def mtinn_forward(x, params, *, chunk=CHUNK_DEFAULT):
    """x: (B, T, input_size) float32  ->  (B, T, 9) float32."""
    B, T, I = x.shape
    assert I == INPUT_SIZE

    # Batch blocking: single block for small B; 16-wide blocks (bf16 sublane-safe)
    # with a parallel grid axis for larger B (exploits the 2nd TC on v7x).
    if B <= 8:
        Bp = _round_up(max(B, 1), 8)
        Bblk, n_b = Bp, 1
    else:
        Bp = _round_up(B, 16)
        Bblk, n_b = 16, _round_up(B, 16) // 16

    # VMEM budget: xg (bf16) + out (f32) blocks are double-buffered; cap the time
    # chunk so 2 * block_bytes stays <= ~8 MiB on any chip.
    per_t_bytes = Bblk * XG_W * 2 + Bblk * OUT_W * 4
    t_cap = max(UNROLL, ((8 * 1024 * 1024) // (2 * per_t_bytes)) // UNROLL * UNROLL)
    chunk = max(UNROLL, _round_up(min(chunk, t_cap), UNROLL))
    Tc = min(chunk, _round_up(T, UNROLL))             # time chunk (multiple of UNROLL)
    T_pad = _round_up(T, Tc)
    n_chunks = T_pad // Tc

    W_x, b_x, weights = prepare_params(params)

    # Pad batch/time, go time-major.
    x = x.astype(jnp.float32)
    x_p = jnp.zeros((Bp, T_pad, I), jnp.float32).at[:B, :T, :].set(x)
    x_tbi = jnp.transpose(x_p, (1, 0, 2))             # (T_pad, Bp, I)

    # Hoisted x-projections + folded gate biases: ONE batched matmul for the whole
    # sequence (f32), then bf16 storage to halve DMA traffic / VMEM footprint.
    xg = ((x_tbi.reshape(T_pad * Bp, I) @ W_x + b_x)
          .reshape(T_pad, Bp, XG_W).astype(jnp.bfloat16))

    xg_spec = pl.BlockSpec((Tc, Bblk, XG_W), lambda b, c: (c, b, 0))
    out_spec = pl.BlockSpec((Tc, Bblk, OUT_W), lambda b, c: (c, b, 0))

    def _w_spec(w):
        nd = w.ndim
        return pl.BlockSpec(w.shape, lambda b, c: (0,) * nd)

    w_specs = [_w_spec(w) for w in weights]

    out_tb9 = pl.pallas_call(
        mtinn_kernel,
        out_shape=jax.ShapeDtypeStruct((T_pad, Bp, OUT_W), jnp.float32),
        grid_spec=pltpu.PrefetchScalarGridSpec(
            num_scalar_prefetch=0,
            grid=(n_b, n_chunks),
            in_specs=[xg_spec] + w_specs,
            out_specs=out_spec,
            scratch_shapes=[
                pltpu.VMEM((Bblk, HIDDEN), jnp.float32),      # shared h
                pltpu.VMEM((Bblk, HIDDEN), jnp.float32),      # shared c
                pltpu.VMEM((Bblk, 3 * HALF), jnp.float32),    # packed [at|ve|po] h
                pltpu.VMEM((Bblk, 3 * HALF), jnp.float32),    # packed [at|ve|po] c
            ]),
        compiler_params=pltpu.CompilerParams(
            dimension_semantics=("parallel", "arbitrary"),    # batch || , time-chunks serial
            vmem_limit_bytes=32 * 1024 * 1024),
    )(xg, *weights)

    return jnp.transpose(out_tb9, (1, 0, 2))[:B, :T, :]


# ---------------------------------------------------------------------------
# Pure-JAX f32 reference (mirrors the PyTorch module, eval mode)
# ---------------------------------------------------------------------------
def mtinn_reference(x, p):
    B, T, _ = x.shape

    def lstm(xin, h, c, wih, whh, b):
        g = xin @ wih + h @ whh + b
        hs = h.shape[-1]
        i = jax.nn.sigmoid(g[:, 0 * hs:1 * hs])
        f = jax.nn.sigmoid(g[:, 1 * hs:2 * hs])
        gg = jnp.tanh(g[:, 2 * hs:3 * hs])
        o = jax.nn.sigmoid(g[:, 3 * hs:4 * hs])
        c = f * c + i * gg
        return o * jnp.tanh(c), c

    def head(h, w1, b1, w2, b2):
        return jnp.maximum(h @ w1 + b1, 0.0) @ w2 + b2

    sh_h = sh_c = jnp.zeros((B, HIDDEN), jnp.float32)
    at_h = at_c = ve_h = ve_c = po_h = po_c = jnp.zeros((B, HALF), jnp.float32)
    outs = []
    for t in range(T):
        xt = x[:, t, :]
        sh_h, sh_c = lstm(xt, sh_h, sh_c, p["sh_wih"], p["sh_whh"], p["sh_b"])
        at_h, at_c = lstm(jnp.concatenate([sh_h, xt], 1), at_h, at_c,
                          p["at_wih"], p["at_whh"], p["at_b"])
        d_att = head(at_h, p["fa_w1"], p["fa_b1"], p["fa_w2"], p["fa_b2"])
        ve_h, ve_c = lstm(jnp.concatenate([sh_h, d_att, xt], 1), ve_h, ve_c,
                          p["ve_wih"], p["ve_whh"], p["ve_b"])
        d_vel = head(ve_h, p["fv_w1"], p["fv_b1"], p["fv_w2"], p["fv_b2"])
        po_h, po_c = lstm(jnp.concatenate([sh_h, d_vel], 1), po_h, po_c,
                          p["po_wih"], p["po_whh"], p["po_b"])
        d_pos = head(po_h, p["fp_w1"], p["fp_b1"], p["fp_w2"], p["fp_b2"])
        outs.append(jnp.concatenate([d_att, d_vel, d_pos], 1))
    return jnp.stack(outs, axis=1)


# ---------------------------------------------------------------------------
if __name__ == "__main__":
    key = jax.random.PRNGKey(0)
    k_param, k_x = jax.random.split(key)

    B, T = 2, 8
    x = jax.random.normal(k_x, (B, T, INPUT_SIZE), dtype=jnp.float32)
    params = init_params(k_param)

    ref = jax.block_until_ready(mtinn_reference(x, params))

    # Single-chunk path (whole sequence in one grid step).
    out = jax.block_until_ready(mtinn_forward(x, params))
    assert out.shape == (B, T, 9), out.shape
    # Kernel uses bf16 MXU operands with f32 accumulation -> compare at a
    # bf16-appropriate tolerance against the f32 reference.
    np.testing.assert_allclose(np.asarray(out), np.asarray(ref),
                               rtol=2e-2, atol=2e-2)

    # Multi-chunk path (exercises the time-chunked grid + persistent VMEM carries).
    out2 = jax.block_until_ready(mtinn_forward(x, params, chunk=4))
    np.testing.assert_allclose(np.asarray(out2), np.asarray(ref),
                               rtol=2e-2, atol=2e-2)

    print("KERNEL_OK")
</pallas_src>

<mosaic_0001>
module attributes {stable_mosaic.version = 11 : i64} {
  func.func @mtinn_kernel(%arg0: i32, %arg1: i32, %arg2: memref<8x8x512xbf16, #tpu.memory_space<vmem>>, %arg3: memref<64x256xbf16, #tpu.memory_space<vmem>>, %arg4: memref<64x384xbf16, #tpu.memory_space<vmem>>, %arg5: memref<96x384xbf16, #tpu.memory_space<vmem>>, %arg6: memref<1x128xf32, #tpu.memory_space<vmem>>, %arg7: memref<3x32x16xbf16, #tpu.memory_space<vmem>>, %arg8: memref<3x1x16xf32, #tpu.memory_space<vmem>>, %arg9: memref<3x16x137xbf16, #tpu.memory_space<vmem>>, %arg10: memref<1x9xf32, #tpu.memory_space<vmem>>, %arg11: memref<8x8x9xf32, #tpu.memory_space<vmem>>, %arg12: memref<8x64xf32, #tpu.memory_space<vmem>>, %arg13: memref<8x64xf32, #tpu.memory_space<vmem>>, %arg14: memref<8x96xf32, #tpu.memory_space<vmem>>, %arg15: memref<8x96xf32, #tpu.memory_space<vmem>>) attributes {dimension_semantics = [#tpu.dimension_semantics<parallel>, #tpu.dimension_semantics<arbitrary>], iteration_bounds = array<i64: 1, 1>, scalar_prefetch = 0 : i64, scratch_operands = 4 : i64, tpu.core_type = #tpu.core_type<tc>, window_params = [{transform_indices = @transform_0, window_bounds = array<i64: 8, 8, 512>}, {pipeline_mode = #tpu.pipeline_mode<synchronous>, transform_indices = @transform_1, window_bounds = array<i64: 64, 256>}, {pipeline_mode = #tpu.pipeline_mode<synchronous>, transform_indices = @transform_2, window_bounds = array<i64: 64, 384>}, {pipeline_mode = #tpu.pipeline_mode<synchronous>, transform_indices = @transform_3, window_bounds = array<i64: 96, 384>}, {pipeline_mode = #tpu.pipeline_mode<synchronous>, transform_indices = @transform_4, window_bounds = array<i64: 1, 128>}, {pipeline_mode = #tpu.pipeline_mode<synchronous>, transform_indices = @transform_5, window_bounds = array<i64: 3, 32, 16>}, {pipeline_mode = #tpu.pipeline_mode<synchronous>, transform_indices = @transform_6, window_bounds = array<i64: 3, 1, 16>}, {pipeline_mode = #tpu.pipeline_mode<synchronous>, transform_indices = @transform_7, window_bounds = array<i64: 3, 16, 137>}, {pipeline_mode = #tpu.pipeline_mode<synchronous>, transform_indices = @transform_8, window_bounds = array<i64: 1, 9>}, {transform_indices = @transform_9, window_bounds = array<i64: 8, 8, 9>}]} {
    %c0_i32 = arith.constant 0 : i32
    %0 = arith.cmpi eq, %arg1, %c0_i32 : i32
    %1 = arith.extui %0 : i1 to i32
    %c0_i32_0 = arith.constant 0 : i32
    %2 = arith.cmpi ne, %1, %c0_i32_0 : i32
    scf.if %2 {
      %cst = arith.constant 0.000000e+00 : f32
      %16 = vector.broadcast %cst : f32 to vector<8x64xf32>
      %c0_20 = arith.constant 0 : index
      %c0_21 = arith.constant 0 : index
      %17 = vector.load %arg12[%c0_20, %c0_21] : memref<8x64xf32, #tpu.memory_space<vmem>>, vector<8x64xf32>
      tpu.vector_store %arg12[%c0_20, %c0_21], %16 {strides = array<i32>} : memref<8x64xf32, #tpu.memory_space<vmem>>, vector<8x64xf32>,
      %cst_22 = arith.constant 0.000000e+00 : f32
      %18 = vector.broadcast %cst_22 : f32 to vector<8x64xf32>
      %c0_23 = arith.constant 0 : index
      %c0_24 = arith.constant 0 : index
      %19 = vector.load %arg13[%c0_23, %c0_24] : memref<8x64xf32, #tpu.memory_space<vmem>>, vector<8x64xf32>
      tpu.vector_store %arg13[%c0_23, %c0_24], %18 {strides = array<i32>} : memref<8x64xf32, #tpu.memory_space<vmem>>, vector<8x64xf32>,
      %cst_25 = arith.constant 0.000000e+00 : f32
      %20 = vector.broadcast %cst_25 : f32 to vector<8x96xf32>
      %c0_26 = arith.constant 0 : index
      %c0_27 = arith.constant 0 : index
      %21 = vector.load %arg14[%c0_26, %c0_27] : memref<8x96xf32, #tpu.memory_space<vmem>>, vector<8x96xf32>
      tpu.vector_store %arg14[%c0_26, %c0_27], %20 {strides = array<i32>} : memref<8x96xf32, #tpu.memory_space<vmem>>, vector<8x96xf32>,
      %cst_28 = arith.constant 0.000000e+00 : f32
      %22 = vector.broadcast %cst_28 : f32 to vector<8x96xf32>
      %c0_29 = arith.constant 0 : index
      %c0_30 = arith.constant 0 : index
      %23 = vector.load %arg15[%c0_29, %c0_30] : memref<8x96xf32, #tpu.memory_space<vmem>>, vector<8x96xf32>
      tpu.vector_store %arg15[%c0_29, %c0_30], %22 {strides = array<i32>} : memref<8x96xf32, #tpu.memory_space<vmem>>, vector<8x96xf32>,
    } else {
    }
    %c0 = arith.constant 0 : index
    %c0_1 = arith.constant 0 : index
    %3 = vector.load %arg12[%c0, %c0_1] : memref<8x64xf32, #tpu.memory_space<vmem>>, vector<8x64xf32>
    %c0_2 = arith.constant 0 : index
    %c0_3 = arith.constant 0 : index
    %4 = vector.load %arg13[%c0_2, %c0_3] : memref<8x64xf32, #tpu.memory_space<vmem>>, vector<8x64xf32>
    %c0_4 = arith.constant 0 : index
    %c0_5 = arith.constant 0 : index
    %5 = vector.load %arg14[%c0_4, %c0_5] : memref<8x96xf32, #tpu.memory_space<vmem>>, vector<8x96xf32>
    %c0_6 = arith.constant 0 : index
    %c0_7 = arith.constant 0 : index
    %6 = vector.load %arg15[%c0_6, %c0_7] : memref<8x96xf32, #tpu.memory_space<vmem>>, vector<8x32xf32>
    %c0_8 = arith.constant 0 : index
    %c32 = arith.constant 32 : index
    %7 = vector.load %arg15[%c0_8, %c32] : memref<8x96xf32, #tpu.memory_space<vmem>>, vector<8x32xf32>
    %c0_9 = arith.constant 0 : index
    %c64 = arith.constant 64 : index
    %8 = vector.load %arg15[%c0_9, %c64] : memref<8x96xf32, #tpu.memory_space<vmem>>, vector<8x32xf32>
    %c0_i32_10 = arith.constant 0 : i32
    %c2_i32 = arith.constant 2 : i32
    %9 = arith.addi %c0_i32_10, %c2_i32 : i32
    %c1_i32 = arith.constant 1 : i32
    %10:6 = scf.for %arg16 = %c0_i32_10 to %9 step %c1_i32 iter_args(%arg17 = %3, %arg18 = %4, %arg19 = %5, %arg20 = %6, %arg21 = %7, %arg22 = %8) -> (vector<8x64xf32>, vector<8x64xf32>, vector<8x96xf32>, vector<8x32xf32>, vector<8x32xf32>, vector<8x32xf32>)  : i32 {
      %c4_i32 = arith.constant 4 : i32
      %16 = arith.muli %arg16, %c4_i32 : i32
      %17 = tpu.assume_multiple %16, 4 : i32
      %c0_i32_20 = arith.constant 0 : i32
      %18 = arith.addi %17, %c0_i32_20 : i32
      %19 = arith.index_cast %18 : i32 to index
      %c0_21 = arith.constant 0 : index
      %c0_22 = arith.constant 0 : index
      %20 = vector.load %arg2[%19, %c0_21, %c0_22] : memref<8x8x512xbf16, #tpu.memory_space<vmem>>, vector<1x8x512xbf16>
      %21 = vector.shape_cast %20 : vector<1x8x512xbf16> to vector<8x512xbf16>
      %22 = arith.truncf %arg19 : vector<8x96xf32> to vector<8x96xbf16>
      %c0_23 = arith.constant 0 : index
      %c0_24 = arith.constant 0 : index
      %23 = vector.load %arg5[%c0_23, %c0_24] : memref<96x384xbf16, #tpu.memory_space<vmem>>, vector<96x384xbf16>
      %cst = arith.constant dense<0.000000e+00> : vector<8x384xf32>
      %24 = tpu.matmul %22, %23, %cst {dimension_numbers = #tpu.dot_dimension_numbers<[1], [0], [0], [1], [0, 0, 1, 1], [], []>} : vector<8x96xbf16>, vector<96x384xbf16>, vector<8x384xf32> -> vector<8x384xf32>
      %25 = vector.extract_strided_slice %21 {offsets = [0, 0], sizes = [8, 256], strides = [1, 1]} : vector<8x512xbf16> to vector<8x256xbf16>
      %26 = arith.truncf %arg17 : vector<8x64xf32> to vector<8x64xbf16>
      %c0_25 = arith.constant 0 : index
      %c0_26 = arith.constant 0 : index
      %27 = vector.load %arg3[%c0_25, %c0_26] : memref<64x256xbf16, #tpu.memory_space<vmem>>, vector<64x256xbf16>
      %cst_27 = arith.constant dense<0.000000e+00> : vector<8x256xf32>
      %28 = tpu.matmul %26, %27, %cst_27 {dimension_numbers = #tpu.dot_dimension_numbers<[1], [0], [0], [1], [0, 0, 1, 1], [], []>} : vector<8x64xbf16>, vector<64x256xbf16>, vector<8x256xf32> -> vector<8x256xf32>
      %29 = arith.extf %25 : vector<8x256xbf16> to vector<8x256xf32>
      %30 = arith.addf %29, %28 : vector<8x256xf32>
      %31 = vector.extract_strided_slice %30 {offsets = [0, 0], sizes = [8, 64], strides = [1, 1]} : vector<8x256xf32> to vector<8x64xf32>
      %32 = arith.negf %31 : vector<8x64xf32>
      %33 = math.exp %32 : vector<8x64xf32>
      %cst_28 = arith.constant 1.000000e+00 : f32
      %34 = vector.broadcast %cst_28 : f32 to vector<8x64xf32>
      %35 = arith.addf %34, %33 : vector<8x64xf32>
      %36 = arith.divf %34, %35 : vector<8x64xf32>
      %37 = vector.extract_strided_slice %30 {offsets = [0, 64], sizes = [8, 64], strides = [1, 1]} : vector<8x256xf32> to vector<8x64xf32>
      %38 = arith.negf %37 : vector<8x64xf32>
      %39 = math.exp %38 : vector<8x64xf32>
      %cst_29 = arith.constant 1.000000e+00 : f32
      %40 = vector.broadcast %cst_29 : f32 to vector<8x64xf32>
      %41 = arith.addf %40, %39 : vector<8x64xf32>
      %42 = arith.divf %40, %41 : vector<8x64xf32>
      %43 = vector.extract_strided_slice %30 {offsets = [0, 128], sizes = [8, 64], strides = [1, 1]} : vector<8x256xf32> to vector<8x64xf32>
      %44 = math.tanh %43 : vector<8x64xf32>
      %45 = vector.extract_strided_slice %30 {offsets = [0, 192], sizes = [8, 64], strides = [1, 1]} : vector<8x256xf32> to vector<8x64xf32>
      %46 = arith.negf %45 : vector<8x64xf32>
      %47 = math.exp %46 : vector<8x64xf32>
      %cst_30 = arith.constant 1.000000e+00 : f32
      %48 = vector.broadcast %cst_30 : f32 to vector<8x64xf32>
      %49 = arith.addf %48, %47 : vector<8x64xf32>
      %50 = arith.divf %48, %49 : vector<8x64xf32>
      %51 = arith.mulf %42, %arg18 : vector<8x64xf32>
      %52 = arith.mulf %36, %44 : vector<8x64xf32>
      %53 = arith.addf %51, %52 : vector<8x64xf32>
      %54 = math.tanh %53 : vector<8x64xf32>
      %55 = arith.mulf %50, %54 : vector<8x64xf32>
      %56 = arith.truncf %55 : vector<8x64xf32> to vector<8x64xbf16>
      %c0_31 = arith.constant 0 : index
      %c0_32 = arith.constant 0 : index
      %57 = vector.load %arg4[%c0_31, %c0_32] : memref<64x384xbf16, #tpu.memory_space<vmem>>, vector<64x384xbf16>
      %cst_33 = arith.constant dense<0.000000e+00> : vector<8x384xf32>
      %58 = tpu.matmul %56, %57, %cst_33 {dimension_numbers = #tpu.dot_dimension_numbers<[1], [0], [0], [1], [0, 0, 1, 1], [], []>} : vector<8x64xbf16>, vector<64x384xbf16>, vector<8x384xf32> -> vector<8x384xf32>
      %59 = vector.extract_strided_slice %21 {offsets = [0, 256], sizes = [8, 128], strides = [1, 1]} : vector<8x512xbf16> to vector<8x128xbf16>
      %60 = vector.extract_strided_slice %58 {offsets = [0, 0], sizes = [8, 128], strides = [1, 1]} : vector<8x384xf32> to vector<8x128xf32>
      %61 = arith.extf %59 : vector<8x128xbf16> to vector<8x128xf32>
      %62 = arith.addf %61, %60 : vector<8x128xf32>
      %63 = vector.extract_strided_slice %24 {offsets = [0, 0], sizes = [8, 128], strides = [1, 1]} : vector<8x384xf32> to vector<8x128xf32>
      %64 = arith.addf %62, %63 : vector<8x128xf32>
      %65 = vector.extract_strided_slice %64 {offsets = [0, 0], sizes = [8, 32], strides = [1, 1]} : vector<8x128xf32> to vector<8x32xf32>
      %66 = arith.negf %65 : vector<8x32xf32>
      %67 = math.exp %66 : vector<8x32xf32>
      %cst_34 = arith.constant 1.000000e+00 : f32
      %68 = vector.broadcast %cst_34 : f32 to vector<8x32xf32>
      %69 = arith.addf %68, %67 : vector<8x32xf32>
      %70 = arith.divf %68, %69 : vector<8x32xf32>
      %71 = vector.extract_strided_slice %64 {offsets = [0, 32], sizes = [8, 32], strides = [1, 1]} : vector<8x128xf32> to vector<8x32xf32>
      %72 = arith.negf %71 : vector<8x32xf32>
      %73 = math.exp %72 : vector<8x32xf32>
      %cst_35 = arith.constant 1.000000e+00 : f32
      %74 = vector.broadcast %cst_35 : f32 to vector<8x32xf32>
      %75 = arith.addf %74, %73 : vector<8x32xf32>
      %76 = arith.divf %74, %75 : vector<8x32xf32>
      %77 = vector.extract_strided_slice %64 {offsets = [0, 64], sizes = [8, 32], strides = [1, 1]} : vector<8x128xf32> to vector<8x32xf32>
      %78 = math.tanh %77 : vector<8x32xf32>
      %79 = vector.extract_strided_slice %64 {offsets = [0, 96], sizes = [8, 32], strides = [1, 1]} : vector<8x128xf32> to vector<8x32xf32>
      %80 = arith.negf %79 : vector<8x32xf32>
      %81 = math.exp %80 : vector<8x32xf32>
      %cst_36 = arith.constant 1.000000e+00 : f32
      %82 = vector.broadcast %cst_36 : f32 to vector<8x32xf32>
      %83 = arith.addf %82, %81 : vector<8x32xf32>
      %84 = arith.divf %82, %83 : vector<8x32xf32>
      %85 = arith.mulf %76, %arg20 : vector<8x32xf32>
      %86 = arith.mulf %70, %78 : vector<8x32xf32>
      %87 = arith.addf %85, %86 : vector<8x32xf32>
      %88 = math.tanh %87 : vector<8x32xf32>
      %89 = arith.mulf %84, %88 : vector<8x32xf32>
      %90 = arith.truncf %89 : vector<8x32xf32> to vector<8x32xbf16>
      %c0_37 = arith.constant 0 : index
      %c0_38 = arith.constant 0 : index
      %c0_39 = arith.constant 0 : index
      %91 = vector.load %arg7[%c0_37, %c0_38, %c0_39] : memref<3x32x16xbf16, #tpu.memory_space<vmem>>, vector<1x32x16xbf16>
      %92 = vector.shape_cast %91 : vector<1x32x16xbf16> to vector<32x16xbf16>
      %cst_40 = arith.constant dense<0.000000e+00> : vector<8x16xf32>
      %93 = tpu.matmul %90, %92, %cst_40 {dimension_numbers = #tpu.dot_dimension_numbers<[1], [0], [0], [1], [0, 0, 1, 1], [], []>} : vector<8x32xbf16>, vector<32x16xbf16>, vector<8x16xf32> -> vector<8x16xf32>
      %c0_41 = arith.constant 0 : index
      %c0_42 = arith.constant 0 : index
      %c0_43 = arith.constant 0 : index
      %94 = vector.load %arg8[%c0_41, %c0_42, %c0_43] : memref<3x1x16xf32, #tpu.memory_space<vmem>>, vector<1x1x16xf32>
      %95 = vector.shape_cast %94 : vector<1x1x16xf32> to vector<1x16xf32>
      %96 = vector.broadcast %95 : vector<1x16xf32> to vector<8x16xf32>
      %97 = arith.addf %93, %96 : vector<8x16xf32>
      %cst_44 = arith.constant 0.000000e+00 : f32
      %98 = vector.broadcast %cst_44 : f32 to vector<8x16xf32>
      %99 = arith.maximumf %97, %98 : vector<8x16xf32>
      %100 = arith.truncf %99 : vector<8x16xf32> to vector<8x16xbf16>
      %c0_45 = arith.constant 0 : index
      %c0_46 = arith.constant 0 : index
      %c0_47 = arith.constant 0 : index
      %101 = vector.load %arg9[%c0_45, %c0_46, %c0_47] : memref<3x16x137xbf16, #tpu.memory_space<vmem>>, vector<1x16x137xbf16>
      %102 = vector.shape_cast %101 : vector<1x16x137xbf16> to vector<16x137xbf16>
      %cst_48 = arith.constant dense<0.000000e+00> : vector<8x137xf32>
      %103 = tpu.matmul %100, %102, %cst_48 {dimension_numbers = #tpu.dot_dimension_numbers<[1], [0], [0], [1], [0, 0, 1, 1], [], []>} : vector<8x16xbf16>, vector<16x137xbf16>, vector<8x137xf32> -> vector<8x137xf32>
      %104 = vector.extract_strided_slice %103 {offsets = [0, 0], sizes = [8, 128], strides = [1, 1]} : vector<8x137xf32> to vector<8x128xf32>
      %105 = vector.extract_strided_slice %103 {offsets = [0, 128], sizes = [8, 9], strides = [1, 1]} : vector<8x137xf32> to vector<8x9xf32>
      %106 = vector.extract_strided_slice %21 {offsets = [0, 384], sizes = [8, 128], strides = [1, 1]} : vector<8x512xbf16> to vector<8x128xbf16>
      %107 = vector.extract_strided_slice %58 {offsets = [0, 128], sizes = [8, 128], strides = [1, 1]} : vector<8x384xf32> to vector<8x128xf32>
      %108 = arith.extf %106 : vector<8x128xbf16> to vector<8x128xf32>
      %109 = arith.addf %108, %107 : vector<8x128xf32>
      %110 = vector.extract_strided_slice %24 {offsets = [0, 128], sizes = [8, 128], strides = [1, 1]} : vector<8x384xf32> to vector<8x128xf32>
      %111 = arith.addf %109, %110 : vector<8x128xf32>
      %112 = arith.addf %111, %104 : vector<8x128xf32>
      %113 = vector.extract_strided_slice %112 {offsets = [0, 0], sizes = [8, 32], strides = [1, 1]} : vector<8x128xf32> to vector<8x32xf32>
      %114 = arith.negf %113 : vector<8x32xf32>
      %115 = math.exp %114 : vector<8x32xf32>
      %cst_49 = arith.constant 1.000000e+00 : f32
      %116 = vector.broadcast %cst_49 : f32 to vector<8x32xf32>
      %117 = arith.addf %116, %115 : vector<8x32xf32>
      %118 = arith.divf %116, %117 : vector<8x32xf32>
      %119 = vector.extract_strided_slice %112 {offsets = [0, 32], sizes = [8, 32], strides = [1, 1]} : vector<8x128xf32> to vector<8x32xf32>
      %120 = arith.negf %119 : vector<8x32xf32>
      %121 = math.exp %120 : vector<8x32xf32>
      %cst_50 = arith.constant 1.000000e+00 : f32
      %122 = vector.broadcast %cst_50 : f32 to vector<8x32xf32>
      %123 = arith.addf %122, %121 : vector<8x32xf32>
      %124 = arith.divf %122, %123 : vector<8x32xf32>
      %125 = vector.extract_strided_slice %112 {offsets = [0, 64], sizes = [8, 32], strides = [1, 1]} : vector<8x128xf32> to vector<8x32xf32>
      %126 = math.tanh %125 : vector<8x32xf32>
      %127 = vector.extract_strided_slice %112 {offsets = [0, 96], sizes = [8, 32], strides = [1, 1]} : vector<8x128xf32> to vector<8x32xf32>
      %128 = arith.negf %127 : vector<8x32xf32>
      %129 = math.exp %128 : vector<8x32xf32>
      %cst_51 = arith.constant 1.000000e+00 : f32
      %130 = vector.broadcast %cst_51 : f32 to vector<8x32xf32>
      %131 = arith.addf %130, %129 : vector<8x32xf32>
      %132 = arith.divf %130, %131 : vector<8x32xf32>
      %133 = arith.mulf %124, %arg21 : vector<8x32xf32>
      %134 = arith.mulf %118, %126 : vector<8x32xf32>
      %135 = arith.addf %133, %134 : vector<8x32xf32>
      %136 = math.tanh %135 : vector<8x32xf32>
      %137 = arith.mulf %132, %136 : vector<8x32xf32>
      %138 = arith.truncf %137 : vector<8x32xf32> to vector<8x32xbf16>
      %c1 = arith.constant 1 : index
      %c0_52 = arith.constant 0 : index
      %c0_53 = arith.constant 0 : index
      %139 = vector.load %arg7[%c1, %c0_52, %c0_53] : memref<3x32x16xbf16, #tpu.memory_space<vmem>>, vector<1x32x16xbf16>
      %140 = vector.shape_cast %139 : vector<1x32x16xbf16> to vector<32x16xbf16>
      %cst_54 = arith.constant dense<0.000000e+00> : vector<8x16xf32>
      %141 = tpu.matmul %138, %140, %cst_54 {dimension_numbers = #tpu.dot_dimension_numbers<[1], [0], [0], [1], [0, 0, 1, 1], [], []>} : vector<8x32xbf16>, vector<32x16xbf16>, vector<8x16xf32> -> vector<8x16xf32>
      %c1_55 = arith.constant 1 : index
      %c0_56 = arith.constant 0 : index
      %c0_57 = arith.constant 0 : index
      %142 = vector.load %arg8[%c1_55, %c0_56, %c0_57] : memref<3x1x16xf32, #tpu.memory_space<vmem>>, vector<1x1x16xf32>
      %143 = vector.shape_cast %142 : vector<1x1x16xf32> to vector<1x16xf32>
      %144 = vector.broadcast %143 : vector<1x16xf32> to vector<8x16xf32>
      %145 = arith.addf %141, %144 : vector<8x16xf32>
      %cst_58 = arith.constant 0.000000e+00 : f32
      %146 = vector.broadcast %cst_58 : f32 to vector<8x16xf32>
      %147 = arith.maximumf %145, %146 : vector<8x16xf32>
      %148 = arith.truncf %147 : vector<8x16xf32> to vector<8x16xbf16>
      %c1_59 = arith.constant 1 : index
      %c0_60 = arith.constant 0 : index
      %c0_61 = arith.constant 0 : index
      %149 = vector.load %arg9[%c1_59, %c0_60, %c0_61] : memref<3x16x137xbf16, #tpu.memory_space<vmem>>, vector<1x16x137xbf16>
      %150 = vector.shape_cast %149 : vector<1x16x137xbf16> to vector<16x137xbf16>
      %cst_62 = arith.constant dense<0.000000e+00> : vector<8x137xf32>
      %151 = tpu.matmul %148, %150, %cst_62 {dimension_numbers = #tpu.dot_dimension_numbers<[1], [0], [0], [1], [0, 0, 1, 1], [], []>} : vector<8x16xbf16>, vector<16x137xbf16>, vector<8x137xf32> -> vector<8x137xf32>
      %152 = vector.extract_strided_slice %151 {offsets = [0, 0], sizes = [8, 128], strides = [1, 1]} : vector<8x137xf32> to vector<8x128xf32>
      %153 = vector.extract_strided_slice %151 {offsets = [0, 128], sizes = [8, 9], strides = [1, 1]} : vector<8x137xf32> to vector<8x9xf32>
      %c0_63 = arith.constant 0 : index
      %c0_64 = arith.constant 0 : index
      %154 = vector.load %arg6[%c0_63, %c0_64] : memref<1x128xf32, #tpu.memory_space<vmem>>, vector<1x128xf32>
      %155 = vector.extract_strided_slice %58 {offsets = [0, 256], sizes = [8, 128], strides = [1, 1]} : vector<8x384xf32> to vector<8x128xf32>
      %156 = vector.broadcast %154 : vector<1x128xf32> to vector<8x128xf32>
      %157 = arith.addf %156, %155 : vector<8x128xf32>
      %158 = vector.extract_strided_slice %24 {offsets = [0, 256], sizes = [8, 128], strides = [1, 1]} : vector<8x384xf32> to vector<8x128xf32>
      %159 = arith.addf %157, %158 : vector<8x128xf32>
      %160 = arith.addf %159, %152 : vector<8x128xf32>
      %161 = vector.extract_strided_slice %160 {offsets = [0, 0], sizes = [8, 32], strides = [1, 1]} : vector<8x128xf32> to vector<8x32xf32>
      %162 = arith.negf %161 : vector<8x32xf32>
      %163 = math.exp %162 : vector<8x32xf32>
      %cst_65 = arith.constant 1.000000e+00 : f32
      %164 = vector.broadcast %cst_65 : f32 to vector<8x32xf32>
      %165 = arith.addf %164, %163 : vector<8x32xf32>
      %166 = arith.divf %164, %165 : vector<8x32xf32>
      %167 = vector.extract_strided_slice %160 {offsets = [0, 32], sizes = [8, 32], strides = [1, 1]} : vector<8x128xf32> to vector<8x32xf32>
      %168 = arith.negf %167 : vector<8x32xf32>
      %169 = math.exp %168 : vector<8x32xf32>
      %cst_66 = arith.constant 1.000000e+00 : f32
      %170 = vector.broadcast %cst_66 : f32 to vector<8x32xf32>
      %171 = arith.addf %170, %169 : vector<8x32xf32>
      %172 = arith.divf %170, %171 : vector<8x32xf32>
      %173 = vector.extract_strided_slice %160 {offsets = [0, 64], sizes = [8, 32], strides = [1, 1]} : vector<8x128xf32> to vector<8x32xf32>
      %174 = math.tanh %173 : vector<8x32xf32>
      %175 = vector.extract_strided_slice %160 {offsets = [0, 96], sizes = [8, 32], strides = [1, 1]} : vector<8x128xf32> to vector<8x32xf32>
      %176 = arith.negf %175 : vector<8x32xf32>
      %177 = math.exp %176 : vector<8x32xf32>
      %cst_67 = arith.constant 1.000000e+00 : f32
      %178 = vector.broadcast %cst_67 : f32 to vector<8x32xf32>
      %179 = arith.addf %178, %177 : vector<8x32xf32>
      %180 = arith.divf %178, %179 : vector<8x32xf32>
      %181 = arith.mulf %172, %arg22 : vector<8x32xf32>
      %182 = arith.mulf %166, %174 : vector<8x32xf32>
      %183 = arith.addf %181, %182 : vector<8x32xf32>
      %184 = math.tanh %183 : vector<8x32xf32>
      %185 = arith.mulf %180, %184 : vector<8x32xf32>
      %186 = arith.truncf %185 : vector<8x32xf32> to vector<8x32xbf16>
      %c2 = arith.constant 2 : index
      %c0_68 = arith.constant 0 : index
      %c0_69 = arith.constant 0 : index
      %187 = vector.load %arg7[%c2, %c0_68, %c0_69] : memref<3x32x16xbf16, #tpu.memory_space<vmem>>, vector<1x32x16xbf16>
      %188 = vector.shape_cast %187 : vector<1x32x16xbf16> to vector<32x16xbf16>
      %cst_70 = arith.constant dense<0.000000e+00> : vector<8x16xf32>
      %189 = tpu.matmul %186, %188, %cst_70 {dimension_numbers = #tpu.dot_dimension_numbers<[1], [0], [0], [1], [0, 0, 1, 1], [], []>} : vector<8x32xbf16>, vector<32x16xbf16>, vector<8x16xf32> -> vector<8x16xf32>
      %c2_71 = arith.constant 2 : index
      %c0_72 = arith.constant 0 : index
      %c0_73 = arith.constant 0 : index
      %190 = vector.load %arg8[%c2_71, %c0_72, %c0_73] : memref<3x1x16xf32, #tpu.memory_space<vmem>>, vector<1x1x16xf32>
      %191 = vector.shape_cast %190 : vector<1x1x16xf32> to vector<1x16xf32>
      %192 = vector.broadcast %191 : vector<1x16xf32> to vector<8x16xf32>
      %193 = arith.addf %189, %192 : vector<8x16xf32>
      %cst_74 = arith.constant 0.000000e+00 : f32
      %194 = vector.broadcast %cst_74 : f32 to vector<8x16xf32>
      %195 = arith.maximumf %193, %194 : vector<8x16xf32>
      %196 = arith.truncf %195 : vector<8x16xf32> to vector<8x16xbf16>
      %c2_75 = arith.constant 2 : index
      %c0_76 = arith.constant 0 : index
      %c0_77 = arith.constant 0 : index
      %197 = vector.load %arg9[%c2_75, %c0_76, %c0_77] : memref<3x16x137xbf16, #tpu.memory_space<vmem>>, vector<1x16x137xbf16>
      %198 = vector.shape_cast %197 : vector<1x16x137xbf16> to vector<16x137xbf16>
      %cst_78 = arith.constant dense<0.000000e+00> : vector<8x137xf32>
      %199 = tpu.matmul %196, %198, %cst_78 {dimension_numbers = #tpu.dot_dimension_numbers<[1], [0], [0], [1], [0, 0, 1, 1], [], []>} : vector<8x16xbf16>, vector<16x137xbf16>, vector<8x137xf32> -> vector<8x137xf32>
      %200 = vector.extract_strided_slice %199 {offsets = [0, 128], sizes = [8, 9], strides = [1, 1]} : vector<8x137xf32> to vector<8x9xf32>
      %201 = arith.addf %105, %153 : vector<8x9xf32>
      %202 = arith.addf %201, %200 : vector<8x9xf32>
      %c0_79 = arith.constant 0 : index
      %c0_80 = arith.constant 0 : index
      %203 = vector.load %arg10[%c0_79, %c0_80] : memref<1x9xf32, #tpu.memory_space<vmem>>, vector<1x9xf32>
      %204 = vector.broadcast %203 : vector<1x9xf32> to vector<8x9xf32>
      %205 = arith.addf %202, %204 : vector<8x9xf32>
      %206 = arith.index_cast %18 : i32 to index
      %c0_81 = arith.constant 0 : index
      %c0_82 = arith.constant 0 : index
      %207 = vector.load %arg11[%206, %c0_81, %c0_82] : memref<8x8x9xf32, #tpu.memory_space<vmem>>, vector<1x8x9xf32>
      %208 = vector.shape_cast %207 : vector<1x8x9xf32> to vector<8x9xf32>
      %209 = vector.shape_cast %205 : vector<8x9xf32> to vector<1x8x9xf32>
      tpu.vector_store %arg11[%206, %c0_81, %c0_82], %209 {strides = array<i32>} : memref<8x8x9xf32, #tpu.memory_space<vmem>>, vector<1x8x9xf32>,
      %210 = tpu.concatenate %89, %137, %185 in 1 : vector<8x32xf32>, vector<8x32xf32>, vector<8x32xf32> -> vector<8x96xf32>
      %c1_i32_83 = arith.constant 1 : i32
      %211 = arith.addi %17, %c1_i32_83 : i32
      %212 = arith.index_cast %211 : i32 to index
      %c0_84 = arith.constant 0 : index
      %c0_85 = arith.constant 0 : index
      %213 = vector.load %arg2[%212, %c0_84, %c0_85] : memref<8x8x512xbf16, #tpu.memory_space<vmem>>, vector<1x8x512xbf16>
      %214 = vector.shape_cast %213 : vector<1x8x512xbf16> to vector<8x512xbf16>
      %215 = arith.truncf %210 : vector<8x96xf32> to vector<8x96xbf16>
      %c0_86 = arith.constant 0 : index
      %c0_87 = arith.constant 0 : index
      %216 = vector.load %arg5[%c0_86, %c0_87] : memref<96x384xbf16, #tpu.memory_space<vmem>>, vector<96x384xbf16>
      %cst_88 = arith.constant dense<0.000000e+00> : vector<8x384xf32>
      %217 = tpu.matmul %215, %216, %cst_88 {dimension_numbers = #tpu.dot_dimension_numbers<[1], [0], [0], [1], [0, 0, 1, 1], [], []>} : vector<8x96xbf16>, vector<96x384xbf16>, vector<8x384xf32> -> vector<8x384xf32>
      %218 = vector.extract_strided_slice %214 {offsets = [0, 0], sizes = [8, 256], strides = [1, 1]} : vector<8x512xbf16> to vector<8x256xbf16>
      %219 = arith.truncf %55 : vector<8x64xf32> to vector<8x64xbf16>
      %c0_89 = arith.constant 0 : index
      %c0_90 = arith.constant 0 : index
      %220 = vector.load %arg3[%c0_89, %c0_90] : memref<64x256xbf16, #tpu.memory_space<vmem>>, vector<64x256xbf16>
      %cst_91 = arith.constant dense<0.000000e+00> : vector<8x256xf32>
      %221 = tpu.matmul %219, %220, %cst_91 {dimension_numbers = #tpu.dot_dimension_numbers<[1], [0], [0], [1], [0, 0, 1, 1], [], []>} : vector<8x64xbf16>, vector<64x256xbf16>, vector<8x256xf32> -> vector<8x256xf32>
      %222 = arith.extf %218 : vector<8x256xbf16> to vector<8x256xf32>
      %223 = arith.addf %222, %221 : vector<8x256xf32>
      %224 = vector.extract_strided_slice %223 {offsets = [0, 0], sizes = [8, 64], strides = [1, 1]} : vector<8x256xf32> to vector<8x64xf32>
      %225 = arith.negf %224 : vector<8x64xf32>
      %226 = math.exp %225 : vector<8x64xf32>
      %cst_92 = arith.constant 1.000000e+00 : f32
      %227 = vector.broadcast %cst_92 : f32 to vector<8x64xf32>
      %228 = arith.addf %227, %226 : vector<8x64xf32>
      %229 = arith.divf %227, %228 : vector<8x64xf32>
      %230 = vector.extract_strided_slice %223 {offsets = [0, 64], sizes = [8, 64], strides = [1, 1]} : vector<8x256xf32> to vector<8x64xf32>
      %231 = arith.negf %230 : vector<8x64xf32>
      %232 = math.exp %231 : vector<8x64xf32>
      %cst_93 = arith.constant 1.000000e+00 : f32
      %233 = vector.broadcast %cst_93 : f32 to vector<8x64xf32>
      %234 = arith.addf %233, %232 : vector<8x64xf32>
      %235 = arith.divf %233, %234 : vector<8x64xf32>
      %236 = vector.extract_strided_slice %223 {offsets = [0, 128], sizes = [8, 64], strides = [1, 1]} : vector<8x256xf32> to vector<8x64xf32>
      %237 = math.tanh %236 : vector<8x64xf32>
      %238 = vector.extract_strided_slice %223 {offsets = [0, 192], sizes = [8, 64], strides = [1, 1]} : vector<8x256xf32> to vector<8x64xf32>
      %239 = arith.negf %238 : vector<8x64xf32>
      %240 = math.exp %239 : vector<8x64xf32>
      %cst_94 = arith.constant 1.000000e+00 : f32
      %241 = vector.broadcast %cst_94 : f32 to vector<8x64xf32>
      %242 = arith.addf %241, %240 : vector<8x64xf32>
      %243 = arith.divf %241, %242 : vector<8x64xf32>
      %244 = arith.mulf %235, %53 : vector<8x64xf32>
      %245 = arith.mulf %229, %237 : vector<8x64xf32>
      %246 = arith.addf %244, %245 : vector<8x64xf32>
      %247 = math.tanh %246 : vector<8x64xf32>
      %248 = arith.mulf %243, %247 : vector<8x64xf32>
      %249 = arith.truncf %248 : vector<8x64xf32> to vector<8x64xbf16>
      %c0_95 = arith.constant 0 : index
      %c0_96 = arith.constant 0 : index
      %250 = vector.load %arg4[%c0_95, %c0_96] : memref<64x384xbf16, #tpu.memory_space<vmem>>, vector<64x384xbf16>
      %cst_97 = arith.constant dense<0.000000e+00> : vector<8x384xf32>
      %251 = tpu.matmul %249, %250, %cst_97 {dimension_numbers = #tpu.dot_dimension_numbers<[1], [0], [0], [1], [0, 0, 1, 1], [], []>} : vector<8x64xbf16>, vector<64x384xbf16>, vector<8x384xf32> -> vector<8x384xf32>
      %252 = vector.extract_strided_slice %214 {offsets = [0, 256], sizes = [8, 128], strides = [1, 1]} : vector<8x512xbf16> to vector<8x128xbf16>
      %253 = vector.extract_strided_slice %251 {offsets = [0, 0], sizes = [8, 128], strides = [1, 1]} : vector<8x384xf32> to vector<8x128xf32>
      %254 = arith.extf %252 : vector<8x128xbf16> to vector<8x128xf32>
      %255 = arith.addf %254, %253 : vector<8x128xf32>
      %256 = vector.extract_strided_slice %217 {offsets = [0, 0], sizes = [8, 128], strides = [1, 1]} : vector<8x384xf32> to vector<8x128xf32>
      %257 = arith.addf %255, %256 : vector<8x128xf32>
      %258 = vector.extract_strided_slice %257 {offsets = [0, 0], sizes = [8, 32], strides = [1, 1]} : vector<8x128xf32> to vector<8x32xf32>
      %259 = arith.negf %258 : vector<8x32xf32>
      %260 = math.exp %259 : vector<8x32xf32>
      %cst_98 = arith.constant 1.000000e+00 : f32
      %261 = vector.broadcast %cst_98 : f32 to vector<8x32xf32>
      %262 = arith.addf %261, %260 : vector<8x32xf32>
      %263 = arith.divf %261, %262 : vector<8x32xf32>
      %264 = vector.extract_strided_slice %257 {offsets = [0, 32], sizes = [8, 32], strides = [1, 1]} : vector<8x128xf32> to vector<8x32xf32>
      %265 = arith.negf %264 : vector<8x32xf32>
      %266 = math.exp %265 : vector<8x32xf32>
      %cst_99 = arith.constant 1.000000e+00 : f32
      %267 = vector.broadcast %cst_99 : f32 to vector<8x32xf32>
      %268 = arith.addf %267, %266 : vector<8x32xf32>
      %269 = arith.divf %267, %268 : vector<8x32xf32>
      %270 = vector.extract_strided_slice %257 {offsets = [0, 64], sizes = [8, 32], strides = [1, 1]} : vector<8x128xf32> to vector<8x32xf32>
      %271 = math.tanh %270 : vector<8x32xf32>
      %272 = vector.extract_strided_slice %257 {offsets = [0, 96], sizes = [8, 32], strides = [1, 1]} : vector<8x128xf32> to vector<8x32xf32>
      %273 = arith.negf %272 : vector<8x32xf32>
      %274 = math.exp %273 : vector<8x32xf32>
      %cst_100 = arith.constant 1.000000e+00 : f32
      %275 = vector.broadcast %cst_100 : f32 to vector<8x32xf32>
      %276 = arith.addf %275, %274 : vector<8x32xf32>
      %277 = arith.divf %275, %276 : vector<8x32xf32>
      %278 = arith.mulf %269, %87 : vector<8x32xf32>
      %279 = arith.mulf %263, %271 : vector<8x32xf32>
      %280 = arith.addf %278, %279 : vector<8x32xf32>
      %281 = math.tanh %280 : vector<8x32xf32>
      %282 = arith.mulf %277, %281 : vector<8x32xf32>
      %283 = arith.truncf %282 : vector<8x32xf32> to vector<8x32xbf16>
      %c0_101 = arith.constant 0 : index
      %c0_102 = arith.constant 0 : index
      %c0_103 = arith.constant 0 : index
      %284 = vector.load %arg7[%c0_101, %c0_102, %c0_103] : memref<3x32x16xbf16, #tpu.memory_space<vmem>>, vector<1x32x16xbf16>
      %285 = vector.shape_cast %284 : vector<1x32x16xbf16> to vector<32x16xbf16>
      %cst_104 = arith.constant dense<0.000000e+00> : vector<8x16xf32>
      %286 = tpu.matmul %283, %285, %cst_104 {dimension_numbers = #tpu.dot_dimension_numbers<[1], [0], [0], [1], [0, 0, 1, 1], [], []>} : vector<8x32xbf16>, vector<32x16xbf16>, vector<8x16xf32> -> vector<8x16xf32>
      %c0_105 = arith.constant 0 : index
      %c0_106 = arith.constant 0 : index
      %c0_107 = arith.constant 0 : index
      %287 = vector.load %arg8[%c0_105, %c0_106, %c0_107] : memref<3x1x16xf32, #tpu.memory_space<vmem>>, vector<1x1x16xf32>
      %288 = vector.shape_cast %287 : vector<1x1x16xf32> to vector<1x16xf32>
      %289 = vector.broadcast %288 : vector<1x16xf32> to vector<8x16xf32>
      %290 = arith.addf %286, %289 : vector<8x16xf32>
      %cst_108 = arith.constant 0.000000e+00 : f32
      %291 = vector.broadcast %cst_108 : f32 to vector<8x16xf32>
      %292 = arith.maximumf %290, %291 : vector<8x16xf32>
      %293 = arith.truncf %292 : vector<8x16xf32> to vector<8x16xbf16>
      %c0_109 = arith.constant 0 : index
      %c0_110 = arith.constant 0 : index
      %c0_111 = arith.constant 0 : index
      %294 = vector.load %arg9[%c0_109, %c0_110, %c0_111] : memref<3x16x137xbf16, #tpu.memory_space<vmem>>, vector<1x16x137xbf16>
      %295 = vector.shape_cast %294 : vector<1x16x137xbf16> to vector<16x137xbf16>
      %cst_112 = arith.constant dense<0.000000e+00> : vector<8x137xf32>
      %296 = tpu.matmul %293, %295, %cst_112 {dimension_numbers = #tpu.dot_dimension_numbers<[1], [0], [0], [1], [0, 0, 1, 1], [], []>} : vector<8x16xbf16>, vector<16x137xbf16>, vector<8x137xf32> -> vector<8x137xf32>
      %297 = vector.extract_strided_slice %296 {offsets = [0, 0], sizes = [8, 128], strides = [1, 1]} : vector<8x137xf32> to vector<8x128xf32>
      %298 = vector.extract_strided_slice %296 {offsets = [0, 128], sizes = [8, 9], strides = [1, 1]} : vector<8x137xf32> to vector<8x9xf32>
      %299 = vector.extract_strided_slice %214 {offsets = [0, 384], sizes = [8, 128], strides = [1, 1]} : vector<8x512xbf16> to vector<8x128xbf16>
      %300 = vector.extract_strided_slice %251 {offsets = [0, 128], sizes = [8, 128], strides = [1, 1]} : vector<8x384xf32> to vector<8x128xf32>
      %301 = arith.extf %299 : vector<8x128xbf16> to vector<8x128xf32>
      %302 = arith.addf %301, %300 : vector<8x128xf32>
      %303 = vector.extract_strided_slice %217 {offsets = [0, 128], sizes = [8, 128], strides = [1, 1]} : vector<8x384xf32> to vector<8x128xf32>
      %304 = arith.addf %302, %303 : vector<8x128xf32>
      %305 = arith.addf %304, %297 : vector<8x128xf32>
      %306 = vector.extract_strided_slice %305 {offsets = [0, 0], sizes = [8, 32], strides = [1, 1]} : vector<8x128xf32> to vector<8x32xf32>
      %307 = arith.negf %306 : vector<8x32xf32>
      %308 = math.exp %307 : vector<8x32xf32>
      %cst_113 = arith.constant 1.000000e+00 : f32
      %309 = vector.broadcast %cst_113 : f32 to vector<8x32xf32>
      %310 = arith.addf %309, %308 : vector<8x32xf32>
      %311 = arith.divf %309, %310 : vector<8x32xf32>
      %312 = vector.extract_strided_slice %305 {offsets = [0, 32], sizes = [8, 32], strides = [1, 1]} : vector<8x128xf32> to vector<8x32xf32>
      %313 = arith.negf %312 : vector<8x32xf32>
      %314 = math.exp %313 : vector<8x32xf32>
      %cst_114 = arith.constant 1.000000e+00 : f32
      %315 = vector.broadcast %cst_114 : f32 to vector<8x32xf32>
      %316 = arith.addf %315, %314 : vector<8x32xf32>
      %317 = arith.divf %315, %316 : vector<8x32xf32>
      %318 = vector.extract_strided_slice %305 {offsets = [0, 64], sizes = [8, 32], strides = [1, 1]} : vector<8x128xf32> to vector<8x32xf32>
      %319 = math.tanh %318 : vector<8x32xf32>
      %320 = vector.extract_strided_slice %305 {offsets = [0, 96], sizes = [8, 32], strides = [1, 1]} : vector<8x128xf32> to vector<8x32xf32>
      %321 = arith.negf %320 : vector<8x32xf32>
      %322 = math.exp %321 : vector<8x32xf32>
      %cst_115 = arith.constant 1.000000e+00 : f32
      %323 = vector.broadcast %cst_115 : f32 to vector<8x32xf32>
      %324 = arith.addf %323, %322 : vector<8x32xf32>
      %325 = arith.divf %323, %324 : vector<8x32xf32>
      %326 = arith.mulf %317, %135 : vector<8x32xf32>
      %327 = arith.mulf %311, %319 : vector<8x32xf32>
      %328 = arith.addf %326, %327 : vector<8x32xf32>
      %329 = math.tanh %328 : vector<8x32xf32>
      %330 = arith.mulf %325, %329 : vector<8x32xf32>
      %331 = arith.truncf %330 : vector<8x32xf32> to vector<8x32xbf16>
      %c1_116 = arith.constant 1 : index
      %c0_117 = arith.constant 0 : index
      %c0_118 = arith.constant 0 : index
      %332 = vector.load %arg7[%c1_116, %c0_117, %c0_118] : memref<3x32x16xbf16, #tpu.memory_space<vmem>>, vector<1x32x16xbf16>
      %333 = vector.shape_cast %332 : vector<1x32x16xbf16> to vector<32x16xbf16>
      %cst_119 = arith.constant dense<0.000000e+00> : vector<8x16xf32>
      %334 = tpu.matmul %331, %333, %cst_119 {dimension_numbers = #tpu.dot_dimension_numbers<[1], [0], [0], [1], [0, 0, 1, 1], [], []>} : vector<8x32xbf16>, vector<32x16xbf16>, vector<8x16xf32> -> vector<8x16xf32>
      %c1_120 = arith.constant 1 : index
      %c0_121 = arith.constant 0 : index
      %c0_122 = arith.constant 0 : index
      %335 = vector.load %arg8[%c1_120, %c0_121, %c0_122] : memref<3x1x16xf32, #tpu.memory_space<vmem>>, vector<1x1x16xf32>
      %336 = vector.shape_cast %335 : vector<1x1x16xf32> to vector<1x16xf32>
      %337 = vector.broadcast %336 : vector<1x16xf32> to vector<8x16xf32>
      %338 = arith.addf %334, %337 : vector<8x16xf32>
      %cst_123 = arith.constant 0.000000e+00 : f32
      %339 = vector.broadcast %cst_123 : f32 to vector<8x16xf32>
      %340 = arith.maximumf %338, %339 : vector<8x16xf32>
      %341 = arith.truncf %340 : vector<8x16xf32> to vector<8x16xbf16>
      %c1_124 = arith.constant 1 : index
      %c0_125 = arith.constant 0 : index
      %c0_126 = arith.constant 0 : index
      %342 = vector.load %arg9[%c1_124, %c0_125, %c0_126] : memref<3x16x137xbf16, #tpu.memory_space<vmem>>, vector<1x16x137xbf16>
      %343 = vector.shape_cast %342 : vector<1x16x137xbf16> to vector<16x137xbf16>
      %cst_127 = arith.constant dense<0.000000e+00> : vector<8x137xf32>
      %344 = tpu.matmul %341, %343, %cst_127 {dimension_numbers = #tpu.dot_dimension_numbers<[1], [0], [0], [1], [0, 0, 1, 1], [], []>} : vector<8x16xbf16>, vector<16x137xbf16>, vector<8x137xf32> -> vector<8x137xf32>
      %345 = vector.extract_strided_slice %344 {offsets = [0, 0], sizes = [8, 128], strides = [1, 1]} : vector<8x137xf32> to vector<8x128xf32>
      %346 = vector.extract_strided_slice %344 {offsets = [0, 128], sizes = [8, 9], strides = [1, 1]} : vector<8x137xf32> to vector<8x9xf32>
      %c0_128 = arith.constant 0 : index
      %c0_129 = arith.constant 0 : index
      %347 = vector.load %arg6[%c0_128, %c0_129] : memref<1x128xf32, #tpu.memory_space<vmem>>, vector<1x128xf32>
      %348 = vector.extract_strided_slice %251 {offsets = [0, 256], sizes = [8, 128], strides = [1, 1]} : vector<8x384xf32> to vector<8x128xf32>
      %349 = vector.broadcast %347 : vector<1x128xf32> to vector<8x128xf32>
      %350 = arith.addf %349, %348 : vector<8x128xf32>
      %351 = vector.extract_strided_slice %217 {offsets = [0, 256], sizes = [8, 128], strides = [1, 1]} : vector<8x384xf32> to vector<8x128xf32>
      %352 = arith.addf %350, %351 : vector<8x128xf32>
      %353 = arith.addf %352, %345 : vector<8x128xf32>
      %354 = vector.extract_strided_slice %353 {offsets = [0, 0], sizes = [8, 32], strides = [1, 1]} : vector<8x128xf32> to vector<8x32xf32>
      %355 = arith.negf %354 : vector<8x32xf32>
      %356 = math.exp %355 : vector<8x32xf32>
      %cst_130 = arith.constant 1.000000e+00 : f32
      %357 = vector.broadcast %cst_130 : f32 to vector<8x32xf32>
      %358 = arith.addf %357, %356 : vector<8x32xf32>
      %359 = arith.divf %357, %358 : vector<8x32xf32>
      %360 = vector.extract_strided_slice %353 {offsets = [0, 32], sizes = [8, 32], strides = [1, 1]} : vector<8x128xf32> to vector<8x32xf32>
      %361 = arith.negf %360 : vector<8x32xf32>
      %362 = math.exp %361 : vector<8x32xf32>
      %cst_131 = arith.constant 1.000000e+00 : f32
      %363 = vector.broadcast %cst_131 : f32 to vector<8x32xf32>
      %364 = arith.addf %363, %362 : vector<8x32xf32>
      %365 = arith.divf %363, %364 : vector<8x32xf32>
      %366 = vector.extract_strided_slice %353 {offsets = [0, 64], sizes = [8, 32], strides = [1, 1]} : vector<8x128xf32> to vector<8x32xf32>
      %367 = math.tanh %366 : vector<8x32xf32>
      %368 = vector.extract_strided_slice %353 {offsets = [0, 96], sizes = [8, 32], strides = [1, 1]} : vector<8x128xf32> to vector<8x32xf32>
      %369 = arith.negf %368 : vector<8x32xf32>
      %370 = math.exp %369 : vector<8x32xf32>
      %cst_132 = arith.constant 1.000000e+00 : f32
      %371 = vector.broadcast %cst_132 : f32 to vector<8x32xf32>
      %372 = arith.addf %371, %370 : vector<8x32xf32>
      %373 = arith.divf %371, %372 : vector<8x32xf32>
      %374 = arith.mulf %365, %183 : vector<8x32xf32>
      %375 = arith.mulf %359, %367 : vector<8x32xf32>
      %376 = arith.addf %374, %375 : vector<8x32xf32>
      %377 = math.tanh %376 : vector<8x32xf32>
      %378 = arith.mulf %373, %377 : vector<8x32xf32>
      %379 = arith.truncf %378 : vector<8x32xf32> to vector<8x32xbf16>
      %c2_133 = arith.constant 2 : index
      %c0_134 = arith.constant 0 : index
      %c0_135 = arith.constant 0 : index
      %380 = vector.load %arg7[%c2_133, %c0_134, %c0_135] : memref<3x32x16xbf16, #tpu.memory_space<vmem>>, vector<1x32x16xbf16>
      %381 = vector.shape_cast %380 : vector<1x32x16xbf16> to vector<32x16xbf16>
      %cst_136 = arith.constant dense<0.000000e+00> : vector<8x16xf32>
      %382 = tpu.matmul %379, %381, %cst_136 {dimension_numbers = #tpu.dot_dimension_numbers<[1], [0], [0], [1], [0, 0, 1, 1], [], []>} : vector<8x32xbf16>, vector<32x16xbf16>, vector<8x16xf32> -> vector<8x16xf32>
      %c2_137 = arith.constant 2 : index
      %c0_138 = arith.constant 0 : index
      %c0_139 = arith.constant 0 : index
      %383 = vector.load %arg8[%c2_137, %c0_138, %c0_139] : memref<3x1x16xf32, #tpu.memory_space<vmem>>, vector<1x1x16xf32>
      %384 = vector.shape_cast %383 : vector<1x1x16xf32> to vector<1x16xf32>
      %385 = vector.broadcast %384 : vector<1x16xf32> to vector<8x16xf32>
      %386 = arith.addf %382, %385 : vector<8x16xf32>
      %cst_140 = arith.constant 0.000000e+00 : f32
      %387 = vector.broadcast %cst_140 : f32 to vector<8x16xf32>
      %388 = arith.maximumf %386, %387 : vector<8x16xf32>
      %389 = arith.truncf %388 : vector<8x16xf32> to vector<8x16xbf16>
      %c2_141 = arith.constant 2 : index
      %c0_142 = arith.constant 0 : index
      %c0_143 = arith.constant 0 : index
      %390 = vector.load %arg9[%c2_141, %c0_142, %c0_143] : memref<3x16x137xbf16, #tpu.memory_space<vmem>>, vector<1x16x137xbf16>
      %391 = vector.shape_cast %390 : vector<1x16x137xbf16> to vector<16x137xbf16>
      %cst_144 = arith.constant dense<0.000000e+00> : vector<8x137xf32>
      %392 = tpu.matmul %389, %391, %cst_144 {dimension_numbers = #tpu.dot_dimension_numbers<[1], [0], [0], [1], [0, 0, 1, 1], [], []>} : vector<8x16xbf16>, vector<16x137xbf16>, vector<8x137xf32> -> vector<8x137xf32>
      %393 = vector.extract_strided_slice %392 {offsets = [0, 128], sizes = [8, 9], strides = [1, 1]} : vector<8x137xf32> to vector<8x9xf32>
      %394 = arith.addf %298, %346 : vector<8x9xf32>
      %395 = arith.addf %394, %393 : vector<8x9xf32>
      %c0_145 = arith.constant 0 : index
      %c0_146 = arith.constant 0 : index
      %396 = vector.load %arg10[%c0_145, %c0_146] : memref<1x9xf32, #tpu.memory_space<vmem>>, vector<1x9xf32>
      %397 = vector.broadcast %396 : vector<1x9xf32> to vector<8x9xf32>
      %398 = arith.addf %395, %397 : vector<8x9xf32>
      %399 = arith.index_cast %211 : i32 to index
      %c0_147 = arith.constant 0 : index
      %c0_148 = arith.constant 0 : index
      %400 = vector.load %arg11[%399, %c0_147, %c0_148] : memref<8x8x9xf32, #tpu.memory_space<vmem>>, vector<1x8x9xf32>
      %401 = vector.shape_cast %400 : vector<1x8x9xf32> to vector<8x9xf32>
      %402 = vector.shape_cast %398 : vector<8x9xf32> to vector<1x8x9xf32>
      tpu.vector_store %arg11[%399, %c0_147, %c0_148], %402 {strides = array<i32>} : memref<8x8x9xf32, #tpu.memory_space<vmem>>, vector<1x8x9xf32>,
      %403 = tpu.concatenate %282, %330, %378 in 1 : vector<8x32xf32>, vector<8x32xf32>, vector<8x32xf32> -> vector<8x96xf32>
      %c2_i32_149 = arith.constant 2 : i32
      %404 = arith.addi %17, %c2_i32_149 : i32
      %405 = arith.index_cast %404 : i32 to index
      %c0_150 = arith.constant 0 : index
      %c0_151 = arith.constant 0 : index
      %406 = vector.load %arg2[%405, %c0_150, %c0_151] : memref<8x8x512xbf16, #tpu.memory_space<vmem>>, vector<1x8x512xbf16>
      %407 = vector.shape_cast %406 : vector<1x8x512xbf16> to vector<8x512xbf16>
      %408 = arith.truncf %403 : vector<8x96xf32> to vector<8x96xbf16>
      %c0_152 = arith.constant 0 : index
      %c0_153 = arith.constant 0 : index
      %409 = vector.load %arg5[%c0_152, %c0_153] : memref<96x384xbf16, #tpu.memory_space<vmem>>, vector<96x384xbf16>
      %cst_154 = arith.constant dense<0.000000e+00> : vector<8x384xf32>
      %410 = tpu.matmul %408, %409, %cst_154 {dimension_numbers = #tpu.dot_dimension_numbers<[1], [0], [0], [1], [0, 0, 1, 1], [], []>} : vector<8x96xbf16>, vector<96x384xbf16>, vector<8x384xf32> -> vector<8x384xf32>
      %411 = vector.extract_strided_slice %407 {offsets = [0, 0], sizes = [8, 256], strides = [1, 1]} : vector<8x512xbf16> to vector<8x256xbf16>
      %412 = arith.truncf %248 : vector<8x64xf32> to vector<8x64xbf16>
      %c0_155 = arith.constant 0 : index
      %c0_156 = arith.constant 0 : index
      %413 = vector.load %arg3[%c0_155, %c0_156] : memref<64x256xbf16, #tpu.memory_space<vmem>>, vector<64x256xbf16>
      %cst_157 = arith.constant dense<0.000000e+00> : vector<8x256xf32>
      %414 = tpu.matmul %412, %413, %cst_157 {dimension_numbers = #tpu.dot_dimension_numbers<[1], [0], [0], [1], [0, 0, 1, 1], [], []>} : vector<8x64xbf16>, vector<64x256xbf16>, vector<8x256xf32> -> vector<8x256xf32>
      %415 = arith.extf %411 : vector<8x256xbf16> to vector<8x256xf32>
      %416 = arith.addf %415, %414 : vector<8x256xf32>
      %417 = vector.extract_strided_slice %416 {offsets = [0, 0], sizes = [8, 64], strides = [1, 1]} : vector<8x256xf32> to vector<8x64xf32>
      %418 = arith.negf %417 : vector<8x64xf32>
      %419 = math.exp %418 : vector<8x64xf32>
      %cst_158 = arith.constant 1.000000e+00 : f32
      %420 = vector.broadcast %cst_158 : f32 to vector<8x64xf32>
      %421 = arith.addf %420, %419 : vector<8x64xf32>
      %422 = arith.divf %420, %421 : vector<8x64xf32>
      %423 = vector.extract_strided_slice %416 {offsets = [0, 64], sizes = [8, 64], strides = [1, 1]} : vector<8x256xf32> to vector<8x64xf32>
      %424 = arith.negf %423 : vector<8x64xf32>
      %425 = math.exp %424 : vector<8x64xf32>
      %cst_159 = arith.constant 1.000000e+00 : f32
      %426 = vector.broadcast %cst_159 : f32 to vector<8x64xf32>
      %427 = arith.addf %426, %425 : vector<8x64xf32>
      %428 = arith.divf %426, %427 : vector<8x64xf32>
      %429 = vector.extract_strided_slice %416 {offsets = [0, 128], sizes = [8, 64], strides = [1, 1]} : vector<8x256xf32> to vector<8x64xf32>
      %430 = math.tanh %429 : vector<8x64xf32>
      %431 = vector.extract_strided_slice %416 {offsets = [0, 192], sizes = [8, 64], strides = [1, 1]} : vector<8x256xf32> to vector<8x64xf32>
      %432 = arith.negf %431 : vector<8x64xf32>
      %433 = math.exp %432 : vector<8x64xf32>
      %cst_160 = arith.constant 1.000000e+00 : f32
      %434 = vector.broadcast %cst_160 : f32 to vector<8x64xf32>
      %435 = arith.addf %434, %433 : vector<8x64xf32>
      %436 = arith.divf %434, %435 : vector<8x64xf32>
      %437 = arith.mulf %428, %246 : vector<8x64xf32>
      %438 = arith.mulf %422, %430 : vector<8x64xf32>
      %439 = arith.addf %437, %438 : vector<8x64xf32>
      %440 = math.tanh %439 : vector<8x64xf32>
      %441 = arith.mulf %436, %440 : vector<8x64xf32>
      %442 = arith.truncf %441 : vector<8x64xf32> to vector<8x64xbf16>
      %c0_161 = arith.constant 0 : index
      %c0_162 = arith.constant 0 : index
      %443 = vector.load %arg4[%c0_161, %c0_162] : memref<64x384xbf16, #tpu.memory_space<vmem>>, vector<64x384xbf16>
      %cst_163 = arith.constant dense<0.000000e+00> : vector<8x384xf32>
      %444 = tpu.matmul %442, %443, %cst_163 {dimension_numbers = #tpu.dot_dimension_numbers<[1], [0], [0], [1], [0, 0, 1, 1], [], []>} : vector<8x64xbf16>, vector<64x384xbf16>, vector<8x384xf32> -> vector<8x384xf32>
      %445 = vector.extract_strided_slice %407 {offsets = [0, 256], sizes = [8, 128], strides = [1, 1]} : vector<8x512xbf16> to vector<8x128xbf16>
      %446 = vector.extract_strided_slice %444 {offsets = [0, 0], sizes = [8, 128], strides = [1, 1]} : vector<8x384xf32> to vector<8x128xf32>
      %447 = arith.extf %445 : vector<8x128xbf16> to vector<8x128xf32>
      %448 = arith.addf %447, %446 : vector<8x128xf32>
      %449 = vector.extract_strided_slice %410 {offsets = [0, 0], sizes = [8, 128], strides = [1, 1]} : vector<8x384xf32> to vector<8x128xf32>
      %450 = arith.addf %448, %449 : vector<8x128xf32>
      %451 = vector.extract_strided_slice %450 {offsets = [0, 0], sizes = [8, 32], strides = [1, 1]} : vector<8x128xf32> to vector<8x32xf32>
      %452 = arith.negf %451 : vector<8x32xf32>
      %453 = math.exp %452 : vector<8x32xf32>
      %cst_164 = arith.constant 1.000000e+00 : f32
      %454 = vector.broadcast %cst_164 : f32 to vector<8x32xf32>
      %455 = arith.addf %454, %453 : vector<8x32xf32>
      %456 = arith.divf %454, %455 : vector<8x32xf32>
      %457 = vector.extract_strided_slice %450 {offsets = [0, 32], sizes = [8, 32], strides = [1, 1]} : vector<8x128xf32> to vector<8x32xf32>
      %458 = arith.negf %457 : vector<8x32xf32>
      %459 = math.exp %458 : vector<8x32xf32>
      %cst_165 = arith.constant 1.000000e+00 : f32
      %460 = vector.broadcast %cst_165 : f32 to vector<8x32xf32>
      %461 = arith.addf %460, %459 : vector<8x32xf32>
      %462 = arith.divf %460, %461 : vector<8x32xf32>
      %463 = vector.extract_strided_slice %450 {offsets = [0, 64], sizes = [8, 32], strides = [1, 1]} : vector<8x128xf32> to vector<8x32xf32>
      %464 = math.tanh %463 : vector<8x32xf32>
      %465 = vector.extract_strided_slice %450 {offsets = [0, 96], sizes = [8, 32], strides = [1, 1]} : vector<8x128xf32> to vector<8x32xf32>
      %466 = arith.negf %465 : vector<8x32xf32>
      %467 = math.exp %466 : vector<8x32xf32>
      %cst_166 = arith.constant 1.000000e+00 : f32
      %468 = vector.broadcast %cst_166 : f32 to vector<8x32xf32>
      %469 = arith.addf %468, %467 : vector<8x32xf32>
      %470 = arith.divf %468, %469 : vector<8x32xf32>
      %471 = arith.mulf %462, %280 : vector<8x32xf32>
      %472 = arith.mulf %456, %464 : vector<8x32xf32>
      %473 = arith.addf %471, %472 : vector<8x32xf32>
      %474 = math.tanh %473 : vector<8x32xf32>
      %475 = arith.mulf %470, %474 : vector<8x32xf32>
      %476 = arith.truncf %475 : vector<8x32xf32> to vector<8x32xbf16>
      %c0_167 = arith.constant 0 : index
      %c0_168 = arith.constant 0 : index
      %c0_169 = arith.constant 0 : index
      %477 = vector.load %arg7[%c0_167, %c0_168, %c0_169] : memref<3x32x16xbf16, #tpu.memory_space<vmem>>, vector<1x32x16xbf16>
      %478 = vector.shape_cast %477 : vector<1x32x16xbf16> to vector<32x16xbf16>
      %cst_170 = arith.constant dense<0.000000e+00> : vector<8x16xf32>
      %479 = tpu.matmul %476, %478, %cst_170 {dimension_numbers = #tpu.dot_dimension_numbers<[1], [0], [0], [1], [0, 0, 1, 1], [], []>} : vector<8x32xbf16>, vector<32x16xbf16>, vector<8x16xf32> -> vector<8x16xf32>
      %c0_171 = arith.constant 0 : index
      %c0_172 = arith.constant 0 : index
      %c0_173 = arith.constant 0 : index
      %480 = vector.load %arg8[%c0_171, %c0_172, %c0_173] : memref<3x1x16xf32, #tpu.memory_space<vmem>>, vector<1x1x16xf32>
      %481 = vector.shape_cast %480 : vector<1x1x16xf32> to vector<1x16xf32>
      %482 = vector.broadcast %481 : vector<1x16xf32> to vector<8x16xf32>
      %483 = arith.addf %479, %482 : vector<8x16xf32>
      %cst_174 = arith.constant 0.000000e+00 : f32
      %484 = vector.broadcast %cst_174 : f32 to vector<8x16xf32>
      %485 = arith.maximumf %483, %484 : vector<8x16xf32>
      %486 = arith.truncf %485 : vector<8x16xf32> to vector<8x16xbf16>
      %c0_175 = arith.constant 0 : index
      %c0_176 = arith.constant 0 : index
      %c0_177 = arith.constant 0 : index
      %487 = vector.load %arg9[%c0_175, %c0_176, %c0_177] : memref<3x16x137xbf16, #tpu.memory_space<vmem>>, vector<1x16x137xbf16>
      %488 = vector.shape_cast %487 : vector<1x16x137xbf16> to vector<16x137xbf16>
      %cst_178 = arith.constant dense<0.000000e+00> : vector<8x137xf32>
      %489 = tpu.matmul %486, %488, %cst_178 {dimension_numbers = #tpu.dot_dimension_numbers<[1], [0], [0], [1], [0, 0, 1, 1], [], []>} : vector<8x16xbf16>, vector<16x137xbf16>, vector<8x137xf32> -> vector<8x137xf32>
      %490 = vector.extract_strided_slice %489 {offsets = [0, 0], sizes = [8, 128], strides = [1, 1]} : vector<8x137xf32> to vector<8x128xf32>
      %491 = vector.extract_strided_slice %489 {offsets = [0, 128], sizes = [8, 9], strides = [1, 1]} : vector<8x137xf32> to vector<8x9xf32>
      %492 = vector.extract_strided_slice %407 {offsets = [0, 384], sizes = [8, 128], strides = [1, 1]} : vector<8x512xbf16> to vector<8x128xbf16>
      %493 = vector.extract_strided_slice %444 {offsets = [0, 128], sizes = [8, 128], strides = [1, 1]} : vector<8x384xf32> to vector<8x128xf32>
      %494 = arith.extf %492 : vector<8x128xbf16> to vector<8x128xf32>
      %495 = arith.addf %494, %493 : vector<8x128xf32>
      %496 = vector.extract_strided_slice %410 {offsets = [0, 128], sizes = [8, 128], strides = [1, 1]} : vector<8x384xf32> to vector<8x128xf32>
      %497 = arith.addf %495, %496 : vector<8x128xf32>
      %498 = arith.addf %497, %490 : vector<8x128xf32>
      %499 = vector.extract_strided_slice %498 {offsets = [0, 0], sizes = [8, 32], strides = [1, 1]} : vector<8x128xf32> to vector<8x32xf32>
      %500 = arith.negf %499 : vector<8x32xf32>
      %501 = math.exp %500 : vector<8x32xf32>
      %cst_179 = arith.constant 1.000000e+00 : f32
      %502 = vector.broadcast %cst_179 : f32 to vector<8x32xf32>
      %503 = arith.addf %502, %501 : vector<8x32xf32>
      %504 = arith.divf %502, %503 : vector<8x32xf32>
      %505 = vector.extract_strided_slice %498 {offsets = [0, 32], sizes = [8, 32], strides = [1, 1]} : vector<8x128xf32> to vector<8x32xf32>
      %506 = arith.negf %505 : vector<8x32xf32>
      %507 = math.exp %506 : vector<8x32xf32>
      %cst_180 = arith.constant 1.000000e+00 : f32
      %508 = vector.broadcast %cst_180 : f32 to vector<8x32xf32>
      %509 = arith.addf %508, %507 : vector<8x32xf32>
      %510 = arith.divf %508, %509 : vector<8x32xf32>
      %511 = vector.extract_strided_slice %498 {offsets = [0, 64], sizes = [8, 32], strides = [1, 1]} : vector<8x128xf32> to vector<8x32xf32>
      %512 = math.tanh %511 : vector<8x32xf32>
      %513 = vector.extract_strided_slice %498 {offsets = [0, 96], sizes = [8, 32], strides = [1, 1]} : vector<8x128xf32> to vector<8x32xf32>
      %514 = arith.negf %513 : vector<8x32xf32>
      %515 = math.exp %514 : vector<8x32xf32>
      %cst_181 = arith.constant 1.000000e+00 : f32
      %516 = vector.broadcast %cst_181 : f32 to vector<8x32xf32>
      %517 = arith.addf %516, %515 : vector<8x32xf32>
      %518 = arith.divf %516, %517 : vector<8x32xf32>
      %519 = arith.mulf %510, %328 : vector<8x32xf32>
      %520 = arith.mulf %504, %512 : vector<8x32xf32>
      %521 = arith.addf %519, %520 : vector<8x32xf32>
      %522 = math.tanh %521 : vector<8x32xf32>
      %523 = arith.mulf %518, %522 : vector<8x32xf32>
      %524 = arith.truncf %523 : vector<8x32xf32> to vector<8x32xbf16>
      %c1_182 = arith.constant 1 : index
      %c0_183 = arith.constant 0 : index
      %c0_184 = arith.constant 0 : index
      %525 = vector.load %arg7[%c1_182, %c0_183, %c0_184] : memref<3x32x16xbf16, #tpu.memory_space<vmem>>, vector<1x32x16xbf16>
      %526 = vector.shape_cast %525 : vector<1x32x16xbf16> to vector<32x16xbf16>
      %cst_185 = arith.constant dense<0.000000e+00> : vector<8x16xf32>
      %527 = tpu.matmul %524, %526, %cst_185 {dimension_numbers = #tpu.dot_dimension_numbers<[1], [0], [0], [1], [0, 0, 1, 1], [], []>} : vector<8x32xbf16>, vector<32x16xbf16>, vector<8x16xf32> -> vector<8x16xf32>
      %c1_186 = arith.constant 1 : index
      %c0_187 = arith.constant 0 : index
      %c0_188 = arith.constant 0 : index
      %528 = vector.load %arg8[%c1_186, %c0_187, %c0_188] : memref<3x1x16xf32, #tpu.memory_space<vmem>>, vector<1x1x16xf32>
      %529 = vector.shape_cast %528 : vector<1x1x16xf32> to vector<1x16xf32>
      %530 = vector.broadcast %529 : vector<1x16xf32> to vector<8x16xf32>
      %531 = arith.addf %527, %530 : vector<8x16xf32>
      %cst_189 = arith.constant 0.000000e+00 : f32
      %532 = vector.broadcast %cst_189 : f32 to vector<8x16xf32>
      %533 = arith.maximumf %531, %532 : vector<8x16xf32>
      %534 = arith.truncf %533 : vector<8x16xf32> to vector<8x16xbf16>
      %c1_190 = arith.constant 1 : index
      %c0_191 = arith.constant 0 : index
      %c0_192 = arith.constant 0 : index
      %535 = vector.load %arg9[%c1_190, %c0_191, %c0_192] : memref<3x16x137xbf16, #tpu.memory_space<vmem>>, vector<1x16x137xbf16>
      %536 = vector.shape_cast %535 : vector<1x16x137xbf16> to vector<16x137xbf16>
      %cst_193 = arith.constant dense<0.000000e+00> : vector<8x137xf32>
      %537 = tpu.matmul %534, %536, %cst_193 {dimension_numbers = #tpu.dot_dimension_numbers<[1], [0], [0], [1], [0, 0, 1, 1], [], []>} : vector<8x16xbf16>, vector<16x137xbf16>, vector<8x137xf32> -> vector<8x137xf32>
      %538 = vector.extract_strided_slice %537 {offsets = [0, 0], sizes = [8, 128], strides = [1, 1]} : vector<8x137xf32> to vector<8x128xf32>
      %539 = vector.extract_strided_slice %537 {offsets = [0, 128], sizes = [8, 9], strides = [1, 1]} : vector<8x137xf32> to vector<8x9xf32>
      %c0_194 = arith.constant 0 : index
      %c0_195 = arith.constant 0 : index
      %540 = vector.load %arg6[%c0_194, %c0_195] : memref<1x128xf32, #tpu.memory_space<vmem>>, vector<1x128xf32>
      %541 = vector.extract_strided_slice %444 {offsets = [0, 256], sizes = [8, 128], strides = [1, 1]} : vector<8x384xf32> to vector<8x128xf32>
      %542 = vector.broadcast %540 : vector<1x128xf32> to vector<8x128xf32>
      %543 = arith.addf %542, %541 : vector<8x128xf32>
      %544 = vector.extract_strided_slice %410 {offsets = [0, 256], sizes = [8, 128], strides = [1, 1]} : vector<8x384xf32> to vector<8x128xf32>
      %545 = arith.addf %543, %544 : vector<8x128xf32>
      %546 = arith.addf %545, %538 : vector<8x128xf32>
      %547 = vector.extract_strided_slice %546 {offsets = [0, 0], sizes = [8, 32], strides = [1, 1]} : vector<8x128xf32> to vector<8x32xf32>
      %548 = arith.negf %547 : vector<8x32xf32>
      %549 = math.exp %548 : vector<8x32xf32>
      %cst_196 = arith.constant 1.000000e+00 : f32
      %550 = vector.broadcast %cst_196 : f32 to vector<8x32xf32>
      %551 = arith.addf %550, %549 : vector<8x32xf32>
      %552 = arith.divf %550, %551 : vector<8x32xf32>
      %553 = vector.extract_strided_slice %546 {offsets = [0, 32], sizes = [8, 32], strides = [1, 1]} : vector<8x128xf32> to vector<8x32xf32>
      %554 = arith.negf %553 : vector<8x32xf32>
      %555 = math.exp %554 : vector<8x32xf32>
      %cst_197 = arith.constant 1.000000e+00 : f32
      %556 = vector.broadcast %cst_197 : f32 to vector<8x32xf32>
      %557 = arith.addf %556, %555 : vector<8x32xf32>
      %558 = arith.divf %556, %557 : vector<8x32xf32>
      %559 = vector.extract_strided_slice %546 {offsets = [0, 64], sizes = [8, 32], strides = [1, 1]} : vector<8x128xf32> to vector<8x32xf32>
      %560 = math.tanh %559 : vector<8x32xf32>
      %561 = vector.extract_strided_slice %546 {offsets = [0, 96], sizes = [8, 32], strides = [1, 1]} : vector<8x128xf32> to vector<8x32xf32>
      %562 = arith.negf %561 : vector<8x32xf32>
      %563 = math.exp %562 : vector<8x32xf32>
      %cst_198 = arith.constant 1.000000e+00 : f32
      %564 = vector.broadcast %cst_198 : f32 to vector<8x32xf32>
      %565 = arith.addf %564, %563 : vector<8x32xf32>
      %566 = arith.divf %564, %565 : vector<8x32xf32>
      %567 = arith.mulf %558, %376 : vector<8x32xf32>
      %568 = arith.mulf %552, %560 : vector<8x32xf32>
      %569 = arith.addf %567, %568 : vector<8x32xf32>
      %570 = math.tanh %569 : vector<8x32xf32>
      %571 = arith.mulf %566, %570 : vector<8x32xf32>
      %572 = arith.truncf %571 : vector<8x32xf32> to vector<8x32xbf16>
      %c2_199 = arith.constant 2 : index
      %c0_200 = arith.constant 0 : index
      %c0_201 = arith.constant 0 : index
      %573 = vector.load %arg7[%c2_199, %c0_200, %c0_201] : memref<3x32x16xbf16, #tpu.memory_space<vmem>>, vector<1x32x16xbf16>
      %574 = vector.shape_cast %573 : vector<1x32x16xbf16> to vector<32x16xbf16>
      %cst_202 = arith.constant dense<0.000000e+00> : vector<8x16xf32>
      %575 = tpu.matmul %572, %574, %cst_202 {dimension_numbers = #tpu.dot_dimension_numbers<[1], [0], [0], [1], [0, 0, 1, 1], [], []>} : vector<8x32xbf16>, vector<32x16xbf16>, vector<8x16xf32> -> vector<8x16xf32>
      %c2_203 = arith.constant 2 : index
      %c0_204 = arith.constant 0 : index
      %c0_205 = arith.constant 0 : index
      %576 = vector.load %arg8[%c2_203, %c0_204, %c0_205] : memref<3x1x16xf32, #tpu.memory_space<vmem>>, vector<1x1x16xf32>
      %577 = vector.shape_cast %576 : vector<1x1x16xf32> to vector<1x16xf32>
      %578 = vector.broadcast %577 : vector<1x16xf32> to vector<8x16xf32>
      %579 = arith.addf %575, %578 : vector<8x16xf32>
      %cst_206 = arith.constant 0.000000e+00 : f32
      %580 = vector.broadcast %cst_206 : f32 to vector<8x16xf32>
      %581 = arith.maximumf %579, %580 : vector<8x16xf32>
      %582 = arith.truncf %581 : vector<8x16xf32> to vector<8x16xbf16>
      %c2_207 = arith.constant 2 : index
      %c0_208 = arith.constant 0 : index
      %c0_209 = arith.constant 0 : index
      %583 = vector.load %arg9[%c2_207, %c0_208, %c0_209] : memref<3x16x137xbf16, #tpu.memory_space<vmem>>, vector<1x16x137xbf16>
      %584 = vector.shape_cast %583 : vector<1x16x137xbf16> to vector<16x137xbf16>
      %cst_210 = arith.constant dense<0.000000e+00> : vector<8x137xf32>
      %585 = tpu.matmul %582, %584, %cst_210 {dimension_numbers = #tpu.dot_dimension_numbers<[1], [0], [0], [1], [0, 0, 1, 1], [], []>} : vector<8x16xbf16>, vector<16x137xbf16>, vector<8x137xf32> -> vector<8x137xf32>
      %586 = vector.extract_strided_slice %585 {offsets = [0, 128], sizes = [8, 9], strides = [1, 1]} : vector<8x137xf32> to vector<8x9xf32>
      %587 = arith.addf %491, %539 : vector<8x9xf32>
      %588 = arith.addf %587, %586 : vector<8x9xf32>
      %c0_211 = arith.constant 0 : index
      %c0_212 = arith.constant 0 : index
      %589 = vector.load %arg10[%c0_211, %c0_212] : memref<1x9xf32, #tpu.memory_space<vmem>>, vector<1x9xf32>
      %590 = vector.broadcast %589 : vector<1x9xf32> to vector<8x9xf32>
      %591 = arith.addf %588, %590 : vector<8x9xf32>
      %592 = arith.index_cast %404 : i32 to index
      %c0_213 = arith.constant 0 : index
      %c0_214 = arith.constant 0 : index
      %593 = vector.load %arg11[%592, %c0_213, %c0_214] : memref<8x8x9xf32, #tpu.memory_space<vmem>>, vector<1x8x9xf32>
      %594 = vector.shape_cast %593 : vector<1x8x9xf32> to vector<8x9xf32>
      %595 = vector.shape_cast %591 : vector<8x9xf32> to vector<1x8x9xf32>
      tpu.vector_store %arg11[%592, %c0_213, %c0_214], %595 {strides = array<i32>} : memref<8x8x9xf32, #tpu.memory_space<vmem>>, vector<1x8x9xf32>,
      %596 = tpu.concatenate %475, %523, %571 in 1 : vector<8x32xf32>, vector<8x32xf32>, vector<8x32xf32> -> vector<8x96xf32>
      %c3_i32 = arith.constant 3 : i32
      %597 = arith.addi %17, %c3_i32 : i32
      %598 = arith.index_cast %597 : i32 to index
      %c0_215 = arith.constant 0 : index
      %c0_216 = arith.constant 0 : index
      %599 = vector.load %arg2[%598, %c0_215, %c0_216] : memref<8x8x512xbf16, #tpu.memory_space<vmem>>, vector<1x8x512xbf16>
      %600 = vector.shape_cast %599 : vector<1x8x512xbf16> to vector<8x512xbf16>
      %601 = arith.truncf %596 : vector<8x96xf32> to vector<8x96xbf16>
      %c0_217 = arith.constant 0 : index
      %c0_218 = arith.constant 0 : index
      %602 = vector.load %arg5[%c0_217, %c0_218] : memref<96x384xbf16, #tpu.memory_space<vmem>>, vector<96x384xbf16>
      %cst_219 = arith.constant dense<0.000000e+00> : vector<8x384xf32>
      %603 = tpu.matmul %601, %602, %cst_219 {dimension_numbers = #tpu.dot_dimension_numbers<[1], [0], [0], [1], [0, 0, 1, 1], [], []>} : vector<8x96xbf16>, vector<96x384xbf16>, vector<8x384xf32> -> vector<8x384xf32>
      %604 = vector.extract_strided_slice %600 {offsets = [0, 0], sizes = [8, 256], strides = [1, 1]} : vector<8x512xbf16> to vector<8x256xbf16>
      %605 = arith.truncf %441 : vector<8x64xf32> to vector<8x64xbf16>
      %c0_220 = arith.constant 0 : index
      %c0_221 = arith.constant 0 : index
      %606 = vector.load %arg3[%c0_220, %c0_221] : memref<64x256xbf16, #tpu.memory_space<vmem>>, vector<64x256xbf16>
      %cst_222 = arith.constant dense<0.000000e+00> : vector<8x256xf32>
      %607 = tpu.matmul %605, %606, %cst_222 {dimension_numbers = #tpu.dot_dimension_numbers<[1], [0], [0], [1], [0, 0, 1, 1], [], []>} : vector<8x64xbf16>, vector<64x256xbf16>, vector<8x256xf32> -> vector<8x256xf32>
      %608 = arith.extf %604 : vector<8x256xbf16> to vector<8x256xf32>
      %609 = arith.addf %608, %607 : vector<8x256xf32>
      %610 = vector.extract_strided_slice %609 {offsets = [0, 0], sizes = [8, 64], strides = [1, 1]} : vector<8x256xf32> to vector<8x64xf32>
      %611 = arith.negf %610 : vector<8x64xf32>
      %612 = math.exp %611 : vector<8x64xf32>
      %cst_223 = arith.constant 1.000000e+00 : f32
      %613 = vector.broadcast %cst_223 : f32 to vector<8x64xf32>
      %614 = arith.addf %613, %612 : vector<8x64xf32>
      %615 = arith.divf %613, %614 : vector<8x64xf32>
      %616 = vector.extract_strided_slice %609 {offsets = [0, 64], sizes = [8, 64], strides = [1, 1]} : vector<8x256xf32> to vector<8x64xf32>
      %617 = arith.negf %616 : vector<8x64xf32>
      %618 = math.exp %617 : vector<8x64xf32>
      %cst_224 = arith.constant 1.000000e+00 : f32
      %619 = vector.broadcast %cst_224 : f32 to vector<8x64xf32>
      %620 = arith.addf %619, %618 : vector<8x64xf32>
      %621 = arith.divf %619, %620 : vector<8x64xf32>
      %622 = vector.extract_strided_slice %609 {offsets = [0, 128], sizes = [8, 64], strides = [1, 1]} : vector<8x256xf32> to vector<8x64xf32>
      %623 = math.tanh %622 : vector<8x64xf32>
      %624 = vector.extract_strided_slice %609 {offsets = [0, 192], sizes = [8, 64], strides = [1, 1]} : vector<8x256xf32> to vector<8x64xf32>
      %625 = arith.negf %624 : vector<8x64xf32>
      %626 = math.exp %625 : vector<8x64xf32>
      %cst_225 = arith.constant 1.000000e+00 : f32
      %627 = vector.broadcast %cst_225 : f32 to vector<8x64xf32>
      %628 = arith.addf %627, %626 : vector<8x64xf32>
      %629 = arith.divf %627, %628 : vector<8x64xf32>
      %630 = arith.mulf %621, %439 : vector<8x64xf32>
      %631 = arith.mulf %615, %623 : vector<8x64xf32>
      %632 = arith.addf %630, %631 : vector<8x64xf32>
      %633 = math.tanh %632 : vector<8x64xf32>
      %634 = arith.mulf %629, %633 : vector<8x64xf32>
      %635 = arith.truncf %634 : vector<8x64xf32> to vector<8x64xbf16>
      %c0_226 = arith.constant 0 : index
      %c0_227 = arith.constant 0 : index
      %636 = vector.load %arg4[%c0_226, %c0_227] : memref<64x384xbf16, #tpu.memory_space<vmem>>, vector<64x384xbf16>
      %cst_228 = arith.constant dense<0.000000e+00> : vector<8x384xf32>
      %637 = tpu.matmul %635, %636, %cst_228 {dimension_numbers = #tpu.dot_dimension_numbers<[1], [0], [0], [1], [0, 0, 1, 1], [], []>} : vector<8x64xbf16>, vector<64x384xbf16>, vector<8x384xf32> -> vector<8x384xf32>
      %638 = vector.extract_strided_slice %600 {offsets = [0, 256], sizes = [8, 128], strides = [1, 1]} : vector<8x512xbf16> to vector<8x128xbf16>
      %639 = vector.extract_strided_slice %637 {offsets = [0, 0], sizes = [8, 128], strides = [1, 1]} : vector<8x384xf32> to vector<8x128xf32>
      %640 = arith.extf %638 : vector<8x128xbf16> to vector<8x128xf32>
      %641 = arith.addf %640, %639 : vector<8x128xf32>
      %642 = vector.extract_strided_slice %603 {offsets = [0, 0], sizes = [8, 128], strides = [1, 1]} : vector<8x384xf32> to vector<8x128xf32>
      %643 = arith.addf %641, %642 : vector<8x128xf32>
      %644 = vector.extract_strided_slice %643 {offsets = [0, 0], sizes = [8, 32], strides = [1, 1]} : vector<8x128xf32> to vector<8x32xf32>
      %645 = arith.negf %644 : vector<8x32xf32>
      %646 = math.exp %645 : vector<8x32xf32>
      %cst_229 = arith.constant 1.000000e+00 : f32
      %647 = vector.broadcast %cst_229 : f32 to vector<8x32xf32>
      %648 = arith.addf %647, %646 : vector<8x32xf32>
      %649 = arith.divf %647, %648 : vector<8x32xf32>
      %650 = vector.extract_strided_slice %643 {offsets = [0, 32], sizes = [8, 32], strides = [1, 1]} : vector<8x128xf32> to vector<8x32xf32>
      %651 = arith.negf %650 : vector<8x32xf32>
      %652 = math.exp %651 : vector<8x32xf32>
      %cst_230 = arith.constant 1.000000e+00 : f32
      %653 = vector.broadcast %cst_230 : f32 to vector<8x32xf32>
      %654 = arith.addf %653, %652 : vector<8x32xf32>
      %655 = arith.divf %653, %654 : vector<8x32xf32>
      %656 = vector.extract_strided_slice %643 {offsets = [0, 64], sizes = [8, 32], strides = [1, 1]} : vector<8x128xf32> to vector<8x32xf32>
      %657 = math.tanh %656 : vector<8x32xf32>
      %658 = vector.extract_strided_slice %643 {offsets = [0, 96], sizes = [8, 32], strides = [1, 1]} : vector<8x128xf32> to vector<8x32xf32>
      %659 = arith.negf %658 : vector<8x32xf32>
      %660 = math.exp %659 : vector<8x32xf32>
      %cst_231 = arith.constant 1.000000e+00 : f32
      %661 = vector.broadcast %cst_231 : f32 to vector<8x32xf32>
      %662 = arith.addf %661, %660 : vector<8x32xf32>
      %663 = arith.divf %661, %662 : vector<8x32xf32>
      %664 = arith.mulf %655, %473 : vector<8x32xf32>
      %665 = arith.mulf %649, %657 : vector<8x32xf32>
      %666 = arith.addf %664, %665 : vector<8x32xf32>
      %667 = math.tanh %666 : vector<8x32xf32>
      %668 = arith.mulf %663, %667 : vector<8x32xf32>
      %669 = arith.truncf %668 : vector<8x32xf32> to vector<8x32xbf16>
      %c0_232 = arith.constant 0 : index
      %c0_233 = arith.constant 0 : index
      %c0_234 = arith.constant 0 : index
      %670 = vector.load %arg7[%c0_232, %c0_233, %c0_234] : memref<3x32x16xbf16, #tpu.memory_space<vmem>>, vector<1x32x16xbf16>
      %671 = vector.shape_cast %670 : vector<1x32x16xbf16> to vector<32x16xbf16>
      %cst_235 = arith.constant dense<0.000000e+00> : vector<8x16xf32>
      %672 = tpu.matmul %669, %671, %cst_235 {dimension_numbers = #tpu.dot_dimension_numbers<[1], [0], [0], [1], [0, 0, 1, 1], [], []>} : vector<8x32xbf16>, vector<32x16xbf16>, vector<8x16xf32> -> vector<8x16xf32>
      %c0_236 = arith.constant 0 : index
      %c0_237 = arith.constant 0 : index
      %c0_238 = arith.constant 0 : index
      %673 = vector.load %arg8[%c0_236, %c0_237, %c0_238] : memref<3x1x16xf32, #tpu.memory_space<vmem>>, vector<1x1x16xf32>
      %674 = vector.shape_cast %673 : vector<1x1x16xf32> to vector<1x16xf32>
      %675 = vector.broadcast %674 : vector<1x16xf32> to vector<8x16xf32>
      %676 = arith.addf %672, %675 : vector<8x16xf32>
      %cst_239 = arith.constant 0.000000e+00 : f32
      %677 = vector.broadcast %cst_239 : f32 to vector<8x16xf32>
      %678 = arith.maximumf %676, %677 : vector<8x16xf32>
      %679 = arith.truncf %678 : vector<8x16xf32> to vector<8x16xbf16>
      %c0_240 = arith.constant 0 : index
      %c0_241 = arith.constant 0 : index
      %c0_242 = arith.constant 0 : index
      %680 = vector.load %arg9[%c0_240, %c0_241, %c0_242] : memref<3x16x137xbf16, #tpu.memory_space<vmem>>, vector<1x16x137xbf16>
      %681 = vector.shape_cast %680 : vector<1x16x137xbf16> to vector<16x137xbf16>
      %cst_243 = arith.constant dense<0.000000e+00> : vector<8x137xf32>
      %682 = tpu.matmul %679, %681, %cst_243 {dimension_numbers = #tpu.dot_dimension_numbers<[1], [0], [0], [1], [0, 0, 1, 1], [], []>} : vector<8x16xbf16>, vector<16x137xbf16>, vector<8x137xf32> -> vector<8x137xf32>
      %683 = vector.extract_strided_slice %682 {offsets = [0, 0], sizes = [8, 128], strides = [1, 1]} : vector<8x137xf32> to vector<8x128xf32>
      %684 = vector.extract_strided_slice %682 {offsets = [0, 128], sizes = [8, 9], strides = [1, 1]} : vector<8x137xf32> to vector<8x9xf32>
      %685 = vector.extract_strided_slice %600 {offsets = [0, 384], sizes = [8, 128], strides = [1, 1]} : vector<8x512xbf16> to vector<8x128xbf16>
      %686 = vector.extract_strided_slice %637 {offsets = [0, 128], sizes = [8, 128], strides = [1, 1]} : vector<8x384xf32> to vector<8x128xf32>
      %687 = arith.extf %685 : vector<8x128xbf16> to vector<8x128xf32>
      %688 = arith.addf %687, %686 : vector<8x128xf32>
      %689 = vector.extract_strided_slice %603 {offsets = [0, 128], sizes = [8, 128], strides = [1, 1]} : vector<8x384xf32> to vector<8x128xf32>
      %690 = arith.addf %688, %689 : vector<8x128xf32>
      %691 = arith.addf %690, %683 : vector<8x128xf32>
      %692 = vector.extract_strided_slice %691 {offsets = [0, 0], sizes = [8, 32], strides = [1, 1]} : vector<8x128xf32> to vector<8x32xf32>
      %693 = arith.negf %692 : vector<8x32xf32>
      %694 = math.exp %693 : vector<8x32xf32>
      %cst_244 = arith.constant 1.000000e+00 : f32
      %695 = vector.broadcast %cst_244 : f32 to vector<8x32xf32>
      %696 = arith.addf %695, %694 : vector<8x32xf32>
      %697 = arith.divf %695, %696 : vector<8x32xf32>
      %698 = vector.extract_strided_slice %691 {offsets = [0, 32], sizes = [8, 32], strides = [1, 1]} : vector<8x128xf32> to vector<8x32xf32>
      %699 = arith.negf %698 : vector<8x32xf32>
      %700 = math.exp %699 : vector<8x32xf32>
      %cst_245 = arith.constant 1.000000e+00 : f32
      %701 = vector.broadcast %cst_245 : f32 to vector<8x32xf32>
      %702 = arith.addf %701, %700 : vector<8x32xf32>
      %703 = arith.divf %701, %702 : vector<8x32xf32>
      %704 = vector.extract_strided_slice %691 {offsets = [0, 64], sizes = [8, 32], strides = [1, 1]} : vector<8x128xf32> to vector<8x32xf32>
      %705 = math.tanh %704 : vector<8x32xf32>
      %706 = vector.extract_strided_slice %691 {offsets = [0, 96], sizes = [8, 32], strides = [1, 1]} : vector<8x128xf32> to vector<8x32xf32>
      %707 = arith.negf %706 : vector<8x32xf32>
      %708 = math.exp %707 : vector<8x32xf32>
      %cst_246 = arith.constant 1.000000e+00 : f32
      %709 = vector.broadcast %cst_246 : f32 to vector<8x32xf32>
      %710 = arith.addf %709, %708 : vector<8x32xf32>
      %711 = arith.divf %709, %710 : vector<8x32xf32>
      %712 = arith.mulf %703, %521 : vector<8x32xf32>
      %713 = arith.mulf %697, %705 : vector<8x32xf32>
      %714 = arith.addf %712, %713 : vector<8x32xf32>
      %715 = math.tanh %714 : vector<8x32xf32>
      %716 = arith.mulf %711, %715 : vector<8x32xf32>
      %717 = arith.truncf %716 : vector<8x32xf32> to vector<8x32xbf16>
      %c1_247 = arith.constant 1 : index
      %c0_248 = arith.constant 0 : index
      %c0_249 = arith.constant 0 : index
      %718 = vector.load %arg7[%c1_247, %c0_248, %c0_249] : memref<3x32x16xbf16, #tpu.memory_space<vmem>>, vector<1x32x16xbf16>
      %719 = vector.shape_cast %718 : vector<1x32x16xbf16> to vector<32x16xbf16>
      %cst_250 = arith.constant dense<0.000000e+00> : vector<8x16xf32>
      %720 = tpu.matmul %717, %719, %cst_250 {dimension_numbers = #tpu.dot_dimension_numbers<[1], [0], [0], [1], [0, 0, 1, 1], [], []>} : vector<8x32xbf16>, vector<32x16xbf16>, vector<8x16xf32> -> vector<8x16xf32>
      %c1_251 = arith.constant 1 : index
      %c0_252 = arith.constant 0 : index
      %c0_253 = arith.constant 0 : index
      %721 = vector.load %arg8[%c1_251, %c0_252, %c0_253] : memref<3x1x16xf32, #tpu.memory_space<vmem>>, vector<1x1x16xf32>
      %722 = vector.shape_cast %721 : vector<1x1x16xf32> to vector<1x16xf32>
      %723 = vector.broadcast %722 : vector<1x16xf32> to vector<8x16xf32>
      %724 = arith.addf %720, %723 : vector<8x16xf32>
      %cst_254 = arith.constant 0.000000e+00 : f32
      %725 = vector.broadcast %cst_254 : f32 to vector<8x16xf32>
      %726 = arith.maximumf %724, %725 : vector<8x16xf32>
      %727 = arith.truncf %726 : vector<8x16xf32> to vector<8x16xbf16>
      %c1_255 = arith.constant 1 : index
      %c0_256 = arith.constant 0 : index
      %c0_257 = arith.constant 0 : index
      %728 = vector.load %arg9[%c1_255, %c0_256, %c0_257] : memref<3x16x137xbf16, #tpu.memory_space<vmem>>, vector<1x16x137xbf16>
      %729 = vector.shape_cast %728 : vector<1x16x137xbf16> to vector<16x137xbf16>
      %cst_258 = arith.constant dense<0.000000e+00> : vector<8x137xf32>
      %730 = tpu.matmul %727, %729, %cst_258 {dimension_numbers = #tpu.dot_dimension_numbers<[1], [0], [0], [1], [0, 0, 1, 1], [], []>} : vector<8x16xbf16>, vector<16x137xbf16>, vector<8x137xf32> -> vector<8x137xf32>
      %731 = vector.extract_strided_slice %730 {offsets = [0, 0], sizes = [8, 128], strides = [1, 1]} : vector<8x137xf32> to vector<8x128xf32>
      %732 = vector.extract_strided_slice %730 {offsets = [0, 128], sizes = [8, 9], strides = [1, 1]} : vector<8x137xf32> to vector<8x9xf32>
      %c0_259 = arith.constant 0 : index
      %c0_260 = arith.constant 0 : index
      %733 = vector.load %arg6[%c0_259, %c0_260] : memref<1x128xf32, #tpu.memory_space<vmem>>, vector<1x128xf32>
      %734 = vector.extract_strided_slice %637 {offsets = [0, 256], sizes = [8, 128], strides = [1, 1]} : vector<8x384xf32> to vector<8x128xf32>
      %735 = vector.broadcast %733 : vector<1x128xf32> to vector<8x128xf32>
      %736 = arith.addf %735, %734 : vector<8x128xf32>
      %737 = vector.extract_strided_slice %603 {offsets = [0, 256], sizes = [8, 128], strides = [1, 1]} : vector<8x384xf32> to vector<8x128xf32>
      %738 = arith.addf %736, %737 : vector<8x128xf32>
      %739 = arith.addf %738, %731 : vector<8x128xf32>
      %740 = vector.extract_strided_slice %739 {offsets = [0, 0], sizes = [8, 32], strides = [1, 1]} : vector<8x128xf32> to vector<8x32xf32>
      %741 = arith.negf %740 : vector<8x32xf32>
      %742 = math.exp %741 : vector<8x32xf32>
      %cst_261 = arith.constant 1.000000e+00 : f32
      %743 = vector.broadcast %cst_261 : f32 to vector<8x32xf32>
      %744 = arith.addf %743, %742 : vector<8x32xf32>
      %745 = arith.divf %743, %744 : vector<8x32xf32>
      %746 = vector.extract_strided_slice %739 {offsets = [0, 32], sizes = [8, 32], strides = [1, 1]} : vector<8x128xf32> to vector<8x32xf32>
      %747 = arith.negf %746 : vector<8x32xf32>
      %748 = math.exp %747 : vector<8x32xf32>
      %cst_262 = arith.constant 1.000000e+00 : f32
      %749 = vector.broadcast %cst_262 : f32 to vector<8x32xf32>
      %750 = arith.addf %749, %748 : vector<8x32xf32>
      %751 = arith.divf %749, %750 : vector<8x32xf32>
      %752 = vector.extract_strided_slice %739 {offsets = [0, 64], sizes = [8, 32], strides = [1, 1]} : vector<8x128xf32> to vector<8x32xf32>
      %753 = math.tanh %752 : vector<8x32xf32>
      %754 = vector.extract_strided_slice %739 {offsets = [0, 96], sizes = [8, 32], strides = [1, 1]} : vector<8x128xf32> to vector<8x32xf32>
      %755 = arith.negf %754 : vector<8x32xf32>
      %756 = math.exp %755 : vector<8x32xf32>
      %cst_263 = arith.constant 1.000000e+00 : f32
      %757 = vector.broadcast %cst_263 : f32 to vector<8x32xf32>
      %758 = arith.addf %757, %756 : vector<8x32xf32>
      %759 = arith.divf %757, %758 : vector<8x32xf32>
      %760 = arith.mulf %751, %569 : vector<8x32xf32>
      %761 = arith.mulf %745, %753 : vector<8x32xf32>
      %762 = arith.addf %760, %761 : vector<8x32xf32>
      %763 = math.tanh %762 : vector<8x32xf32>
      %764 = arith.mulf %759, %763 : vector<8x32xf32>
      %765 = arith.truncf %764 : vector<8x32xf32> to vector<8x32xbf16>
      %c2_264 = arith.constant 2 : index
      %c0_265 = arith.constant 0 : index
      %c0_266 = arith.constant 0 : index
      %766 = vector.load %arg7[%c2_264, %c0_265, %c0_266] : memref<3x32x16xbf16, #tpu.memory_space<vmem>>, vector<1x32x16xbf16>
      %767 = vector.shape_cast %766 : vector<1x32x16xbf16> to vector<32x16xbf16>
      %cst_267 = arith.constant dense<0.000000e+00> : vector<8x16xf32>
      %768 = tpu.matmul %765, %767, %cst_267 {dimension_numbers = #tpu.dot_dimension_numbers<[1], [0], [0], [1], [0, 0, 1, 1], [], []>} : vector<8x32xbf16>, vector<32x16xbf16>, vector<8x16xf32> -> vector<8x16xf32>
      %c2_268 = arith.constant 2 : index
      %c0_269 = arith.constant 0 : index
      %c0_270 = arith.constant 0 : index
      %769 = vector.load %arg8[%c2_268, %c0_269, %c0_270] : memref<3x1x16xf32, #tpu.memory_space<vmem>>, vector<1x1x16xf32>
      %770 = vector.shape_cast %769 : vector<1x1x16xf32> to vector<1x16xf32>
      %771 = vector.broadcast %770 : vector<1x16xf32> to vector<8x16xf32>
      %772 = arith.addf %768, %771 : vector<8x16xf32>
      %cst_271 = arith.constant 0.000000e+00 : f32
      %773 = vector.broadcast %cst_271 : f32 to vector<8x16xf32>
      %774 = arith.maximumf %772, %773 : vector<8x16xf32>
      %775 = arith.truncf %774 : vector<8x16xf32> to vector<8x16xbf16>
      %c2_272 = arith.constant 2 : index
      %c0_273 = arith.constant 0 : index
      %c0_274 = arith.constant 0 : index
      %776 = vector.load %arg9[%c2_272, %c0_273, %c0_274] : memref<3x16x137xbf16, #tpu.memory_space<vmem>>, vector<1x16x137xbf16>
      %777 = vector.shape_cast %776 : vector<1x16x137xbf16> to vector<16x137xbf16>
      %cst_275 = arith.constant dense<0.000000e+00> : vector<8x137xf32>
      %778 = tpu.matmul %775, %777, %cst_275 {dimension_numbers = #tpu.dot_dimension_numbers<[1], [0], [0], [1], [0, 0, 1, 1], [], []>} : vector<8x16xbf16>, vector<16x137xbf16>, vector<8x137xf32> -> vector<8x137xf32>
      %779 = vector.extract_strided_slice %778 {offsets = [0, 128], sizes = [8, 9], strides = [1, 1]} : vector<8x137xf32> to vector<8x9xf32>
      %780 = arith.addf %684, %732 : vector<8x9xf32>
      %781 = arith.addf %780, %779 : vector<8x9xf32>
      %c0_276 = arith.constant 0 : index
      %c0_277 = arith.constant 0 : index
      %782 = vector.load %arg10[%c0_276, %c0_277] : memref<1x9xf32, #tpu.memory_space<vmem>>, vector<1x9xf32>
      %783 = vector.broadcast %782 : vector<1x9xf32> to vector<8x9xf32>
      %784 = arith.addf %781, %783 : vector<8x9xf32>
      %785 = arith.index_cast %597 : i32 to index
      %c0_278 = arith.constant 0 : index
      %c0_279 = arith.constant 0 : index
      %786 = vector.load %arg11[%785, %c0_278, %c0_279] : memref<8x8x9xf32, #tpu.memory_space<vmem>>, vector<1x8x9xf32>
      %787 = vector.shape_cast %786 : vector<1x8x9xf32> to vector<8x9xf32>
      %788 = vector.shape_cast %784 : vector<8x9xf32> to vector<1x8x9xf32>
      tpu.vector_store %arg11[%785, %c0_278, %c0_279], %788 {strides = array<i32>} : memref<8x8x9xf32, #tpu.memory_space<vmem>>, vector<1x8x9xf32>,
      %789 = tpu.concatenate %668, %716, %764 in 1 : vector<8x32xf32>, vector<8x32xf32>, vector<8x32xf32> -> vector<8x96xf32>
      scf.yield %634, %632, %789, %666, %714, %762 : vector<8x64xf32>, vector<8x64xf32>, vector<8x96xf32>, vector<8x32xf32>, vector<8x32xf32>, vector<8x32xf32>
    }
    %c2_i32_11 = arith.constant 2 : i32
    %c0_12 = arith.constant 0 : index
    %c0_13 = arith.constant 0 : index
    %11 = vector.load %arg12[%c0_12, %c0_13] : memref<8x64xf32, #tpu.memory_space<vmem>>, vector<8x64xf32>
    tpu.vector_store %arg12[%c0_12, %c0_13], %10#0 {strides = array<i32>} : memref<8x64xf32, #tpu.memory_space<vmem>>, vector<8x64xf32>,
    %c0_14 = arith.constant 0 : index
    %c0_15 = arith.constant 0 : index
    %12 = vector.load %arg13[%c0_14, %c0_15] : memref<8x64xf32, #tpu.memory_space<vmem>>, vector<8x64xf32>
    tpu.vector_store %arg13[%c0_14, %c0_15], %10#1 {strides = array<i32>} : memref<8x64xf32, #tpu.memory_space<vmem>>, vector<8x64xf32>,
    %c0_16 = arith.constant 0 : index
    %c0_17 = arith.constant 0 : index
    %13 = vector.load %arg14[%c0_16, %c0_17] : memref<8x96xf32, #tpu.memory_space<vmem>>, vector<8x96xf32>
    tpu.vector_store %arg14[%c0_16, %c0_17], %10#2 {strides = array<i32>} : memref<8x96xf32, #tpu.memory_space<vmem>>, vector<8x96xf32>,
    %14 = tpu.concatenate %10#3, %10#4, %10#5 in 1 : vector<8x32xf32>, vector<8x32xf32>, vector<8x32xf32> -> vector<8x96xf32>
    %c0_18 = arith.constant 0 : index
    %c0_19 = arith.constant 0 : index
    %15 = vector.load %arg15[%c0_18, %c0_19] : memref<8x96xf32, #tpu.memory_space<vmem>>, vector<8x96xf32>
    tpu.vector_store %arg15[%c0_18, %c0_19], %14 {strides = array<i32>} : memref<8x96xf32, #tpu.memory_space<vmem>>, vector<8x96xf32>,
    return
  }
  func.func @transform_0(%arg0: i32, %arg1: i32) -> (i32, i32, i32) {
    %c0_i32 = arith.constant 0 : i32
    %c0_i32_0 = arith.constant 0 : i32
    return %arg1, %arg0, %c0_i32 : i32, i32, i32
  }
  func.func @transform_1(%arg0: i32, %arg1: i32) -> (i32, i32) {
    %c0_i32 = arith.constant 0 : i32
    %c0_i32_0 = arith.constant 0 : i32
    %c0_i32_1 = arith.constant 0 : i32
    return %c0_i32, %c0_i32_0 : i32, i32
  }
  func.func @transform_2(%arg0: i32, %arg1: i32) -> (i32, i32) {
    %c0_i32 = arith.constant 0 : i32
    %c0_i32_0 = arith.constant 0 : i32
    %c0_i32_1 = arith.constant 0 : i32
    return %c0_i32, %c0_i32_0 : i32, i32
  }
  func.func @transform_3(%arg0: i32, %arg1: i32) -> (i32, i32) {
    %c0_i32 = arith.constant 0 : i32
    %c0_i32_0 = arith.constant 0 : i32
    %c0_i32_1 = arith.constant 0 : i32
    return %c0_i32, %c0_i32_0 : i32, i32
  }
  func.func @transform_4(%arg0: i32, %arg1: i32) -> (i32, i32) {
    %c0_i32 = arith.constant 0 : i32
    %c0_i32_0 = arith.constant 0 : i32
    %c0_i32_1 = arith.constant 0 : i32
    return %c0_i32, %c0_i32_0 : i32, i32
  }
  func.func @transform_5(%arg0: i32, %arg1: i32) -> (i32, i32, i32) {
    %c0_i32 = arith.constant 0 : i32
    %c0_i32_0 = arith.constant 0 : i32
    %c0_i32_1 = arith.constant 0 : i32
    %c0_i32_2 = arith.constant 0 : i32
    return %c0_i32, %c0_i32_0, %c0_i32_1 : i32, i32, i32
  }
  func.func @transform_6(%arg0: i32, %arg1: i32) -> (i32, i32, i32) {
    %c0_i32 = arith.constant 0 : i32
    %c0_i32_0 = arith.constant 0 : i32
    %c0_i32_1 = arith.constant 0 : i32
    %c0_i32_2 = arith.constant 0 : i32
    return %c0_i32, %c0_i32_0, %c0_i32_1 : i32, i32, i32
  }
  func.func @transform_7(%arg0: i32, %arg1: i32) -> (i32, i32, i32) {
    %c0_i32 = arith.constant 0 : i32
    %c0_i32_0 = arith.constant 0 : i32
    %c0_i32_1 = arith.constant 0 : i32
    %c0_i32_2 = arith.constant 0 : i32
    return %c0_i32, %c0_i32_0, %c0_i32_1 : i32, i32, i32
  }
  func.func @transform_8(%arg0: i32, %arg1: i32) -> (i32, i32) {
    %c0_i32 = arith.constant 0 : i32
    %c0_i32_0 = arith.constant 0 : i32
    %c0_i32_1 = arith.constant 0 : i32
    return %c0_i32, %c0_i32_0 : i32, i32
  }
  func.func @transform_9(%arg0: i32, %arg1: i32) -> (i32, i32, i32) {
    %c0_i32 = arith.constant 0 : i32
    %c0_i32_0 = arith.constant 0 : i32
    return %arg1, %arg0, %c0_i32 : i32, i32, i32
  }
}

</mosaic_0001>

<llo_original>
// kernel: tpu_custom_call.1
$region0: #{tpu_custom_call.1}
  #allocation0 [shape = 'u32[]', space=smem, size = 0x4, offset = 0x4, fixed_abs, tag = 'smem constant byte address 0x4 - core index']
  #allocation1 [shape = 'u32[72,128]{1,0:T(1,128)}', space=vmem, size = 0x9000, scoped, tag = 'internal scratch']
  #allocation2 [shape = 'f32[8,64]{1,0:T(8,128)}', space=vmem, size = 0x1000, scoped, tag = 'scratch operand']
  #allocation3 [shape = 'f32[8,64]{1,0:T(8,128)}', space=vmem, size = 0x1000, scoped, tag = 'scratch operand']
  #allocation4 [shape = 'f32[8,96]{1,0:T(8,128)}', space=vmem, size = 0x1000, scoped, tag = 'scratch operand']
  #allocation5 [shape = 'f32[8,96]{1,0:T(8,128)}', space=vmem, size = 0x1000, scoped, tag = 'scratch operand']
  %s0 = inlined_call_operand.hbm [shape: bf16[8,8,512], index: 0, kind: input, shape index: {}]
  %s1 = inlined_call_operand.vmem [shape: bf16[64,256], index: 1, kind: input, shape index: {}]
  %s2 = inlined_call_operand.hbm [shape: bf16[64,384], index: 2, kind: input, shape index: {}]
  %s3 = inlined_call_operand.hbm [shape: bf16[96,384], index: 3, kind: input, shape index: {}]
  %s4 = inlined_call_operand.vmem [shape: f32[1,128], index: 4, kind: input, shape index: {}]
  %s5 = inlined_call_operand.vmem [shape: bf16[3,32,16], index: 5, kind: input, shape index: {}]
  %s6 = inlined_call_operand.vmem [shape: f32[3,1,16], index: 6, kind: input, shape index: {}]
  %s7 = inlined_call_operand.hbm [shape: bf16[3,16,137], index: 7, kind: input, shape index: {}]
  %s8 = inlined_call_operand.vmem [shape: f32[1,9], index: 8, kind: input, shape index: {}]
  %s9 = inlined_call_operand.hbm [shape: f32[8,8,9], index: 9, kind: output, shape index: {}]
  %s10 = sld [smem:[#allocation0]]
  $region73: #{tpu_custom_call.1} parent=0
    _
  %s12 = ssub.s32 1, %s10
  %s13 = scalar_select 0, %s12, %s10
  $region1: #{tpu_custom_call.1} parent=0
    #allocation6 [shape = 'u8[65536]{0}', space=vmem, size = 0x10000, scoped, tag = 'input window, operand 0, single buffered']
    #allocation7 [shape = 's32[1]{0}', space=sflag, size = 0x4, scoped, tag = 'scoped memory for tpu_custom_call.1']
    #allocation8 [shape = 's32[1]{0}', space=sflag, size = 0x4, scoped, tag = 'scoped memory for tpu_custom_call.1']
    #allocation9 [shape = 'u8[49152]{0}', space=vmem, size = 0xc000, scoped, tag = 'input window, operand 2, single buffered']
    #allocation10 [shape = 's32[1]{0}', space=sflag, size = 0x4, scoped, tag = 'scoped memory for tpu_custom_call.1']
    #allocation11 [shape = 'u8[73728]{0}', space=vmem, size = 0x12000, scoped, tag = 'input window, operand 3, single buffered']
    #allocation12 [shape = 'u8[24576]{0}', space=vmem, size = 0x6000, scoped, tag = 'input window, operand 7, single buffered']
    #allocation13 [shape = 's32[1]{0}', space=sflag, size = 0x4, scoped, tag = 'scoped memory for tpu_custom_call.1']
    #allocation14 [shape = 'u8[32768]{0}', space=vmem, size = 0x8000, scoped, tag = 'output window, operand 0, single buffered']
    %14 = vsyncpa [#allocation7], 0
    %15 = vsyncpa [#allocation10], 0
    %16 = vsyncpa [#allocation13], 0
    %17 = vsyncpa [#allocation8], 0
    // Predicated region
    $region2: #{tpu_custom_call.1} parent=1 // pred_check
      _
    $region3: #{tpu_custom_call.1} parent=1 // pred_check_branch
      %19 = sbr.rel (0) target = $region5
    $region4: #{tpu_custom_call.1} parent=1 // pred_region
      %21 = vsyncadd [#allocation7], 0
      %s22 = sshll.u32 %s0, 4
      %s23 = int_to_ptr.hbm [resolvable:$true] %s22
      %s24 = sshll.u32 [#allocation6], 4
      %s25 = int_to_ptr.vmem [resolvable:$true] %s24
      %30 = dma.hbm_to_vmem [thread:$0]  %s23, 2048, %s25, [#allocation7], 256, 256, 16
    $region5: #{tpu_custom_call.1} parent=1 // pred_fallthru
      _
    // Predicated region
    $region6: #{tpu_custom_call.1} parent=1 // pred_check
      _
    $region7: #{tpu_custom_call.1} parent=1 // pred_check_branch
      %32 = sbr.rel (0) target = $region9
    $region8: #{tpu_custom_call.1} parent=1 // pred_region
      _
    $region9: #{tpu_custom_call.1} parent=1 // pred_fallthru
      _
    // Predicated region
    $region10: #{tpu_custom_call.1} parent=1 // pred_check
      _
    $region11: #{tpu_custom_call.1} parent=1 // pred_check_branch
      %34 = sbr.rel (0) target = $region13
    $region12: #{tpu_custom_call.1} parent=1 // pred_region
      %36 = vsyncadd [#allocation10], 0
      %s37 = sshll.u32 %s2, 4
      %s38 = int_to_ptr.hbm [resolvable:$true] %s37
      %s39 = sshll.u32 [#allocation9], 4
      %s40 = int_to_ptr.vmem [resolvable:$true] %s39
      %45 = dma.hbm_to_vmem [thread:$0]  %s38, 1536, %s40, [#allocation10], 192, 192, 12
    $region13: #{tpu_custom_call.1} parent=1 // pred_fallthru
      _
    // Predicated region
    $region14: #{tpu_custom_call.1} parent=1 // pred_check
      _
    $region15: #{tpu_custom_call.1} parent=1 // pred_check_branch
      %47 = sbr.rel (0) target = $region17
    $region16: #{tpu_custom_call.1} parent=1 // pred_region
      %49 = vsyncadd [#allocation10], 0
      %s50 = sshll.u32 %s3, 4
      %s51 = int_to_ptr.hbm [resolvable:$true] %s50
      %s52 = sshll.u32 [#allocation11], 4
      %s53 = int_to_ptr.vmem [resolvable:$true] %s52
      %58 = dma.hbm_to_vmem [thread:$0]  %s51, 2304, %s53, [#allocation10], 192, 192, 12
    $region17: #{tpu_custom_call.1} parent=1 // pred_fallthru
      _
    // Predicated region
    $region18: #{tpu_custom_call.1} parent=1 // pred_check
      _
    $region19: #{tpu_custom_call.1} parent=1 // pred_check_branch
      %60 = sbr.rel (0) target = $region21
    $region20: #{tpu_custom_call.1} parent=1 // pred_region
      _
    $region21: #{tpu_custom_call.1} parent=1 // pred_fallthru
      _
    // Predicated region
    $region22: #{tpu_custom_call.1} parent=1 // pred_check
      _
    $region23: #{tpu_custom_call.1} parent=1 // pred_check_branch
      %62 = sbr.rel (0) target = $region25
    $region24: #{tpu_custom_call.1} parent=1 // pred_region
      _
    $region25: #{tpu_custom_call.1} parent=1 // pred_fallthru
      _
    // Predicated region
    $region26: #{tpu_custom_call.1} parent=1 // pred_check
      _
    $region27: #{tpu_custom_call.1} parent=1 // pred_check_branch
      %64 = sbr.rel (0) target = $region29
    $region28: #{tpu_custom_call.1} parent=1 // pred_region
      _
    $region29: #{tpu_custom_call.1} parent=1 // pred_fallthru
      _
    // Predicated region
    $region30: #{tpu_custom_call.1} parent=1 // pred_check
      _
    $region31: #{tpu_custom_call.1} parent=1 // pred_check_branch
      %66 = sbr.rel (0) target = $region33
    $region32: #{tpu_custom_call.1} parent=1 // pred_region
      %68 = vsyncadd [#allocation13], 0
      %s69 = sshll.u32 %s7, 4
      %s70 = int_to_ptr.hbm [resolvable:$true] %s69
      %s71 = sshll.u32 [#allocation12], 4
      %s72 = int_to_ptr.vmem [resolvable:$true] %s71
      %77 = dma.hbm_to_vmem [thread:$0]  %s70, 768, %s72, [#allocation13], 128, 128, 8
    $region33: #{tpu_custom_call.1} parent=1 // pred_fallthru
      _
    // Predicated region
    $region34: #{tpu_custom_call.1} parent=1 // pred_check
      _
    $region35: #{tpu_custom_call.1} parent=1 // pred_check_branch
      %79 = sbr.rel (0) target = $region37
    $region36: #{tpu_custom_call.1} parent=1 // pred_region
      _
    $region37: #{tpu_custom_call.1} parent=1 // pred_fallthru
      _
    // Predicated region
    $region38: #{tpu_custom_call.1} parent=1 // pred_check
      _
    $region39: #{tpu_custom_call.1} parent=1 // pred_check_branch
      %81 = sbr.rel (0) target = $region41
    $region40: #{tpu_custom_call.1} parent=1 // pred_region
      %83 = dma.done [#allocation7], 2048
    $region41: #{tpu_custom_call.1} parent=1 // pred_fallthru
      _
    // Predicated region
    $region42: #{tpu_custom_call.1} parent=1 // pred_check
      _
    $region43: #{tpu_custom_call.1} parent=1 // pred_check_branch
      %85 = sbr.rel (0) target = $region45
    $region44: #{tpu_custom_call.1} parent=1 // pred_region
      %87 = dma.done [#allocation10], 1536
    $region45: #{tpu_custom_call.1} parent=1 // pred_fallthru
      _
    // Predicated region
    $region46: #{tpu_custom_call.1} parent=1 // pred_check
      _
    $region47: #{tpu_custom_call.1} parent=1 // pred_check_branch
      %89 = sbr.rel (0) target = $region49
    $region48: #{tpu_custom_call.1} parent=1 // pred_region
      %91 = dma.done [#allocation10], 2304
    $region49: #{tpu_custom_call.1} parent=1 // pred_fallthru
      _
    // Predicated region
    $region50: #{tpu_custom_call.1} parent=1 // pred_check
      _
    $region51: #{tpu_custom_call.1} parent=1 // pred_check_branch
      %93 = sbr.rel (0) target = $region53
    $region52: #{tpu_custom_call.1} parent=1 // pred_region
      %95 = dma.done [#allocation13], 768
    $region53: #{tpu_custom_call.1} parent=1 // pred_fallthru
      _
    %p97 = scmp.eq.s32.totalorder 0, 0
    // Predicated region
    $region54: #{tpu_custom_call.1} parent=1 // pred_check
      %p98 = pneg %p97
    $region55: #{tpu_custom_call.1} parent=1 // pred_check_branch
      %100 = sbr.rel (%p98) target = $region57
    $region56: #{tpu_custom_call.1} parent=1 // pred_region
      %vm101 = vcmask 523264
      %102 = vst.msk [vmem:[#allocation2] sm:$0xff] %vm101, 0.0
      %103 = vst.msk [vmem:[#allocation3] sm:$0xff] %vm101, 0.0
      %vm104 = vcmask 785408
      %105 = vst.msk [vmem:[#allocation4] sm:$0xff] %vm104, 0.0
      %106 = vst.msk [vmem:[#allocation5] sm:$0xff] %vm104, 0.0
    $region57: #{tpu_custom_call.1} parent=1 // pred_fallthru
      _
    %v107 = vld [vmem:[#allocation2] sm:$0xff]
    %v108 = vld [vmem:[#allocation3] sm:$0xff]
    %v109 = vld [vmem:[#allocation4] sm:$0xff]
    %v110 = vld [vmem:[#allocation5] sm:$0xff]
    %112 = vrot.lane.b32.xlu0 %v110, 64
    %v113 = vpop.permute.xlu0 %112
    loop: start=0, step=1, limit=2
    $region58: #{tpu_custom_call.1} parent=1 // loop_pre_header
      _
    $region59: #{tpu_custom_call.1} parent=1 // loop_header
      %s116 = sphi 0, %s120
      %p117 = scmp.ge.s32.totalorder %s116, 2
      %v121 = vphi %v107, %v3376
      %v122 = vphi %v108, %v3380
      %v123 = vphi %v109, %v3373
      %v124 = vphi %v110, %v3384
      %v125 = vphi %v110, %v3150
      %v126 = vphi %v113, %v3388
    $region60: #{tpu_custom_call.1} parent=1 // loop_header_branch
      %119 = sbr.rel (%p117) target = $region64
    $region61: #{tpu_custom_call.1} parent=1 // loop_body
      %s127 = smul.u32 %s116, 4
      %s128 = smul.u32 %s127, 4
      %s129 = smul.addr %s128, 4
      %s130 = scalar_lea.vmem [#allocation6], %s129
      %v131 = vld [vmem:[%s130] sm:$0xff]
      %v132 = vld [vmem:[%s130 + $0x8] sm:$0xff]
      %v133 = vpack.c.bf16 %v123, %v123
      %v134 = vld [vmem:[#allocation11] sm:$0xff]
      %v135 = vld [vmem:[#allocation11 + $0x8] sm:$0xf]
      %v136 = vld [vmem:[#allocation11 + $0xc] sm:$0xff]
      %v137 = vld [vmem:[#allocation11 + $0x14] sm:$0xf]
      %v138 = vld [vmem:[#allocation11 + $0x18] sm:$0xff]
      %v139 = vld [vmem:[#allocation11 + $0x20] sm:$0xf]
      %v140 = vld [vmem:[#allocation11 + $0x24] sm:$0xff]
      %v141 = vld [vmem:[#allocation11 + $0x2c] sm:$0xf]
      %v142 = vld [vmem:[#allocation11 + $0x30] sm:$0xff]
      %v143 = vld [vmem:[#allocation11 + $0x38] sm:$0xf]
      %v144 = vld [vmem:[#allocation11 + $0x3c] sm:$0xff]
      %v145 = vld [vmem:[#allocation11 + $0x44] sm:$0xf]
      %v146 = vld [vmem:[#allocation11 + $0x48] sm:$0xff]
      %v147 = vld [vmem:[#allocation11 + $0x50] sm:$0xf]
      %v148 = vld [vmem:[#allocation11 + $0x54] sm:$0xff]
      %v149 = vld [vmem:[#allocation11 + $0x5c] sm:$0xf]
      %v150 = vld [vmem:[#allocation11 + $0x60] sm:$0xff]
      %v151 = vld [vmem:[#allocation11 + $0x68] sm:$0xf]
      %v152 = vld [vmem:[#allocation11 + $0x6c] sm:$0xff]
      %v153 = vld [vmem:[#allocation11 + $0x74] sm:$0xf]
      %v154 = vld [vmem:[#allocation11 + $0x78] sm:$0xff]
      %v155 = vld [vmem:[#allocation11 + $0x80] sm:$0xf]
      %v156 = vld [vmem:[#allocation11 + $0x84] sm:$0xff]
      %v157 = vld [vmem:[#allocation11 + $0x8c] sm:$0xf]
      %v182 = vunpack.c.l.b16 %v134
      %v183 = vunpack.c.h.b16 %v134
      %v184 = vunpack.c.l.b16 %v135
      %v185 = vunpack.c.l.b16 %v136
      %v186 = vunpack.c.h.b16 %v136
      %v187 = vunpack.c.l.b16 %v137
      %v188 = vunpack.c.l.b16 %v138
      %v189 = vunpack.c.h.b16 %v138
      %v190 = vunpack.c.l.b16 %v139
      %v191 = vunpack.c.l.b16 %v140
      %v192 = vunpack.c.h.b16 %v140
      %v193 = vunpack.c.l.b16 %v141
      %v194 = vunpack.c.l.b16 %v142
      %v195 = vunpack.c.h.b16 %v142
      %v196 = vunpack.c.l.b16 %v143
      %v197 = vunpack.c.l.b16 %v144
      %v198 = vunpack.c.h.b16 %v144
      %v199 = vunpack.c.l.b16 %v145
      %v200 = vunpack.c.l.b16 %v146
      %v201 = vunpack.c.h.b16 %v146
      %v202 = vunpack.c.l.b16 %v147
      %v203 = vunpack.c.l.b16 %v148
      %v204 = vunpack.c.h.b16 %v148
      %v205 = vunpack.c.l.b16 %v149
      %v206 = vunpack.c.l.b16 %v150
      %v207 = vunpack.c.h.b16 %v150
      %v208 = vunpack.c.l.b16 %v151
      %v209 = vunpack.c.l.b16 %v152
      %v210 = vunpack.c.h.b16 %v152
      %v211 = vunpack.c.l.b16 %v153
      %v212 = vunpack.c.l.b16 %v154
      %v213 = vunpack.c.h.b16 %v154
      %v214 = vunpack.c.l.b16 %v155
      %v215 = vunpack.c.l.b16 %v156
      %v216 = vunpack.c.h.b16 %v156
      %v217 = vunpack.c.l.b16 %v157
      %v218 = vpack.c.b16 %v185, %v182
      %v219 = vpack.c.b16 %v186, %v183
      %v220 = vpack.c.b16 %v187, %v184
      %v221 = vpack.c.b16 %v191, %v188
      %v222 = vpack.c.b16 %v192, %v189
      %v223 = vpack.c.b16 %v193, %v190
      %v224 = vpack.c.b16 %v197, %v194
      %v225 = vpack.c.b16 %v198, %v195
      %v226 = vpack.c.b16 %v199, %v196
      %v227 = vpack.c.b16 %v203, %v200
      %v228 = vpack.c.b16 %v204, %v201
      %v229 = vpack.c.b16 %v205, %v202
      %v230 = vpack.c.b16 %v209, %v206
      %v231 = vpack.c.b16 %v210, %v207
      %v232 = vpack.c.b16 %v211, %v208
      %v233 = vpack.c.b16 %v215, %v212
      %v234 = vpack.c.b16 %v216, %v213
      %v235 = vpack.c.b16 %v217, %v214
      %vm254 = vcmask 785408
      %v256 = vsel %vm254, %v133, 0
      %258 = vmatpush.bf16.msra.mxu0 0
      %259 = vmatpush.bf16.msra.mxu0 0
      %260 = vmatpush.bf16.msra.mxu0 %v233
      %261 = vmatpush.bf16.msra.mxu0 %v230
      %262 = vmatpush.bf16.msra.mxu0 %v227
      %263 = vmatpush.bf16.msra.mxu0 %v224
      %264 = vmatpush.bf16.msra.mxu0 %v221
      %265 = vmatpush.bf16.msra.mxu0 %v218
      %266 = vmatmul.bf16.gmra.mxu0 %v256
      %v267 = vpop.f32.mrf.mxu0
      %v268 = vadd.f32 0.0, %v267
      %v269 = vpop.f32.mrf.mxu0
      %270 = vdwg.mxu0
      %271 = vmatpush.bf16.msra.mxu0 0
      %272 = vmatpush.bf16.msra.mxu0 0
      %273 = vmatpush.bf16.msra.mxu0 %v234
      %274 = vmatpush.bf16.msra.mxu0 %v231
      %275 = vmatpush.bf16.msra.mxu0 %v228
      %276 = vmatpush.bf16.msra.mxu0 %v225
      %277 = vmatpush.bf16.msra.mxu0 %v222
      %278 = vmatpush.bf16.msra.mxu0 %v219
      %279 = vmatmul.bf16.gmra.mxu0 %v256
      %v280 = vpop.f32.mrf.mxu0
      %v281 = vadd.f32 0.0, %v280
      %v282 = vpop.f32.mrf.mxu0
      %283 = vdwg.mxu0
      %284 = vmatpush.bf16.msra.mxu0 0
      %285 = vmatpush.bf16.msra.mxu0 0
      %286 = vmatpush.bf16.msra.mxu0 %v235
      %287 = vmatpush.bf16.msra.mxu0 %v232
      %288 = vmatpush.bf16.msra.mxu0 %v229
      %289 = vmatpush.bf16.msra.mxu0 %v226
      %290 = vmatpush.bf16.msra.mxu0 %v223
      %291 = vmatpush.bf16.msra.mxu0 %v220
      %292 = vmatmul.bf16.gmra.mxu0 %v256
      %v293 = vpop.f32.mrf.mxu0
      %v294 = vadd.f32 0.0, %v293
      %v295 = vpop.f32.mrf.mxu0
      %296 = vdwg.mxu0
      %v297 = vpack.c.bf16 %v121, %v121
      %v298 = vld [vmem:[%s1] sm:$0xff]
      %v299 = vld [vmem:[%s1 + $0x8] sm:$0xff]
      %v300 = vld [vmem:[%s1 + $0x10] sm:$0xff]
      %v301 = vld [vmem:[%s1 + $0x18] sm:$0xff]
      %v302 = vld [vmem:[%s1 + $0x20] sm:$0xff]
      %v303 = vld [vmem:[%s1 + $0x28] sm:$0xff]
      %v304 = vld [vmem:[%s1 + $0x30] sm:$0xff]
      %v305 = vld [vmem:[%s1 + $0x38] sm:$0xff]
      %v314 = vunpack.c.l.b16 %v298
      %v315 = vunpack.c.h.b16 %v298
      %v316 = vunpack.c.l.b16 %v299
      %v317 = vunpack.c.h.b16 %v299
      %v318 = vunpack.c.l.b16 %v300
      %v319 = vunpack.c.h.b16 %v300
      %v320 = vunpack.c.l.b16 %v301
      %v321 = vunpack.c.h.b16 %v301
      %v322 = vunpack.c.l.b16 %v302
      %v323 = vunpack.c.h.b16 %v302
      %v324 = vunpack.c.l.b16 %v303
      %v325 = vunpack.c.h.b16 %v303
      %v326 = vunpack.c.l.b16 %v304
      %v327 = vunpack.c.h.b16 %v304
      %v328 = vunpack.c.l.b16 %v305
      %v329 = vunpack.c.h.b16 %v305
      %v330 = vpack.c.b16 %v316, %v314
      %v331 = vpack.c.b16 %v317, %v315
      %v332 = vpack.c.b16 %v320, %v318
      %v333 = vpack.c.b16 %v321, %v319
      %v334 = vpack.c.b16 %v324, %v322
      %v335 = vpack.c.b16 %v325, %v323
      %v336 = vpack.c.b16 %v328, %v326
      %v337 = vpack.c.b16 %v329, %v327
      %vm346 = vcmask 523264
      %v348 = vsel %vm346, %v297, 0
      %350 = vmatpush.bf16.msra.mxu0 0
      %351 = vmatpush.bf16.msra.mxu0 0
      %352 = vmatpush.bf16.msra.mxu0 0
      %353 = vmatpush.bf16.msra.mxu0 0
      %354 = vmatpush.bf16.msra.mxu0 %v336
      %355 = vmatpush.bf16.msra.mxu0 %v334
      %356 = vmatpush.bf16.msra.mxu0 %v332
      %357 = vmatpush.bf16.msra.mxu0 %v330
      %358 = vmatmul.bf16.gmra.mxu0 %v348
      %v359 = vpop.f32.mrf.mxu0
      %v360 = vadd.f32 0.0, %v359
      %v361 = vpop.f32.mrf.mxu0
      %362 = vdwg.mxu0
      %363 = vmatpush.bf16.msra.mxu0 0
      %364 = vmatpush.bf16.msra.mxu0 0
      %365 = vmatpush.bf16.msra.mxu0 0
      %366 = vmatpush.bf16.msra.mxu0 0
      %367 = vmatpush.bf16.msra.mxu0 %v337
      %368 = vmatpush.bf16.msra.mxu0 %v335
      %369 = vmatpush.bf16.msra.mxu0 %v333
      %370 = vmatpush.bf16.msra.mxu0 %v331
      %371 = vmatmul.bf16.gmra.mxu0 %v348
      %v372 = vpop.f32.mrf.mxu0
      %v373 = vadd.f32 0.0, %v372
      %v374 = vpop.f32.mrf.mxu0
      %375 = vdwg.mxu0
      %v376 = vunpack.c.l.bf16 %v131
      %v377 = vunpack.c.h.bf16 %v131
      %v378 = vadd.f32 %v376, %v360
      %v379 = vadd.f32 %v377, %v373
      %v380 = vxor.u32 %v378, 2147483648
      %v381 = vmul.f32 %v380, 1.442695
      %v382 = vpow.pop %v381
      %v383 = vadd.f32 %v382, 1.0
      %v384 = vrcp.pop %v383
      %v385 = vmul.f32 %v383, %v384
      %v386 = vsub.f32 1.0, %v385
      %v387 = vmul.f32 %v384, %v386
      %v388 = vadd.f32 %v384, %v387
      %vm389 = vweird.f32 %v383
      %vm390 = vweird.f32 %v384
      %vm391 = vmor %vm389, %vm390
      %v392 = vsel %vm391, %v384, %v388
      %v393 = vand.u32 2147483647, %v383
      %vm394 = vcmp.eq.f32.partialorder %v393, 8.507059e+37
      %v395 = vand.u32 %v383, 2147483648
      %v396 = vor.u32 1.1754944e-38, %v395
      %v397 = vsel %vm394, %v396, %v392
      %v398 = vmul.f32 1.0, %v397
      %v399 = vtanh.pop %v379
      %v400 = vxor.u32 %v379, 2147483648
      %v401 = vmul.f32 %v400, 1.442695
      %v402 = vpow.pop %v401
      %v403 = vadd.f32 %v402, 1.0
      %v404 = vrcp.pop %v403
      %v405 = vmul.f32 %v403, %v404
      %v406 = vsub.f32 1.0, %v405
      %v407 = vmul.f32 %v404, %v406
      %v408 = vadd.f32 %v404, %v407
      %vm409 = vweird.f32 %v403
      %vm410 = vweird.f32 %v404
      %vm411 = vmor %vm409, %vm410
      %v412 = vsel %vm411, %v404, %v408
      %v413 = vand.u32 2147483647, %v403
      %vm414 = vcmp.eq.f32.partialorder %v413, 8.507059e+37
      %v415 = vand.u32 %v403, 2147483648
      %v416 = vor.u32 1.1754944e-38, %v415
      %v417 = vsel %vm414, %v416, %v412
      %v418 = vmul.f32 1.0, %v417
      %420 = vrot.lane.b32.xlu0 %v122, 64
      %v421 = vpop.permute.xlu0 %420
      %v423 = vmul.f32 %v398, %v421
      %v424 = vmul.f32 %v398, %v399
      %426 = vrot.lane.b32.xlu0 %v424, 64
      %v427 = vpop.permute.xlu0 %426
      %v429 = vadd.f32 %v423, %v427
      %v430 = vtanh.pop %v429
      %v431 = vmul.f32 %v418, %v430
      %v432 = vpack.c.bf16 %v431, %v431
      %v433 = vld [vmem:[#allocation9] sm:$0xff]
      %v434 = vld [vmem:[#allocation9 + $0x8] sm:$0xf]
      %v435 = vld [vmem:[#allocation9 + $0xc] sm:$0xff]
      %v436 = vld [vmem:[#allocation9 + $0x14] sm:$0xf]
      %v437 = vld [vmem:[#allocation9 + $0x18] sm:$0xff]
      %v438 = vld [vmem:[#allocation9 + $0x20] sm:$0xf]
      %v439 = vld [vmem:[#allocation9 + $0x24] sm:$0xff]
      %v440 = vld [vmem:[#allocation9 + $0x2c] sm:$0xf]
      %v441 = vld [vmem:[#allocation9 + $0x30] sm:$0xff]
      %v442 = vld [vmem:[#allocation9 + $0x38] sm:$0xf]
      %v443 = vld [vmem:[#allocation9 + $0x3c] sm:$0xff]
      %v444 = vld [vmem:[#allocation9 + $0x44] sm:$0xf]
      %v445 = vld [vmem:[#allocation9 + $0x48] sm:$0xff]
      %v446 = vld [vmem:[#allocation9 + $0x50] sm:$0xf]
      %v447 = vld [vmem:[#allocation9 + $0x54] sm:$0xff]
      %v448 = vld [vmem:[#allocation9 + $0x5c] sm:$0xf]
      %450 = vrot.lane.b32.xlu0 %v432, 64
      %v451 = vpop.permute.xlu0 %450
      %v468 = vunpack.c.l.b16 %v433
      %v469 = vunpack.c.h.b16 %v433
      %v470 = vunpack.c.l.b16 %v434
      %v471 = vunpack.c.l.b16 %v435
      %v472 = vunpack.c.h.b16 %v435
      %v473 = vunpack.c.l.b16 %v436
      %v474 = vunpack.c.l.b16 %v437
      %v475 = vunpack.c.h.b16 %v437
      %v476 = vunpack.c.l.b16 %v438
      %v477 = vunpack.c.l.b16 %v439
      %v478 = vunpack.c.h.b16 %v439
      %v479 = vunpack.c.l.b16 %v440
      %v480 = vunpack.c.l.b16 %v441
      %v481 = vunpack.c.h.b16 %v441
      %v482 = vunpack.c.l.b16 %v442
      %v483 = vunpack.c.l.b16 %v443
      %v484 = vunpack.c.h.b16 %v443
      %v485 = vunpack.c.l.b16 %v444
      %v486 = vunpack.c.l.b16 %v445
      %v487 = vunpack.c.h.b16 %v445
      %v488 = vunpack.c.l.b16 %v446
      %v489 = vunpack.c.l.b16 %v447
      %v490 = vunpack.c.h.b16 %v447
      %v491 = vunpack.c.l.b16 %v448
      %v492 = vpack.c.b16 %v471, %v468
      %v493 = vpack.c.b16 %v472, %v469
      %v494 = vpack.c.b16 %v473, %v470
      %v495 = vpack.c.b16 %v477, %v474
      %v496 = vpack.c.b16 %v478, %v475
      %v497 = vpack.c.b16 %v479, %v476
      %v498 = vpack.c.b16 %v483, %v480
      %v499 = vpack.c.b16 %v484, %v481
      %v500 = vpack.c.b16 %v485, %v482
      %v501 = vpack.c.b16 %v489, %v486
      %v502 = vpack.c.b16 %v490, %v487
      %v503 = vpack.c.b16 %v491, %v488
      %v517 = vsel %vm346, %v451, 0
      %519 = vmatpush.bf16.msra.mxu0 0
      %520 = vmatpush.bf16.msra.mxu0 0
      %521 = vmatpush.bf16.msra.mxu0 0
      %522 = vmatpush.bf16.msra.mxu0 0
      %523 = vmatpush.bf16.msra.mxu0 %v501
      %524 = vmatpush.bf16.msra.mxu0 %v498
      %525 = vmatpush.bf16.msra.mxu0 %v495
      %526 = vmatpush.bf16.msra.mxu0 %v492
      %527 = vmatmul.bf16.gmra.mxu0 %v517
      %v528 = vpop.f32.mrf.mxu0
      %v529 = vadd.f32 0.0, %v528
      %v530 = vpop.f32.mrf.mxu0
      %531 = vdwg.mxu0
      %532 = vmatpush.bf16.msra.mxu0 0
      %533 = vmatpush.bf16.msra.mxu0 0
      %534 = vmatpush.bf16.msra.mxu0 0
      %535 = vmatpush.bf16.msra.mxu0 0
      %536 = vmatpush.bf16.msra.mxu0 %v502
      %537 = vmatpush.bf16.msra.mxu0 %v499
      %538 = vmatpush.bf16.msra.mxu0 %v496
      %539 = vmatpush.bf16.msra.mxu0 %v493
      %540 = vmatmul.bf16.gmra.mxu0 %v517
      %v541 = vpop.f32.mrf.mxu0
      %v542 = vadd.f32 0.0, %v541
      %v543 = vpop.f32.mrf.mxu0
      %544 = vdwg.mxu0
      %545 = vmatpush.bf16.msra.mxu0 0
      %546 = vmatpush.bf16.msra.mxu0 0
      %547 = vmatpush.bf16.msra.mxu0 0
      %548 = vmatpush.bf16.msra.mxu0 0
      %549 = vmatpush.bf16.msra.mxu0 %v503
      %550 = vmatpush.bf16.msra.mxu0 %v500
      %551 = vmatpush.bf16.msra.mxu0 %v497
      %552 = vmatpush.bf16.msra.mxu0 %v494
      %553 = vmatmul.bf16.gmra.mxu0 %v517
      %v554 = vpop.f32.mrf.mxu0
      %v555 = vadd.f32 0.0, %v554
      %v556 = vpop.f32.mrf.mxu0
      %557 = vdwg.mxu0
      %v558 = vunpack.c.l.bf16 %v132
      %v559 = vadd.f32 %v558, %v529
      %v560 = vadd.f32 %v559, %v268
      %v561 = vxor.u32 %v560, 2147483648
      %v562 = vmul.f32 %v561, 1.442695
      %v563 = vpow.pop %v562
      %v564 = vadd.f32 %v563, 1.0
      %v565 = vrcp.pop %v564
      %v566 = vmul.f32 %v564, %v565
      %v567 = vsub.f32 1.0, %v566
      %v568 = vmul.f32 %v565, %v567
      %v569 = vadd.f32 %v565, %v568
      %vm570 = vweird.f32 %v564
      %vm571 = vweird.f32 %v565
      %vm572 = vmor %vm570, %vm571
      %v573 = vsel %vm572, %v565, %v569
      %v574 = vand.u32 2147483647, %v564
      %vm575 = vcmp.eq.f32.partialorder %v574, 8.507059e+37
      %v576 = vand.u32 %v564, 2147483648
      %v577 = vor.u32 1.1754944e-38, %v576
      %v578 = vsel %vm575, %v577, %v573
      %v579 = vmul.f32 1.0, %v578
      %v580 = vtanh.pop %v560
      %582 = vrot.lane.b32.xlu0 %v124, 32
      %v583 = vpop.permute.xlu0 %582
      %v585 = vmul.f32 %v579, %v583
      %587 = vrot.lane.b32.xlu0 %v580, 64
      %v588 = vpop.permute.xlu0 %587
      %v590 = vmul.f32 %v579, %v588
      %592 = vrot.lane.b32.xlu0 %v590, 32
      %v593 = vpop.permute.xlu0 %592
      %v595 = vadd.f32 %v585, %v593
      %v596 = vtanh.pop %v595
      %598 = vrot.lane.b32.xlu0 %v596, 64
      %v599 = vpop.permute.xlu0 %598
      %v601 = vmul.f32 %v579, %v599
      %v602 = vpack.c.bf16 %v601, %v601
      %v603 = vld [vmem:[%s5] sm:$0xf]
      %v604 = vld [vmem:[%s5 + $0x4] sm:$0xf]
      %v605 = vld [vmem:[%s5 + $0x8] sm:$0xf]
      %v606 = vld [vmem:[%s5 + $0xc] sm:$0xf]
      %v607 = vld [vmem:[%s6] sm:$0x1]
      %v609 = vperm.slane %v607, 0
      %612 = vrot.lane.b32.xlu0 %v602, 32
      %v613 = vpop.permute.xlu0 %612
      %v618 = vunpack.c.l.b16 %v603
      %v619 = vunpack.c.l.b16 %v604
      %v620 = vunpack.c.l.b16 %v605
      %v621 = vunpack.c.l.b16 %v606
      %v622 = vpack.c.b16 %v619, %v618
      %v623 = vpack.c.b16 %v621, %v620
      %vm626 = vcmask 261120
      %v628 = vsel %vm626, %v613, 0
      %630 = vmatpush.bf16.msra.mxu0 0
      %631 = vmatpush.bf16.msra.mxu0 0
      %632 = vmatpush.bf16.msra.mxu0 0
      %633 = vmatpush.bf16.msra.mxu0 0
      %634 = vmatpush.bf16.msra.mxu0 0
      %635 = vmatpush.bf16.msra.mxu0 0
      %636 = vmatpush.bf16.msra.mxu0 %v623
      %637 = vmatpush.bf16.msra.mxu0 %v622
      %638 = vmatmul.bf16.gmra.mxu0 %v628
      %v639 = vpop.f32.mrf.mxu0
      %v640 = vadd.f32 %v609, %v639
      %v641 = vpop.f32.mrf.mxu0
      %642 = vdwg.mxu0
      %v643 = vmax.f32 %v640, 0.0
      %v644 = vpack.c.bf16 %v643, %v643
      %v645 = vld [vmem:[#allocation12] sm:$0xff]
      %v646 = vld [vmem:[#allocation12 + $0x8] sm:$0xff]
      %v649 = vunpack.c.l.b16 %v645
      %v650 = vunpack.c.h.b16 %v645
      %v651 = vunpack.c.l.b16 %v646
      %v652 = vunpack.c.h.b16 %v646
      %v653 = vpack.c.b16 %v651, %v649
      %v654 = vpack.c.b16 %v652, %v650
      %vm657 = vcmask 130048
      %v659 = vsel %vm657, %v644, 0
      %661 = vmatpush.bf16.msra.mxu0 0
      %662 = vmatpush.bf16.msra.mxu0 0
      %663 = vmatpush.bf16.msra.mxu0 0
      %664 = vmatpush.bf16.msra.mxu0 0
      %665 = vmatpush.bf16.msra.mxu0 0
      %666 = vmatpush.bf16.msra.mxu0 0
      %667 = vmatpush.bf16.msra.mxu0 0
      %668 = vmatpush.bf16.msra.mxu0 %v653
      %669 = vmatmul.bf16.gmra.mxu0 %v659
      %v670 = vpop.f32.mrf.mxu0
      %v671 = vadd.f32 0.0, %v670
      %v672 = vpop.f32.mrf.mxu0
      %673 = vdwg.mxu0
      %674 = vmatpush.bf16.msra.mxu0 0
      %675 = vmatpush.bf16.msra.mxu0 0
      %676 = vmatpush.bf16.msra.mxu0 0
      %677 = vmatpush.bf16.msra.mxu0 0
      %678 = vmatpush.bf16.msra.mxu0 0
      %679 = vmatpush.bf16.msra.mxu0 0
      %680 = vmatpush.bf16.msra.mxu0 0
      %681 = vmatpush.bf16.msra.mxu0 %v654
      %682 = vmatmul.bf16.gmra.mxu0 %v659
      %v683 = vpop.f32.mrf.mxu0
      %v684 = vadd.f32 0.0, %v683
      %v685 = vpop.f32.mrf.mxu0
      %686 = vdwg.mxu0
      %v688 = vrot.slane %v132, 4
      %v690 = vunpack.c.l.bf16 %v688
      %v691 = vadd.f32 %v690, %v542
      %v692 = vadd.f32 %v691, %v281
      %v693 = vadd.f32 %v692, %v671
      %v694 = vxor.u32 %v693, 2147483648
      %v695 = vmul.f32 %v694, 1.442695
      %v696 = vpow.pop %v695
      %v697 = vadd.f32 %v696, 1.0
      %v698 = vrcp.pop %v697
      %v699 = vmul.f32 %v697, %v698
      %v700 = vsub.f32 1.0, %v699
      %v701 = vmul.f32 %v698, %v700
      %v702 = vadd.f32 %v698, %v701
      %vm703 = vweird.f32 %v697
      %vm704 = vweird.f32 %v698
      %vm705 = vmor %vm703, %vm704
      %v706 = vsel %vm705, %v698, %v702
      %v707 = vand.u32 2147483647, %v697
      %vm708 = vcmp.eq.f32.partialorder %v707, 8.507059e+37
      %v709 = vand.u32 %v697, 2147483648
      %v710 = vor.u32 1.1754944e-38, %v709
      %v711 = vsel %vm708, %v710, %v706
      %v712 = vmul.f32 1.0, %v711
      %v713 = vtanh.pop %v693
      %v714 = vmul.f32 %v712, %v125
      %716 = vrot.lane.b32.xlu0 %v713, 64
      %v717 = vpop.permute.xlu0 %716
      %v719 = vmul.f32 %v712, %v717
      %721 = vrot.lane.b32.xlu0 %v719, 32
      %v722 = vpop.permute.xlu0 %721
      %v724 = vadd.f32 %v714, %v722
      %v725 = vtanh.pop %v724
      %727 = vrot.lane.b32.xlu0 %v725, 64
      %v728 = vpop.permute.xlu0 %727
      %v730 = vmul.f32 %v712, %v728
      %v731 = vpack.c.bf16 %v730, %v730
      %s732 = scalar_lea.vmem %s5, 16
      %v733 = vld [vmem:[%s732] sm:$0xf]
      %v734 = vld [vmem:[%s732 + $0x4] sm:$0xf]
      %v735 = vld [vmem:[%s732 + $0x8] sm:$0xf]
      %v736 = vld [vmem:[%s732 + $0xc] sm:$0xf]
      %s737 = scalar_lea.vmem %s6, 1
      %v738 = vld [vmem:[%s737] sm:$0x1]
      %v740 = vperm.slane %v738, 0
      %743 = vrot.lane.b32.xlu0 %v731, 32
      %v744 = vpop.permute.xlu0 %743
      %v749 = vunpack.c.l.b16 %v733
      %v750 = vunpack.c.l.b16 %v734
      %v751 = vunpack.c.l.b16 %v735
      %v752 = vunpack.c.l.b16 %v736
      %v753 = vpack.c.b16 %v750, %v749
      %v754 = vpack.c.b16 %v752, %v751
      %v758 = vsel %vm626, %v744, 0
      %760 = vmatpush.bf16.msra.mxu0 0
      %761 = vmatpush.bf16.msra.mxu0 0
      %762 = vmatpush.bf16.msra.mxu0 0
      %763 = vmatpush.bf16.msra.mxu0 0
      %764 = vmatpush.bf16.msra.mxu0 0
      %765 = vmatpush.bf16.msra.mxu0 0
      %766 = vmatpush.bf16.msra.mxu0 %v754
      %767 = vmatpush.bf16.msra.mxu0 %v753
      %768 = vmatmul.bf16.gmra.mxu0 %v758
      %v769 = vpop.f32.mrf.mxu0
      %v770 = vadd.f32 %v740, %v769
      %v771 = vpop.f32.mrf.mxu0
      %772 = vdwg.mxu0
      %v773 = vmax.f32 %v770, 0.0
      %v774 = vpack.c.bf16 %v773, %v773
      %s775 = scalar_lea.vmem [#allocation12], 16
      %v776 = vld [vmem:[%s775] sm:$0xff]
      %v777 = vld [vmem:[%s775 + $0x8] sm:$0xff]
      %v780 = vunpack.c.l.b16 %v776
      %v781 = vunpack.c.h.b16 %v776
      %v782 = vunpack.c.l.b16 %v777
      %v783 = vunpack.c.h.b16 %v777
      %v784 = vpack.c.b16 %v782, %v780
      %v785 = vpack.c.b16 %v783, %v781
      %v789 = vsel %vm657, %v774, 0
      %791 = vmatpush.bf16.msra.mxu0 0
      %792 = vmatpush.bf16.msra.mxu0 0
      %793 = vmatpush.bf16.msra.mxu0 0
      %794 = vmatpush.bf16.msra.mxu0 0
      %795 = vmatpush.bf16.msra.mxu0 0
      %796 = vmatpush.bf16.msra.mxu0 0
      %797 = vmatpush.bf16.msra.mxu0 0
      %798 = vmatpush.bf16.msra.mxu0 %v784
      %799 = vmatmul.bf16.gmra.mxu0 %v789
      %v800 = vpop.f32.mrf.mxu0
      %v801 = vadd.f32 0.0, %v800
      %v802 = vpop.f32.mrf.mxu0
      %803 = vdwg.mxu0
      %804 = vmatpush.bf16.msra.mxu0 0
      %805 = vmatpush.bf16.msra.mxu0 0
      %806 = vmatpush.bf16.msra.mxu0 0
      %807 = vmatpush.bf16.msra.mxu0 0
      %808 = vmatpush.bf16.msra.mxu0 0
      %809 = vmatpush.bf16.msra.mxu0 0
      %810 = vmatpush.bf16.msra.mxu0 0
      %811 = vmatpush.bf16.msra.mxu0 %v785
      %812 = vmatmul.bf16.gmra.mxu0 %v789
      %v813 = vpop.f32.mrf.mxu0
      %v814 = vadd.f32 0.0, %v813
      %v815 = vpop.f32.mrf.mxu0
      %816 = vdwg.mxu0
      %v817 = vld [vmem:[%s4] sm:$0x1]
      %v819 = vperm.slane %v817, 0
      %v821 = vadd.f32 %v819, %v555
      %v822 = vadd.f32 %v821, %v294
      %v823 = vadd.f32 %v822, %v801
      %v824 = vxor.u32 %v823, 2147483648
      %v825 = vmul.f32 %v824, 1.442695
      %v826 = vpow.pop %v825
      %v827 = vadd.f32 %v826, 1.0
      %v828 = vrcp.pop %v827
      %v829 = vmul.f32 %v827, %v828
      %v830 = vsub.f32 1.0, %v829
      %v831 = vmul.f32 %v828, %v830
      %v832 = vadd.f32 %v828, %v831
      %vm833 = vweird.f32 %v827
      %vm834 = vweird.f32 %v828
      %vm835 = vmor %vm833, %vm834
      %v836 = vsel %vm835, %v828, %v832
      %v837 = vand.u32 2147483647, %v827
      %vm838 = vcmp.eq.f32.partialorder %v837, 8.507059e+37
      %v839 = vand.u32 %v827, 2147483648
      %v840 = vor.u32 1.1754944e-38, %v839
      %v841 = vsel %vm838, %v840, %v836
      %v842 = vmul.f32 1.0, %v841
      %v843 = vtanh.pop %v823
      %845 = vrot.lane.b32.xlu0 %v126, 32
      %v846 = vpop.permute.xlu0 %845
      %v848 = vmul.f32 %v842, %v846
      %850 = vrot.lane.b32.xlu0 %v843, 64
      %v851 = vpop.permute.xlu0 %850
      %v853 = vmul.f32 %v842, %v851
      %855 = vrot.lane.b32.xlu0 %v853, 32
      %v856 = vpop.permute.xlu0 %855
      %v858 = vadd.f32 %v848, %v856
      %v859 = vtanh.pop %v858
      %861 = vrot.lane.b32.xlu0 %v859, 64
      %v862 = vpop.permute.xlu0 %861
      %v864 = vmul.f32 %v842, %v862
      %v865 = vpack.c.bf16 %v864, %v864
      %s866 = scalar_lea.vmem %s5, 32
      %v867 = vld [vmem:[%s866] sm:$0xf]
      %v868 = vld [vmem:[%s866 + $0x4] sm:$0xf]
      %v869 = vld [vmem:[%s866 + $0x8] sm:$0xf]
      %v870 = vld [vmem:[%s866 + $0xc] sm:$0xf]
      %s871 = scalar_lea.vmem %s6, 2
      %v872 = vld [vmem:[%s871] sm:$0x1]
      %v874 = vperm.slane %v872, 0
      %877 = vrot.lane.b32.xlu0 %v865, 32
      %v878 = vpop.permute.xlu0 %877
      %v883 = vunpack.c.l.b16 %v867
      %v884 = vunpack.c.l.b16 %v868
      %v885 = vunpack.c.l.b16 %v869
      %v886 = vunpack.c.l.b16 %v870
      %v887 = vpack.c.b16 %v884, %v883
      %v888 = vpack.c.b16 %v886, %v885
      %v892 = vsel %vm626, %v878, 0
      %894 = vmatpush.bf16.msra.mxu0 0
      %895 = vmatpush.bf16.msra.mxu0 0
      %896 = vmatpush.bf16.msra.mxu0 0
      %897 = vmatpush.bf16.msra.mxu0 0
      %898 = vmatpush.bf16.msra.mxu0 0
      %899 = vmatpush.bf16.msra.mxu0 0
      %900 = vmatpush.bf16.msra.mxu0 %v888
      %901 = vmatpush.bf16.msra.mxu0 %v887
      %902 = vmatmul.bf16.gmra.mxu0 %v892
      %v903 = vpop.f32.mrf.mxu0
      %v904 = vadd.f32 %v874, %v903
      %v905 = vpop.f32.mrf.mxu0
      %906 = vdwg.mxu0
      %v907 = vmax.f32 %v904, 0.0
      %v908 = vpack.c.bf16 %v907, %v907
      %s909 = scalar_lea.vmem [#allocation12], 32
      %v910 = vld [vmem:[%s909] sm:$0xff]
      %v911 = vld [vmem:[%s909 + $0x8] sm:$0xff]
      %v914 = vunpack.c.h.b16 %v910
      %v915 = vunpack.c.h.b16 %v911
      %v916 = vpack.c.b16 %v915, %v914
      %v919 = vsel %vm657, %v908, 0
      %921 = vmatpush.bf16.msra.mxu0 0
      %922 = vmatpush.bf16.msra.mxu0 0
      %923 = vmatpush.bf16.msra.mxu0 0
      %924 = vmatpush.bf16.msra.mxu0 0
      %925 = vmatpush.bf16.msra.mxu0 0
      %926 = vmatpush.bf16.msra.mxu0 0
      %927 = vmatpush.bf16.msra.mxu0 0
      %928 = vmatpush.bf16.msra.mxu0 %v916
      %929 = vmatmul.bf16.gmra.mxu0 %v919
      %v930 = vpop.f32.mrf.mxu0
      %v931 = vadd.f32 0.0, %v930
      %v932 = vpop.f32.mrf.mxu0
      %933 = vdwg.mxu0
      %v934 = vadd.f32 %v684, %v814
      %v935 = vadd.f32 %v934, %v931
      %v936 = vld [vmem:[%s8] sm:$0x1]
      %v938 = vperm.slane %v936, 0
      %v940 = vadd.f32 %v935, %v938
      %s941 = smul.u32 %s127, 8
      %s942 = scalar_lea.vmem [#allocation14], %s941
      %vm943 = vcmask 72704
      %944 = vst.msk [vmem:[%s942] sm:$0xff] %vm943, %v940
      %946 = vrot.lane.b32.xlu0 %v601, 32
      %v947 = vpop.permute.xlu0 %946
      %950 = vrot.lane.b32.xlu0 %v730, 64
      %v951 = vpop.permute.xlu0 %950
      %954 = vrot.lane.b32.xlu0 %v864, 96
      %v955 = vpop.permute.xlu0 %954
      %v957 = vsel %vm626, %v947, %v951
      %v958 = vsel %vm346, %v957, %v955
      %s959 = sadd.s32 %s127, 1
      %s960 = smul.u32 %s959, 4
      %s961 = smul.addr %s960, 4
      %s962 = scalar_lea.vmem [#allocation6], %s961
      %v963 = vld [vmem:[%s962] sm:$0xff]
      %v964 = vld [vmem:[%s962 + $0x8] sm:$0xff]
      %v965 = vpack.c.bf16 %v958, %v958
      %v966 = vld [vmem:[#allocation11] sm:$0xff]
      %v967 = vld [vmem:[#allocation11 + $0x8] sm:$0xf]
      %v968 = vld [vmem:[#allocation11 + $0xc] sm:$0xff]
      %v969 = vld [vmem:[#allocation11 + $0x14] sm:$0xf]
      %v970 = vld [vmem:[#allocation11 + $0x18] sm:$0xff]
      %v971 = vld [vmem:[#allocation11 + $0x20] sm:$0xf]
      %v972 = vld [vmem:[#allocation11 + $0x24] sm:$0xff]
      %v973 = vld [vmem:[#allocation11 + $0x2c] sm:$0xf]
      %v974 = vld [vmem:[#allocation11 + $0x30] sm:$0xff]
      %v975 = vld [vmem:[#allocation11 + $0x38] sm:$0xf]
      %v976 = vld [vmem:[#allocation11 + $0x3c] sm:$0xff]
      %v977 = vld [vmem:[#allocation11 + $0x44] sm:$0xf]
      %v978 = vld [vmem:[#allocation11 + $0x48] sm:$0xff]
      %v979 = vld [vmem:[#allocation11 + $0x50] sm:$0xf]
      %v980 = vld [vmem:[#allocation11 + $0x54] sm:$0xff]
      %v981 = vld [vmem:[#allocation11 + $0x5c] sm:$0xf]
      %v982 = vld [vmem:[#allocation11 + $0x60] sm:$0xff]
      %v983 = vld [vmem:[#allocation11 + $0x68] sm:$0xf]
      %v984 = vld [vmem:[#allocation11 + $0x6c] sm:$0xff]
      %v985 = vld [vmem:[#allocation11 + $0x74] sm:$0xf]
      %v986 = vld [vmem:[#allocation11 + $0x78] sm:$0xff]
      %v987 = vld [vmem:[#allocation11 + $0x80] sm:$0xf]
      %v988 = vld [vmem:[#allocation11 + $0x84] sm:$0xff]
      %v989 = vld [vmem:[#allocation11 + $0x8c] sm:$0xf]
      %v1014 = vunpack.c.l.b16 %v966
      %v1015 = vunpack.c.h.b16 %v966
      %v1016 = vunpack.c.l.b16 %v967
      %v1017 = vunpack.c.l.b16 %v968
      %v1018 = vunpack.c.h.b16 %v968
      %v1019 = vunpack.c.l.b16 %v969
      %v1020 = vunpack.c.l.b16 %v970
      %v1021 = vunpack.c.h.b16 %v970
      %v1022 = vunpack.c.l.b16 %v971
      %v1023 = vunpack.c.l.b16 %v972
      %v1024 = vunpack.c.h.b16 %v972
      %v1025 = vunpack.c.l.b16 %v973
      %v1026 = vunpack.c.l.b16 %v974
      %v1027 = vunpack.c.h.b16 %v974
      %v1028 = vunpack.c.l.b16 %v975
      %v1029 = vunpack.c.l.b16 %v976
      %v1030 = vunpack.c.h.b16 %v976
      %v1031 = vunpack.c.l.b16 %v977
      %v1032 = vunpack.c.l.b16 %v978
      %v1033 = vunpack.c.h.b16 %v978
      %v1034 = vunpack.c.l.b16 %v979
      %v1035 = vunpack.c.l.b16 %v980
      %v1036 = vunpack.c.h.b16 %v980
      %v1037 = vunpack.c.l.b16 %v981
      %v1038 = vunpack.c.l.b16 %v982
      %v1039 = vunpack.c.h.b16 %v982
      %v1040 = vunpack.c.l.b16 %v983
      %v1041 = vunpack.c.l.b16 %v984
      %v1042 = vunpack.c.h.b16 %v984
      %v1043 = vunpack.c.l.b16 %v985
      %v1044 = vunpack.c.l.b16 %v986
      %v1045 = vunpack.c.h.b16 %v986
      %v1046 = vunpack.c.l.b16 %v987
      %v1047 = vunpack.c.l.b16 %v988
      %v1048 = vunpack.c.h.b16 %v988
      %v1049 = vunpack.c.l.b16 %v989
      %v1050 = vpack.c.b16 %v1017, %v1014
      %v1051 = vpack.c.b16 %v1018, %v1015
      %v1052 = vpack.c.b16 %v1019, %v1016
      %v1053 = vpack.c.b16 %v1023, %v1020
      %v1054 = vpack.c.b16 %v1024, %v1021
      %v1055 = vpack.c.b16 %v1025, %v1022
      %v1056 = vpack.c.b16 %v1029, %v1026
      %v1057 = vpack.c.b16 %v1030, %v1027
      %v1058 = vpack.c.b16 %v1031, %v1028
      %v1059 = vpack.c.b16 %v1035, %v1032
      %v1060 = vpack.c.b16 %v1036, %v1033
      %v1061 = vpack.c.b16 %v1037, %v1034
      %v1062 = vpack.c.b16 %v1041, %v1038
      %v1063 = vpack.c.b16 %v1042, %v1039
      %v1064 = vpack.c.b16 %v1043, %v1040
      %v1065 = vpack.c.b16 %v1047, %v1044
      %v1066 = vpack.c.b16 %v1048, %v1045
      %v1067 = vpack.c.b16 %v1049, %v1046
      %v1087 = vsel %vm254, %v965, 0
      %1089 = vmatpush.bf16.msra.mxu0 0
      %1090 = vmatpush.bf16.msra.mxu0 0
      %1091 = vmatpush.bf16.msra.mxu0 %v1065
      %1092 = vmatpush.bf16.msra.mxu0 %v1062
      %1093 = vmatpush.bf16.msra.mxu0 %v1059
      %1094 = vmatpush.bf16.msra.mxu0 %v1056
      %1095 = vmatpush.bf16.msra.mxu0 %v1053
      %1096 = vmatpush.bf16.msra.mxu0 %v1050
      %1097 = vmatmul.bf16.gmra.mxu0 %v1087
      %v1098 = vpop.f32.mrf.mxu0
      %v1099 = vadd.f32 0.0, %v1098
      %v1100 = vpop.f32.mrf.mxu0
      %1101 = vdwg.mxu0
      %1102 = vmatpush.bf16.msra.mxu0 0
      %1103 = vmatpush.bf16.msra.mxu0 0
      %1104 = vmatpush.bf16.msra.mxu0 %v1066
      %1105 = vmatpush.bf16.msra.mxu0 %v1063
      %1106 = vmatpush.bf16.msra.mxu0 %v1060
      %1107 = vmatpush.bf16.msra.mxu0 %v1057
      %1108 = vmatpush.bf16.msra.mxu0 %v1054
      %1109 = vmatpush.bf16.msra.mxu0 %v1051
      %1110 = vmatmul.bf16.gmra.mxu0 %v1087
      %v1111 = vpop.f32.mrf.mxu0
      %v1112 = vadd.f32 0.0, %v1111
      %v1113 = vpop.f32.mrf.mxu0
      %1114 = vdwg.mxu0
      %1115 = vmatpush.bf16.msra.mxu0 0
      %1116 = vmatpush.bf16.msra.mxu0 0
      %1117 = vmatpush.bf16.msra.mxu0 %v1067
      %1118 = vmatpush.bf16.msra.mxu0 %v1064
      %1119 = vmatpush.bf16.msra.mxu0 %v1061
      %1120 = vmatpush.bf16.msra.mxu0 %v1058
      %1121 = vmatpush.bf16.msra.mxu0 %v1055
      %1122 = vmatpush.bf16.msra.mxu0 %v1052
      %1123 = vmatmul.bf16.gmra.mxu0 %v1087
      %v1124 = vpop.f32.mrf.mxu0
      %v1125 = vadd.f32 0.0, %v1124
      %v1126 = vpop.f32.mrf.mxu0
      %1127 = vdwg.mxu0
      %v1128 = vld [vmem:[%s1] sm:$0xff]
      %v1129 = vld [vmem:[%s1 + $0x8] sm:$0xff]
      %v1130 = vld [vmem:[%s1 + $0x10] sm:$0xff]
      %v1131 = vld [vmem:[%s1 + $0x18] sm:$0xff]
      %v1132 = vld [vmem:[%s1 + $0x20] sm:$0xff]
      %v1133 = vld [vmem:[%s1 + $0x28] sm:$0xff]
      %v1134 = vld [vmem:[%s1 + $0x30] sm:$0xff]
      %v1135 = vld [vmem:[%s1 + $0x38] sm:$0xff]
      %v1144 = vunpack.c.l.b16 %v1128
      %v1145 = vunpack.c.h.b16 %v1128
      %v1146 = vunpack.c.l.b16 %v1129
      %v1147 = vunpack.c.h.b16 %v1129
      %v1148 = vunpack.c.l.b16 %v1130
      %v1149 = vunpack.c.h.b16 %v1130
      %v1150 = vunpack.c.l.b16 %v1131
      %v1151 = vunpack.c.h.b16 %v1131
      %v1152 = vunpack.c.l.b16 %v1132
      %v1153 = vunpack.c.h.b16 %v1132
      %v1154 = vunpack.c.l.b16 %v1133
      %v1155 = vunpack.c.h.b16 %v1133
      %v1156 = vunpack.c.l.b16 %v1134
      %v1157 = vunpack.c.h.b16 %v1134
      %v1158 = vunpack.c.l.b16 %v1135
      %v1159 = vunpack.c.h.b16 %v1135
      %v1160 = vpack.c.b16 %v1146, %v1144
      %v1161 = vpack.c.b16 %v1147, %v1145
      %v1162 = vpack.c.b16 %v1150, %v1148
      %v1163 = vpack.c.b16 %v1151, %v1149
      %v1164 = vpack.c.b16 %v1154, %v1152
      %v1165 = vpack.c.b16 %v1155, %v1153
      %v1166 = vpack.c.b16 %v1158, %v1156
      %v1167 = vpack.c.b16 %v1159, %v1157
      %1176 = vmatpush.bf16.msra.mxu0 0
      %1177 = vmatpush.bf16.msra.mxu0 0
      %1178 = vmatpush.bf16.msra.mxu0 0
      %1179 = vmatpush.bf16.msra.mxu0 0
      %1180 = vmatpush.bf16.msra.mxu0 %v1166
      %1181 = vmatpush.bf16.msra.mxu0 %v1164
      %1182 = vmatpush.bf16.msra.mxu0 %v1162
      %1183 = vmatpush.bf16.msra.mxu0 %v1160
      %1184 = vmatmul.bf16.gmra.mxu0 %v517
      %v1185 = vpop.f32.mrf.mxu0
      %v1186 = vadd.f32 0.0, %v1185
      %v1187 = vpop.f32.mrf.mxu0
      %1188 = vdwg.mxu0
      %1189 = vmatpush.bf16.msra.mxu0 0
      %1190 = vmatpush.bf16.msra.mxu0 0
      %1191 = vmatpush.bf16.msra.mxu0 0
      %1192 = vmatpush.bf16.msra.mxu0 0
      %1193 = vmatpush.bf16.msra.mxu0 %v1167
      %1194 = vmatpush.bf16.msra.mxu0 %v1165
      %1195 = vmatpush.bf16.msra.mxu0 %v1163
      %1196 = vmatpush.bf16.msra.mxu0 %v1161
      %1197 = vmatmul.bf16.gmra.mxu0 %v517
      %v1198 = vpop.f32.mrf.mxu0
      %v1199 = vadd.f32 0.0, %v1198
      %v1200 = vpop.f32.mrf.mxu0
      %1201 = vdwg.mxu0
      %v1202 = vunpack.c.l.bf16 %v963
      %v1203 = vunpack.c.h.bf16 %v963
      %v1204 = vadd.f32 %v1202, %v1186
      %v1205 = vadd.f32 %v1203, %v1199
      %v1206 = vxor.u32 %v1204, 2147483648
      %v1207 = vmul.f32 %v1206, 1.442695
      %v1208 = vpow.pop %v1207
      %v1209 = vadd.f32 %v1208, 1.0
      %v1210 = vrcp.pop %v1209
      %v1211 = vmul.f32 %v1209, %v1210
      %v1212 = vsub.f32 1.0, %v1211
      %v1213 = vmul.f32 %v1210, %v1212
      %v1214 = vadd.f32 %v1210, %v1213
      %vm1215 = vweird.f32 %v1209
      %vm1216 = vweird.f32 %v1210
      %vm1217 = vmor %vm1215, %vm1216
      %v1218 = vsel %vm1217, %v1210, %v1214
      %v1219 = vand.u32 2147483647, %v1209
      %vm1220 = vcmp.eq.f32.partialorder %v1219, 8.507059e+37
      %v1221 = vand.u32 %v1209, 2147483648
      %v1222 = vor.u32 1.1754944e-38, %v1221
      %v1223 = vsel %vm1220, %v1222, %v1218
      %v1224 = vmul.f32 1.0, %v1223
      %v1225 = vtanh.pop %v1205
      %v1226 = vxor.u32 %v1205, 2147483648
      %v1227 = vmul.f32 %v1226, 1.442695
      %v1228 = vpow.pop %v1227
      %v1229 = vadd.f32 %v1228, 1.0
      %v1230 = vrcp.pop %v1229
      %v1231 = vmul.f32 %v1229, %v1230
      %v1232 = vsub.f32 1.0, %v1231
      %v1233 = vmul.f32 %v1230, %v1232
      %v1234 = vadd.f32 %v1230, %v1233
      %vm1235 = vweird.f32 %v1229
      %vm1236 = vweird.f32 %v1230
      %vm1237 = vmor %vm1235, %vm1236
      %v1238 = vsel %vm1237, %v1230, %v1234
      %v1239 = vand.u32 2147483647, %v1229
      %vm1240 = vcmp.eq.f32.partialorder %v1239, 8.507059e+37
      %v1241 = vand.u32 %v1229, 2147483648
      %v1242 = vor.u32 1.1754944e-38, %v1241
      %v1243 = vsel %vm1240, %v1242, %v1238
      %v1244 = vmul.f32 1.0, %v1243
      %v1245 = vmul.f32 %v1224, %v429
      %v1246 = vmul.f32 %v1224, %v1225
      %1248 = vrot.lane.b32.xlu0 %v1246, 64
      %v1249 = vpop.permute.xlu0 %1248
      %v1251 = vadd.f32 %v1245, %v1249
      %v1252 = vtanh.pop %v1251
      %v1253 = vmul.f32 %v1244, %v1252
      %v1254 = vpack.c.bf16 %v1253, %v1253
      %v1255 = vld [vmem:[#allocation9] sm:$0xff]
      %v1256 = vld [vmem:[#allocation9 + $0x8] sm:$0xf]
      %v1257 = vld [vmem:[#allocation9 + $0xc] sm:$0xff]
      %v1258 = vld [vmem:[#allocation9 + $0x14] sm:$0xf]
      %v1259 = vld [vmem:[#allocation9 + $0x18] sm:$0xff]
      %v1260 = vld [vmem:[#allocation9 + $0x20] sm:$0xf]
      %v1261 = vld [vmem:[#allocation9 + $0x24] sm:$0xff]
      %v1262 = vld [vmem:[#allocation9 + $0x2c] sm:$0xf]
      %v1263 = vld [vmem:[#allocation9 + $0x30] sm:$0xff]
      %v1264 = vld [vmem:[#allocation9 + $0x38] sm:$0xf]
      %v1265 = vld [vmem:[#allocation9 + $0x3c] sm:$0xff]
      %v1266 = vld [vmem:[#allocation9 + $0x44] sm:$0xf]
      %v1267 = vld [vmem:[#allocation9 + $0x48] sm:$0xff]
      %v1268 = vld [vmem:[#allocation9 + $0x50] sm:$0xf]
      %v1269 = vld [vmem:[#allocation9 + $0x54] sm:$0xff]
      %v1270 = vld [vmem:[#allocation9 + $0x5c] sm:$0xf]
      %1272 = vrot.lane.b32.xlu0 %v1254, 64
      %v1273 = vpop.permute.xlu0 %1272
      %v1290 = vunpack.c.l.b16 %v1255
      %v1291 = vunpack.c.h.b16 %v1255
      %v1292 = vunpack.c.l.b16 %v1256
      %v1293 = vunpack.c.l.b16 %v1257
      %v1294 = vunpack.c.h.b16 %v1257
      %v1295 = vunpack.c.l.b16 %v1258
      %v1296 = vunpack.c.l.b16 %v1259
      %v1297 = vunpack.c.h.b16 %v1259
      %v1298 = vunpack.c.l.b16 %v1260
      %v1299 = vunpack.c.l.b16 %v1261
      %v1300 = vunpack.c.h.b16 %v1261
      %v1301 = vunpack.c.l.b16 %v1262
      %v1302 = vunpack.c.l.b16 %v1263
      %v1303 = vunpack.c.h.b16 %v1263
      %v1304 = vunpack.c.l.b16 %v1264
      %v1305 = vunpack.c.l.b16 %v1265
      %v1306 = vunpack.c.h.b16 %v1265
      %v1307 = vunpack.c.l.b16 %v1266
      %v1308 = vunpack.c.l.b16 %v1267
      %v1309 = vunpack.c.h.b16 %v1267
      %v1310 = vunpack.c.l.b16 %v1268
      %v1311 = vunpack.c.l.b16 %v1269
      %v1312 = vunpack.c.h.b16 %v1269
      %v1313 = vunpack.c.l.b16 %v1270
      %v1314 = vpack.c.b16 %v1293, %v1290
      %v1315 = vpack.c.b16 %v1294, %v1291
      %v1316 = vpack.c.b16 %v1295, %v1292
      %v1317 = vpack.c.b16 %v1299, %v1296
      %v1318 = vpack.c.b16 %v1300, %v1297
      %v1319 = vpack.c.b16 %v1301, %v1298
      %v1320 = vpack.c.b16 %v1305, %v1302
      %v1321 = vpack.c.b16 %v1306, %v1303
      %v1322 = vpack.c.b16 %v1307, %v1304
      %v1323 = vpack.c.b16 %v1311, %v1308
      %v1324 = vpack.c.b16 %v1312, %v1309
      %v1325 = vpack.c.b16 %v1313, %v1310
      %v1339 = vsel %vm346, %v1273, 0
      %1341 = vmatpush.bf16.msra.mxu0 0
      %1342 = vmatpush.bf16.msra.mxu0 0
      %1343 = vmatpush.bf16.msra.mxu0 0
      %1344 = vmatpush.bf16.msra.mxu0 0
      %1345 = vmatpush.bf16.msra.mxu0 %v1323
      %1346 = vmatpush.bf16.msra.mxu0 %v1320
      %1347 = vmatpush.bf16.msra.mxu0 %v1317
      %1348 = vmatpush.bf16.msra.mxu0 %v1314
      %1349 = vmatmul.bf16.gmra.mxu0 %v1339
      %v1350 = vpop.f32.mrf.mxu0
      %v1351 = vadd.f32 0.0, %v1350
      %v1352 = vpop.f32.mrf.mxu0
      %1353 = vdwg.mxu0
      %1354 = vmatpush.bf16.msra.mxu0 0
      %1355 = vmatpush.bf16.msra.mxu0 0
      %1356 = vmatpush.bf16.msra.mxu0 0
      %1357 = vmatpush.bf16.msra.mxu0 0
      %1358 = vmatpush.bf16.msra.mxu0 %v1324
      %1359 = vmatpush.bf16.msra.mxu0 %v1321
      %1360 = vmatpush.bf16.msra.mxu0 %v1318
      %1361 = vmatpush.bf16.msra.mxu0 %v1315
      %1362 = vmatmul.bf16.gmra.mxu0 %v1339
      %v1363 = vpop.f32.mrf.mxu0
      %v1364 = vadd.f32 0.0, %v1363
      %v1365 = vpop.f32.mrf.mxu0
      %1366 = vdwg.mxu0
      %1367 = vmatpush.bf16.msra.mxu0 0
      %1368 = vmatpush.bf16.msra.mxu0 0
      %1369 = vmatpush.bf16.msra.mxu0 0
      %1370 = vmatpush.bf16.msra.mxu0 0
      %1371 = vmatpush.bf16.msra.mxu0 %v1325
      %1372 = vmatpush.bf16.msra.mxu0 %v1322
      %1373 = vmatpush.bf16.msra.mxu0 %v1319
      %1374 = vmatpush.bf16.msra.mxu0 %v1316
      %1375 = vmatmul.bf16.gmra.mxu0 %v1339
      %v1376 = vpop.f32.mrf.mxu0
      %v1377 = vadd.f32 0.0, %v1376
      %v1378 = vpop.f32.mrf.mxu0
      %1379 = vdwg.mxu0
      %v1380 = vunpack.c.l.bf16 %v964
      %v1381 = vadd.f32 %v1380, %v1351
      %v1382 = vadd.f32 %v1381, %v1099
      %v1383 = vxor.u32 %v1382, 2147483648
      %v1384 = vmul.f32 %v1383, 1.442695
      %v1385 = vpow.pop %v1384
      %v1386 = vadd.f32 %v1385, 1.0
      %v1387 = vrcp.pop %v1386
      %v1388 = vmul.f32 %v1386, %v1387
      %v1389 = vsub.f32 1.0, %v1388
      %v1390 = vmul.f32 %v1387, %v1389
      %v1391 = vadd.f32 %v1387, %v1390
      %vm1392 = vweird.f32 %v1386
      %vm1393 = vweird.f32 %v1387
      %vm1394 = vmor %vm1392, %vm1393
      %v1395 = vsel %vm1394, %v1387, %v1391
      %v1396 = vand.u32 2147483647, %v1386
      %vm1397 = vcmp.eq.f32.partialorder %v1396, 8.507059e+37
      %v1398 = vand.u32 %v1386, 2147483648
      %v1399 = vor.u32 1.1754944e-38, %v1398
      %v1400 = vsel %vm1397, %v1399, %v1395
      %v1401 = vmul.f32 1.0, %v1400
      %v1402 = vtanh.pop %v1382
      %v1403 = vmul.f32 %v1401, %v595
      %1405 = vrot.lane.b32.xlu0 %v1402, 64
      %v1406 = vpop.permute.xlu0 %1405
      %v1408 = vmul.f32 %v1401, %v1406
      %1410 = vrot.lane.b32.xlu0 %v1408, 32
      %v1411 = vpop.permute.xlu0 %1410
      %v1413 = vadd.f32 %v1403, %v1411
      %v1414 = vtanh.pop %v1413
      %1416 = vrot.lane.b32.xlu0 %v1414, 64
      %v1417 = vpop.permute.xlu0 %1416
      %v1419 = vmul.f32 %v1401, %v1417
      %v1420 = vpack.c.bf16 %v1419, %v1419
      %v1421 = vld [vmem:[%s5] sm:$0xf]
      %v1422 = vld [vmem:[%s5 + $0x4] sm:$0xf]
      %v1423 = vld [vmem:[%s5 + $0x8] sm:$0xf]
      %v1424 = vld [vmem:[%s5 + $0xc] sm:$0xf]
      %v1425 = vld [vmem:[%s6] sm:$0x1]
      %v1427 = vperm.slane %v1425, 0
      %1430 = vrot.lane.b32.xlu0 %v1420, 32
      %v1431 = vpop.permute.xlu0 %1430
      %v1436 = vunpack.c.l.b16 %v1421
      %v1437 = vunpack.c.l.b16 %v1422
      %v1438 = vunpack.c.l.b16 %v1423
      %v1439 = vunpack.c.l.b16 %v1424
      %v1440 = vpack.c.b16 %v1437, %v1436
      %v1441 = vpack.c.b16 %v1439, %v1438
      %v1445 = vsel %vm626, %v1431, 0
      %1447 = vmatpush.bf16.msra.mxu0 0
      %1448 = vmatpush.bf16.msra.mxu0 0
      %1449 = vmatpush.bf16.msra.mxu0 0
      %1450 = vmatpush.bf16.msra.mxu0 0
      %1451 = vmatpush.bf16.msra.mxu0 0
      %1452 = vmatpush.bf16.msra.mxu0 0
      %1453 = vmatpush.bf16.msra.mxu0 %v1441
      %1454 = vmatpush.bf16.msra.mxu0 %v1440
      %1455 = vmatmul.bf16.gmra.mxu0 %v1445
      %v1456 = vpop.f32.mrf.mxu0
      %v1457 = vadd.f32 %v1427, %v1456
      %v1458 = vpop.f32.mrf.mxu0
      %1459 = vdwg.mxu0
      %v1460 = vmax.f32 %v1457, 0.0
      %v1461 = vpack.c.bf16 %v1460, %v1460
      %v1462 = vld [vmem:[#allocation12] sm:$0xff]
      %v1463 = vld [vmem:[#allocation12 + $0x8] sm:$0xff]
      %v1466 = vunpack.c.l.b16 %v1462
      %v1467 = vunpack.c.h.b16 %v1462
      %v1468 = vunpack.c.l.b16 %v1463
      %v1469 = vunpack.c.h.b16 %v1463
      %v1470 = vpack.c.b16 %v1468, %v1466
      %v1471 = vpack.c.b16 %v1469, %v1467
      %v1475 = vsel %vm657, %v1461, 0
      %1477 = vmatpush.bf16.msra.mxu0 0
      %1478 = vmatpush.bf16.msra.mxu0 0
      %1479 = vmatpush.bf16.msra.mxu0 0
      %1480 = vmatpush.bf16.msra.mxu0 0
      %1481 = vmatpush.bf16.msra.mxu0 0
      %1482 = vmatpush.bf16.msra.mxu0 0
      %1483 = vmatpush.bf16.msra.mxu0 0
      %1484 = vmatpush.bf16.msra.mxu0 %v1470
      %1485 = vmatmul.bf16.gmra.mxu0 %v1475
      %v1486 = vpop.f32.mrf.mxu0
      %v1487 = vadd.f32 0.0, %v1486
      %v1488 = vpop.f32.mrf.mxu0
      %1489 = vdwg.mxu0
      %1490 = vmatpush.bf16.msra.mxu0 0
      %1491 = vmatpush.bf16.msra.mxu0 0
      %1492 = vmatpush.bf16.msra.mxu0 0
      %1493 = vmatpush.bf16.msra.mxu0 0
      %1494 = vmatpush.bf16.msra.mxu0 0
      %1495 = vmatpush.bf16.msra.mxu0 0
      %1496 = vmatpush.bf16.msra.mxu0 0
      %1497 = vmatpush.bf16.msra.mxu0 %v1471
      %1498 = vmatmul.bf16.gmra.mxu0 %v1475
      %v1499 = vpop.f32.mrf.mxu0
      %v1500 = vadd.f32 0.0, %v1499
      %v1501 = vpop.f32.mrf.mxu0
      %1502 = vdwg.mxu0
      %v1504 = vrot.slane %v964, 4
      %v1506 = vunpack.c.l.bf16 %v1504
      %v1507 = vadd.f32 %v1506, %v1364
      %v1508 = vadd.f32 %v1507, %v1112
      %v1509 = vadd.f32 %v1508, %v1487
      %v1510 = vxor.u32 %v1509, 2147483648
      %v1511 = vmul.f32 %v1510, 1.442695
      %v1512 = vpow.pop %v1511
      %v1513 = vadd.f32 %v1512, 1.0
      %v1514 = vrcp.pop %v1513
      %v1515 = vmul.f32 %v1513, %v1514
      %v1516 = vsub.f32 1.0, %v1515
      %v1517 = vmul.f32 %v1514, %v1516
      %v1518 = vadd.f32 %v1514, %v1517
      %vm1519 = vweird.f32 %v1513
      %vm1520 = vweird.f32 %v1514
      %vm1521 = vmor %vm1519, %vm1520
      %v1522 = vsel %vm1521, %v1514, %v1518
      %v1523 = vand.u32 2147483647, %v1513
      %vm1524 = vcmp.eq.f32.partialorder %v1523, 8.507059e+37
      %v1525 = vand.u32 %v1513, 2147483648
      %v1526 = vor.u32 1.1754944e-38, %v1525
      %v1527 = vsel %vm1524, %v1526, %v1522
      %v1528 = vmul.f32 1.0, %v1527
      %v1529 = vtanh.pop %v1509
      %v1530 = vmul.f32 %v1528, %v724
      %1532 = vrot.lane.b32.xlu0 %v1529, 64
      %v1533 = vpop.permute.xlu0 %1532
      %v1535 = vmul.f32 %v1528, %v1533
      %1537 = vrot.lane.b32.xlu0 %v1535, 32
      %v1538 = vpop.permute.xlu0 %1537
      %v1540 = vadd.f32 %v1530, %v1538
      %v1541 = vtanh.pop %v1540
      %1543 = vrot.lane.b32.xlu0 %v1541, 64
      %v1544 = vpop.permute.xlu0 %1543
      %v1546 = vmul.f32 %v1528, %v1544
      %v1547 = vpack.c.bf16 %v1546, %v1546
      %v1548 = vld [vmem:[%s732] sm:$0xf]
      %v1549 = vld [vmem:[%s732 + $0x4] sm:$0xf]
      %v1550 = vld [vmem:[%s732 + $0x8] sm:$0xf]
      %v1551 = vld [vmem:[%s732 + $0xc] sm:$0xf]
      %v1552 = vld [vmem:[%s737] sm:$0x1]
      %v1554 = vperm.slane %v1552, 0
      %1557 = vrot.lane.b32.xlu0 %v1547, 32
      %v1558 = vpop.permute.xlu0 %1557
      %v1563 = vunpack.c.l.b16 %v1548
      %v1564 = vunpack.c.l.b16 %v1549
      %v1565 = vunpack.c.l.b16 %v1550
      %v1566 = vunpack.c.l.b16 %v1551
      %v1567 = vpack.c.b16 %v1564, %v1563
      %v1568 = vpack.c.b16 %v1566, %v1565
      %v1572 = vsel %vm626, %v1558, 0
      %1574 = vmatpush.bf16.msra.mxu0 0
      %1575 = vmatpush.bf16.msra.mxu0 0
      %1576 = vmatpush.bf16.msra.mxu0 0
      %1577 = vmatpush.bf16.msra.mxu0 0
      %1578 = vmatpush.bf16.msra.mxu0 0
      %1579 = vmatpush.bf16.msra.mxu0 0
      %1580 = vmatpush.bf16.msra.mxu0 %v1568
      %1581 = vmatpush.bf16.msra.mxu0 %v1567
      %1582 = vmatmul.bf16.gmra.mxu0 %v1572
      %v1583 = vpop.f32.mrf.mxu0
      %v1584 = vadd.f32 %v1554, %v1583
      %v1585 = vpop.f32.mrf.mxu0
      %1586 = vdwg.mxu0
      %v1587 = vmax.f32 %v1584, 0.0
      %v1588 = vpack.c.bf16 %v1587, %v1587
      %v1589 = vld [vmem:[%s775] sm:$0xff]
      %v1590 = vld [vmem:[%s775 + $0x8] sm:$0xff]
      %v1593 = vunpack.c.l.b16 %v1589
      %v1594 = vunpack.c.h.b16 %v1589
      %v1595 = vunpack.c.l.b16 %v1590
      %v1596 = vunpack.c.h.b16 %v1590
      %v1597 = vpack.c.b16 %v1595, %v1593
      %v1598 = vpack.c.b16 %v1596, %v1594
      %v1602 = vsel %vm657, %v1588, 0
      %1604 = vmatpush.bf16.msra.mxu0 0
      %1605 = vmatpush.bf16.msra.mxu0 0
      %1606 = vmatpush.bf16.msra.mxu0 0
      %1607 = vmatpush.bf16.msra.mxu0 0
      %1608 = vmatpush.bf16.msra.mxu0 0
      %1609 = vmatpush.bf16.msra.mxu0 0
      %1610 = vmatpush.bf16.msra.mxu0 0
      %1611 = vmatpush.bf16.msra.mxu0 %v1597
      %1612 = vmatmul.bf16.gmra.mxu0 %v1602
      %v1613 = vpop.f32.mrf.mxu0
      %v1614 = vadd.f32 0.0, %v1613
      %v1615 = vpop.f32.mrf.mxu0
      %1616 = vdwg.mxu0
      %1617 = vmatpush.bf16.msra.mxu0 0
      %1618 = vmatpush.bf16.msra.mxu0 0
      %1619 = vmatpush.bf16.msra.mxu0 0
      %1620 = vmatpush.bf16.msra.mxu0 0
      %1621 = vmatpush.bf16.msra.mxu0 0
      %1622 = vmatpush.bf16.msra.mxu0 0
      %1623 = vmatpush.bf16.msra.mxu0 0
      %1624 = vmatpush.bf16.msra.mxu0 %v1598
      %1625 = vmatmul.bf16.gmra.mxu0 %v1602
      %v1626 = vpop.f32.mrf.mxu0
      %v1627 = vadd.f32 0.0, %v1626
      %v1628 = vpop.f32.mrf.mxu0
      %1629 = vdwg.mxu0
      %v1630 = vld [vmem:[%s4] sm:$0x1]
      %v1632 = vperm.slane %v1630, 0
      %v1634 = vadd.f32 %v1632, %v1377
      %v1635 = vadd.f32 %v1634, %v1125
      %v1636 = vadd.f32 %v1635, %v1614
      %v1637 = vxor.u32 %v1636, 2147483648
      %v1638 = vmul.f32 %v1637, 1.442695
      %v1639 = vpow.pop %v1638
      %v1640 = vadd.f32 %v1639, 1.0
      %v1641 = vrcp.pop %v1640
      %v1642 = vmul.f32 %v1640, %v1641
      %v1643 = vsub.f32 1.0, %v1642
      %v1644 = vmul.f32 %v1641, %v1643
      %v1645 = vadd.f32 %v1641, %v1644
      %vm1646 = vweird.f32 %v1640
      %vm1647 = vweird.f32 %v1641
      %vm1648 = vmor %vm1646, %vm1647
      %v1649 = vsel %vm1648, %v1641, %v1645
      %v1650 = vand.u32 2147483647, %v1640
      %vm1651 = vcmp.eq.f32.partialorder %v1650, 8.507059e+37
      %v1652 = vand.u32 %v1640, 2147483648
      %v1653 = vor.u32 1.1754944e-38, %v1652
      %v1654 = vsel %vm1651, %v1653, %v1649
      %v1655 = vmul.f32 1.0, %v1654
      %v1656 = vtanh.pop %v1636
      %v1657 = vmul.f32 %v1655, %v858
      %1659 = vrot.lane.b32.xlu0 %v1656, 64
      %v1660 = vpop.permute.xlu0 %1659
      %v1662 = vmul.f32 %v1655, %v1660
      %1664 = vrot.lane.b32.xlu0 %v1662, 32
      %v1665 = vpop.permute.xlu0 %1664
      %v1667 = vadd.f32 %v1657, %v1665
      %v1668 = vtanh.pop %v1667
      %1670 = vrot.lane.b32.xlu0 %v1668, 64
      %v1671 = vpop.permute.xlu0 %1670
      %v1673 = vmul.f32 %v1655, %v1671
      %v1674 = vpack.c.bf16 %v1673, %v1673
      %v1675 = vld [vmem:[%s866] sm:$0xf]
      %v1676 = vld [vmem:[%s866 + $0x4] sm:$0xf]
      %v1677 = vld [vmem:[%s866 + $0x8] sm:$0xf]
      %v1678 = vld [vmem:[%s866 + $0xc] sm:$0xf]
      %v1679 = vld [vmem:[%s871] sm:$0x1]
      %v1681 = vperm.slane %v1679, 0
      %1684 = vrot.lane.b32.xlu0 %v1674, 32
      %v1685 = vpop.permute.xlu0 %1684
      %v1690 = vunpack.c.l.b16 %v1675
      %v1691 = vunpack.c.l.b16 %v1676
      %v1692 = vunpack.c.l.b16 %v1677
      %v1693 = vunpack.c.l.b16 %v1678
      %v1694 = vpack.c.b16 %v1691, %v1690
      %v1695 = vpack.c.b16 %v1693, %v1692
      %v1699 = vsel %vm626, %v1685, 0
      %1701 = vmatpush.bf16.msra.mxu0 0
      %1702 = vmatpush.bf16.msra.mxu0 0
      %1703 = vmatpush.bf16.msra.mxu0 0
      %1704 = vmatpush.bf16.msra.mxu0 0
      %1705 = vmatpush.bf16.msra.mxu0 0
      %1706 = vmatpush.bf16.msra.mxu0 0
      %1707 = vmatpush.bf16.msra.mxu0 %v1695
      %1708 = vmatpush.bf16.msra.mxu0 %v1694
      %1709 = vmatmul.bf16.gmra.mxu0 %v1699
      %v1710 = vpop.f32.mrf.mxu0
      %v1711 = vadd.f32 %v1681, %v1710
      %v1712 = vpop.f32.mrf.mxu0
      %1713 = vdwg.mxu0
      %v1714 = vmax.f32 %v1711, 0.0
      %v1715 = vpack.c.bf16 %v1714, %v1714
      %v1716 = vld [vmem:[%s909] sm:$0xff]
      %v1717 = vld [vmem:[%s909 + $0x8] sm:$0xff]
      %v1720 = vunpack.c.h.b16 %v1716
      %v1721 = vunpack.c.h.b16 %v1717
      %v1722 = vpack.c.b16 %v1721, %v1720
      %v1725 = vsel %vm657, %v1715, 0
      %1727 = vmatpush.bf16.msra.mxu0 0
      %1728 = vmatpush.bf16.msra.mxu0 0
      %1729 = vmatpush.bf16.msra.mxu0 0
      %1730 = vmatpush.bf16.msra.mxu0 0
      %1731 = vmatpush.bf16.msra.mxu0 0
      %1732 = vmatpush.bf16.msra.mxu0 0
      %1733 = vmatpush.bf16.msra.mxu0 0
      %1734 = vmatpush.bf16.msra.mxu0 %v1722
      %1735 = vmatmul.bf16.gmra.mxu0 %v1725
      %v1736 = vpop.f32.mrf.mxu0
      %v1737 = vadd.f32 0.0, %v1736
      %v1738 = vpop.f32.mrf.mxu0
      %1739 = vdwg.mxu0
      %v1740 = vadd.f32 %v1500, %v1627
      %v1741 = vadd.f32 %v1740, %v1737
      %v1742 = vld [vmem:[%s8] sm:$0x1]
      %v1744 = vperm.slane %v1742, 0
      %v1746 = vadd.f32 %v1741, %v1744
      %s1747 = smul.u32 %s959, 8
      %s1748 = scalar_lea.vmem [#allocation14], %s1747
      %1749 = vst.msk [vmem:[%s1748] sm:$0xff] %vm943, %v1746
      %1751 = vrot.lane.b32.xlu0 %v1419, 32
      %v1752 = vpop.permute.xlu0 %1751
      %1755 = vrot.lane.b32.xlu0 %v1546, 64
      %v1756 = vpop.permute.xlu0 %1755
      %1759 = vrot.lane.b32.xlu0 %v1673, 96
      %v1760 = vpop.permute.xlu0 %1759
      %v1762 = vsel %vm626, %v1752, %v1756
      %v1763 = vsel %vm346, %v1762, %v1760
      %s1764 = sadd.s32 %s127, 2
      %s1765 = smul.u32 %s1764, 4
      %s1766 = smul.addr %s1765, 4
      %s1767 = scalar_lea.vmem [#allocation6], %s1766
      %v1768 = vld [vmem:[%s1767] sm:$0xff]
      %v1769 = vld [vmem:[%s1767 + $0x8] sm:$0xff]
      %v1770 = vpack.c.bf16 %v1763, %v1763
      %v1771 = vld [vmem:[#allocation11] sm:$0xff]
      %v1772 = vld [vmem:[#allocation11 + $0x8] sm:$0xf]
      %v1773 = vld [vmem:[#allocation11 + $0xc] sm:$0xff]
      %v1774 = vld [vmem:[#allocation11 + $0x14] sm:$0xf]
      %v1775 = vld [vmem:[#allocation11 + $0x18] sm:$0xff]
      %v1776 = vld [vmem:[#allocation11 + $0x20] sm:$0xf]
      %v1777 = vld [vmem:[#allocation11 + $0x24] sm:$0xff]
      %v1778 = vld [vmem:[#allocation11 + $0x2c] sm:$0xf]
      %v1779 = vld [vmem:[#allocation11 + $0x30] sm:$0xff]
      %v1780 = vld [vmem:[#allocation11 + $0x38] sm:$0xf]
      %v1781 = vld [vmem:[#allocation11 + $0x3c] sm:$0xff]
      %v1782 = vld [vmem:[#allocation11 + $0x44] sm:$0xf]
      %v1783 = vld [vmem:[#allocation11 + $0x48] sm:$0xff]
      %v1784 = vld [vmem:[#allocation11 + $0x50] sm:$0xf]
      %v1785 = vld [vmem:[#allocation11 + $0x54] sm:$0xff]
      %v1786 = vld [vmem:[#allocation11 + $0x5c] sm:$0xf]
      %v1787 = vld [vmem:[#allocation11 + $0x60] sm:$0xff]
      %v1788 = vld [vmem:[#allocation11 + $0x68] sm:$0xf]
      %v1789 = vld [vmem:[#allocation11 + $0x6c] sm:$0xff]
      %v1790 = vld [vmem:[#allocation11 + $0x74] sm:$0xf]
      %v1791 = vld [vmem:[#allocation11 + $0x78] sm:$0xff]
      %v1792 = vld [vmem:[#allocation11 + $0x80] sm:$0xf]
      %v1793 = vld [vmem:[#allocation11 + $0x84] sm:$0xff]
      %v1794 = vld [vmem:[#allocation11 + $0x8c] sm:$0xf]
      %v1819 = vunpack.c.l.b16 %v1771
      %v1820 = vunpack.c.h.b16 %v1771
      %v1821 = vunpack.c.l.b16 %v1772
      %v1822 = vunpack.c.l.b16 %v1773
      %v1823 = vunpack.c.h.b16 %v1773
      %v1824 = vunpack.c.l.b16 %v1774
      %v1825 = vunpack.c.l.b16 %v1775
      %v1826 = vunpack.c.h.b16 %v1775
      %v1827 = vunpack.c.l.b16 %v1776
      %v1828 = vunpack.c.l.b16 %v1777
      %v1829 = vunpack.c.h.b16 %v1777
      %v1830 = vunpack.c.l.b16 %v1778
      %v1831 = vunpack.c.l.b16 %v1779
      %v1832 = vunpack.c.h.b16 %v1779
      %v1833 = vunpack.c.l.b16 %v1780
      %v1834 = vunpack.c.l.b16 %v1781
      %v1835 = vunpack.c.h.b16 %v1781
      %v1836 = vunpack.c.l.b16 %v1782
      %v1837 = vunpack.c.l.b16 %v1783
      %v1838 = vunpack.c.h.b16 %v1783
      %v1839 = vunpack.c.l.b16 %v1784
      %v1840 = vunpack.c.l.b16 %v1785
      %v1841 = vunpack.c.h.b16 %v1785
      %v1842 = vunpack.c.l.b16 %v1786
      %v1843 = vunpack.c.l.b16 %v1787
      %v1844 = vunpack.c.h.b16 %v1787
      %v1845 = vunpack.c.l.b16 %v1788
      %v1846 = vunpack.c.l.b16 %v1789
      %v1847 = vunpack.c.h.b16 %v1789
      %v1848 = vunpack.c.l.b16 %v1790
      %v1849 = vunpack.c.l.b16 %v1791
      %v1850 = vunpack.c.h.b16 %v1791
      %v1851 = vunpack.c.l.b16 %v1792
      %v1852 = vunpack.c.l.b16 %v1793
      %v1853 = vunpack.c.h.b16 %v1793
      %v1854 = vunpack.c.l.b16 %v1794
      %v1855 = vpack.c.b16 %v1822, %v1819
      %v1856 = vpack.c.b16 %v1823, %v1820
      %v1857 = vpack.c.b16 %v1824, %v1821
      %v1858 = vpack.c.b16 %v1828, %v1825
      %v1859 = vpack.c.b16 %v1829, %v1826
      %v1860 = vpack.c.b16 %v1830, %v1827
      %v1861 = vpack.c.b16 %v1834, %v1831
      %v1862 = vpack.c.b16 %v1835, %v1832
      %v1863 = vpack.c.b16 %v1836, %v1833
      %v1864 = vpack.c.b16 %v1840, %v1837
      %v1865 = vpack.c.b16 %v1841, %v1838
      %v1866 = vpack.c.b16 %v1842, %v1839
      %v1867 = vpack.c.b16 %v1846, %v1843
      %v1868 = vpack.c.b16 %v1847, %v1844
      %v1869 = vpack.c.b16 %v1848, %v1845
      %v1870 = vpack.c.b16 %v1852, %v1849
      %v1871 = vpack.c.b16 %v1853, %v1850
      %v1872 = vpack.c.b16 %v1854, %v1851
      %v1892 = vsel %vm254, %v1770, 0
      %1894 = vmatpush.bf16.msra.mxu0 0
      %1895 = vmatpush.bf16.msra.mxu0 0
      %1896 = vmatpush.bf16.msra.mxu0 %v1870
      %1897 = vmatpush.bf16.msra.mxu0 %v1867
      %1898 = vmatpush.bf16.msra.mxu0 %v1864
      %1899 = vmatpush.bf16.msra.mxu0 %v1861
      %1900 = vmatpush.bf16.msra.mxu0 %v1858
      %1901 = vmatpush.bf16.msra.mxu0 %v1855
      %1902 = vmatmul.bf16.gmra.mxu0 %v1892
      %v1903 = vpop.f32.mrf.mxu0
      %v1904 = vadd.f32 0.0, %v1903
      %v1905 = vpop.f32.mrf.mxu0
      %1906 = vdwg.mxu0
      %1907 = vmatpush.bf16.msra.mxu0 0
      %1908 = vmatpush.bf16.msra.mxu0 0
      %1909 = vmatpush.bf16.msra.mxu0 %v1871
      %1910 = vmatpush.bf16.msra.mxu0 %v1868
      %1911 = vmatpush.bf16.msra.mxu0 %v1865
      %1912 = vmatpush.bf16.msra.mxu0 %v1862
      %1913 = vmatpush.bf16.msra.mxu0 %v1859
      %1914 = vmatpush.bf16.msra.mxu0 %v1856
      %1915 = vmatmul.bf16.gmra.mxu0 %v1892
      %v1916 = vpop.f32.mrf.mxu0
      %v1917 = vadd.f32 0.0, %v1916
      %v1918 = vpop.f32.mrf.mxu0
      %1919 = vdwg.mxu0
      %1920 = vmatpush.bf16.msra.mxu0 0
      %1921 = vmatpush.bf16.msra.mxu0 0
      %1922 = vmatpush.bf16.msra.mxu0 %v1872
      %1923 = vmatpush.bf16.msra.mxu0 %v1869
      %1924 = vmatpush.bf16.msra.mxu0 %v1866
      %1925 = vmatpush.bf16.msra.mxu0 %v1863
      %1926 = vmatpush.bf16.msra.mxu0 %v1860
      %1927 = vmatpush.bf16.msra.mxu0 %v1857
      %1928 = vmatmul.bf16.gmra.mxu0 %v1892
      %v1929 = vpop.f32.mrf.mxu0
      %v1930 = vadd.f32 0.0, %v1929
      %v1931 = vpop.f32.mrf.mxu0
      %1932 = vdwg.mxu0
      %v1933 = vld [vmem:[%s1] sm:$0xff]
      %v1934 = vld [vmem:[%s1 + $0x8] sm:$0xff]
      %v1935 = vld [vmem:[%s1 + $0x10] sm:$0xff]
      %v1936 = vld [vmem:[%s1 + $0x18] sm:$0xff]
      %v1937 = vld [vmem:[%s1 + $0x20] sm:$0xff]
      %v1938 = vld [vmem:[%s1 + $0x28] sm:$0xff]
      %v1939 = vld [vmem:[%s1 + $0x30] sm:$0xff]
      %v1940 = vld [vmem:[%s1 + $0x38] sm:$0xff]
      %v1949 = vunpack.c.l.b16 %v1933
      %v1950 = vunpack.c.h.b16 %v1933
      %v1951 = vunpack.c.l.b16 %v1934
      %v1952 = vunpack.c.h.b16 %v1934
      %v1953 = vunpack.c.l.b16 %v1935
      %v1954 = vunpack.c.h.b16 %v1935
      %v1955 = vunpack.c.l.b16 %v1936
      %v1956 = vunpack.c.h.b16 %v1936
      %v1957 = vunpack.c.l.b16 %v1937
      %v1958 = vunpack.c.h.b16 %v1937
      %v1959 = vunpack.c.l.b16 %v1938
      %v1960 = vunpack.c.h.b16 %v1938
      %v1961 = vunpack.c.l.b16 %v1939
      %v1962 = vunpack.c.h.b16 %v1939
      %v1963 = vunpack.c.l.b16 %v1940
      %v1964 = vunpack.c.h.b16 %v1940
      %v1965 = vpack.c.b16 %v1951, %v1949
      %v1966 = vpack.c.b16 %v1952, %v1950
      %v1967 = vpack.c.b16 %v1955, %v1953
      %v1968 = vpack.c.b16 %v1956, %v1954
      %v1969 = vpack.c.b16 %v1959, %v1957
      %v1970 = vpack.c.b16 %v1960, %v1958
      %v1971 = vpack.c.b16 %v1963, %v1961
      %v1972 = vpack.c.b16 %v1964, %v1962
      %1981 = vmatpush.bf16.msra.mxu0 0
      %1982 = vmatpush.bf16.msra.mxu0 0
      %1983 = vmatpush.bf16.msra.mxu0 0
      %1984 = vmatpush.bf16.msra.mxu0 0
      %1985 = vmatpush.bf16.msra.mxu0 %v1971
      %1986 = vmatpush.bf16.msra.mxu0 %v1969
      %1987 = vmatpush.bf16.msra.mxu0 %v1967
      %1988 = vmatpush.bf16.msra.mxu0 %v1965
      %1989 = vmatmul.bf16.gmra.mxu0 %v1339
      %v1990 = vpop.f32.mrf.mxu0
      %v1991 = vadd.f32 0.0, %v1990
      %v1992 = vpop.f32.mrf.mxu0
      %1993 = vdwg.mxu0
      %1994 = vmatpush.bf16.msra.mxu0 0
      %1995 = vmatpush.bf16.msra.mxu0 0
      %1996 = vmatpush.bf16.msra.mxu0 0
      %1997 = vmatpush.bf16.msra.mxu0 0
      %1998 = vmatpush.bf16.msra.mxu0 %v1972
      %1999 = vmatpush.bf16.msra.mxu0 %v1970
      %2000 = vmatpush.bf16.msra.mxu0 %v1968
      %2001 = vmatpush.bf16.msra.mxu0 %v1966
      %2002 = vmatmul.bf16.gmra.mxu0 %v1339
      %v2003 = vpop.f32.mrf.mxu0
      %v2004 = vadd.f32 0.0, %v2003
      %v2005 = vpop.f32.mrf.mxu0
      %2006 = vdwg.mxu0
      %v2007 = vunpack.c.l.bf16 %v1768
      %v2008 = vunpack.c.h.bf16 %v1768
      %v2009 = vadd.f32 %v2007, %v1991
      %v2010 = vadd.f32 %v2008, %v2004
      %v2011 = vxor.u32 %v2009, 2147483648
      %v2012 = vmul.f32 %v2011, 1.442695
      %v2013 = vpow.pop %v2012
      %v2014 = vadd.f32 %v2013, 1.0
      %v2015 = vrcp.pop %v2014
      %v2016 = vmul.f32 %v2014, %v2015
      %v2017 = vsub.f32 1.0, %v2016
      %v2018 = vmul.f32 %v2015, %v2017
      %v2019 = vadd.f32 %v2015, %v2018
      %vm2020 = vweird.f32 %v2014
      %vm2021 = vweird.f32 %v2015
      %vm2022 = vmor %vm2020, %vm2021
      %v2023 = vsel %vm2022, %v2015, %v2019
      %v2024 = vand.u32 2147483647, %v2014
      %vm2025 = vcmp.eq.f32.partialorder %v2024, 8.507059e+37
      %v2026 = vand.u32 %v2014, 2147483648
      %v2027 = vor.u32 1.1754944e-38, %v2026
      %v2028 = vsel %vm2025, %v2027, %v2023
      %v2029 = vmul.f32 1.0, %v2028
      %v2030 = vtanh.pop %v2010
      %v2031 = vxor.u32 %v2010, 2147483648
      %v2032 = vmul.f32 %v2031, 1.442695
      %v2033 = vpow.pop %v2032
      %v2034 = vadd.f32 %v2033, 1.0
      %v2035 = vrcp.pop %v2034
      %v2036 = vmul.f32 %v2034, %v2035
      %v2037 = vsub.f32 1.0, %v2036
      %v2038 = vmul.f32 %v2035, %v2037
      %v2039 = vadd.f32 %v2035, %v2038
      %vm2040 = vweird.f32 %v2034
      %vm2041 = vweird.f32 %v2035
      %vm2042 = vmor %vm2040, %vm2041
      %v2043 = vsel %vm2042, %v2035, %v2039
      %v2044 = vand.u32 2147483647, %v2034
      %vm2045 = vcmp.eq.f32.partialorder %v2044, 8.507059e+37
      %v2046 = vand.u32 %v2034, 2147483648
      %v2047 = vor.u32 1.1754944e-38, %v2046
      %v2048 = vsel %vm2045, %v2047, %v2043
      %v2049 = vmul.f32 1.0, %v2048
      %v2050 = vmul.f32 %v2029, %v1251
      %v2051 = vmul.f32 %v2029, %v2030
      %2053 = vrot.lane.b32.xlu0 %v2051, 64
      %v2054 = vpop.permute.xlu0 %2053
      %v2056 = vadd.f32 %v2050, %v2054
      %v2057 = vtanh.pop %v2056
      %v2058 = vmul.f32 %v2049, %v2057
      %v2059 = vpack.c.bf16 %v2058, %v2058
      %v2060 = vld [vmem:[#allocation9] sm:$0xff]
      %v2061 = vld [vmem:[#allocation9 + $0x8] sm:$0xf]
      %v2062 = vld [vmem:[#allocation9 + $0xc] sm:$0xff]
      %v2063 = vld [vmem:[#allocation9 + $0x14] sm:$0xf]
      %v2064 = vld [vmem:[#allocation9 + $0x18] sm:$0xff]
      %v2065 = vld [vmem:[#allocation9 + $0x20] sm:$0xf]
      %v2066 = vld [vmem:[#allocation9 + $0x24] sm:$0xff]
      %v2067 = vld [vmem:[#allocation9 + $0x2c] sm:$0xf]
      %v2068 = vld [vmem:[#allocation9 + $0x30] sm:$0xff]
      %v2069 = vld [vmem:[#allocation9 + $0x38] sm:$0xf]
      %v2070 = vld [vmem:[#allocation9 + $0x3c] sm:$0xff]
      %v2071 = vld [vmem:[#allocation9 + $0x44] sm:$0xf]
      %v2072 = vld [vmem:[#allocation9 + $0x48] sm:$0xff]
      %v2073 = vld [vmem:[#allocation9 + $0x50] sm:$0xf]
      %v2074 = vld [vmem:[#allocation9 + $0x54] sm:$0xff]
      %v2075 = vld [vmem:[#allocation9 + $0x5c] sm:$0xf]
      %2077 = vrot.lane.b32.xlu0 %v2059, 64
      %v2078 = vpop.permute.xlu0 %2077
      %v2095 = vunpack.c.l.b16 %v2060
      %v2096 = vunpack.c.h.b16 %v2060
      %v2097 = vunpack.c.l.b16 %v2061
      %v2098 = vunpack.c.l.b16 %v2062
      %v2099 = vunpack.c.h.b16 %v2062
      %v2100 = vunpack.c.l.b16 %v2063
      %v2101 = vunpack.c.l.b16 %v2064
      %v2102 = vunpack.c.h.b16 %v2064
      %v2103 = vunpack.c.l.b16 %v2065
      %v2104 = vunpack.c.l.b16 %v2066
      %v2105 = vunpack.c.h.b16 %v2066
      %v2106 = vunpack.c.l.b16 %v2067
      %v2107 = vunpack.c.l.b16 %v2068
      %v2108 = vunpack.c.h.b16 %v2068
      %v2109 = vunpack.c.l.b16 %v2069
      %v2110 = vunpack.c.l.b16 %v2070
      %v2111 = vunpack.c.h.b16 %v2070
      %v2112 = vunpack.c.l.b16 %v2071
      %v2113 = vunpack.c.l.b16 %v2072
      %v2114 = vunpack.c.h.b16 %v2072
      %v2115 = vunpack.c.l.b16 %v2073
      %v2116 = vunpack.c.l.b16 %v2074
      %v2117 = vunpack.c.h.b16 %v2074
      %v2118 = vunpack.c.l.b16 %v2075
      %v2119 = vpack.c.b16 %v2098, %v2095
      %v2120 = vpack.c.b16 %v2099, %v2096
      %v2121 = vpack.c.b16 %v2100, %v2097
      %v2122 = vpack.c.b16 %v2104, %v2101
      %v2123 = vpack.c.b16 %v2105, %v2102
      %v2124 = vpack.c.b16 %v2106, %v2103
      %v2125 = vpack.c.b16 %v2110, %v2107
      %v2126 = vpack.c.b16 %v2111, %v2108
      %v2127 = vpack.c.b16 %v2112, %v2109
      %v2128 = vpack.c.b16 %v2116, %v2113
      %v2129 = vpack.c.b16 %v2117, %v2114
      %v2130 = vpack.c.b16 %v2118, %v2115
      %v2144 = vsel %vm346, %v2078, 0
      %2146 = vmatpush.bf16.msra.mxu0 0
      %2147 = vmatpush.bf16.msra.mxu0 0
      %2148 = vmatpush.bf16.msra.mxu0 0
      %2149 = vmatpush.bf16.msra.mxu0 0
      %2150 = vmatpush.bf16.msra.mxu0 %v2128
      %2151 = vmatpush.bf16.msra.mxu0 %v2125
      %2152 = vmatpush.bf16.msra.mxu0 %v2122
      %2153 = vmatpush.bf16.msra.mxu0 %v2119
      %2154 = vmatmul.bf16.gmra.mxu0 %v2144
      %v2155 = vpop.f32.mrf.mxu0
      %v2156 = vadd.f32 0.0, %v2155
      %v2157 = vpop.f32.mrf.mxu0
      %2158 = vdwg.mxu0
      %2159 = vmatpush.bf16.msra.mxu0 0
      %2160 = vmatpush.bf16.msra.mxu0 0
      %2161 = vmatpush.bf16.msra.mxu0 0
      %2162 = vmatpush.bf16.msra.mxu0 0
      %2163 = vmatpush.bf16.msra.mxu0 %v2129
      %2164 = vmatpush.bf16.msra.mxu0 %v2126
      %2165 = vmatpush.bf16.msra.mxu0 %v2123
      %2166 = vmatpush.bf16.msra.mxu0 %v2120
      %2167 = vmatmul.bf16.gmra.mxu0 %v2144
      %v2168 = vpop.f32.mrf.mxu0
      %v2169 = vadd.f32 0.0, %v2168
      %v2170 = vpop.f32.mrf.mxu0
      %2171 = vdwg.mxu0
      %2172 = vmatpush.bf16.msra.mxu0 0
      %2173 = vmatpush.bf16.msra.mxu0 0
      %2174 = vmatpush.bf16.msra.mxu0 0
      %2175 = vmatpush.bf16.msra.mxu0 0
      %2176 = vmatpush.bf16.msra.mxu0 %v2130
      %2177 = vmatpush.bf16.msra.mxu0 %v2127
      %2178 = vmatpush.bf16.msra.mxu0 %v2124
      %2179 = vmatpush.bf16.msra.mxu0 %v2121
      %2180 = vmatmul.bf16.gmra.mxu0 %v2144
      %v2181 = vpop.f32.mrf.mxu0
      %v2182 = vadd.f32 0.0, %v2181
      %v2183 = vpop.f32.mrf.mxu0
      %2184 = vdwg.mxu0
      %v2185 = vunpack.c.l.bf16 %v1769
      %v2186 = vadd.f32 %v2185, %v2156
      %v2187 = vadd.f32 %v2186, %v1904
      %v2188 = vxor.u32 %v2187, 2147483648
      %v2189 = vmul.f32 %v2188, 1.442695
      %v2190 = vpow.pop %v2189
      %v2191 = vadd.f32 %v2190, 1.0
      %v2192 = vrcp.pop %v2191
      %v2193 = vmul.f32 %v2191, %v2192
      %v2194 = vsub.f32 1.0, %v2193
      %v2195 = vmul.f32 %v2192, %v2194
      %v2196 = vadd.f32 %v2192, %v2195
      %vm2197 = vweird.f32 %v2191
      %vm2198 = vweird.f32 %v2192
      %vm2199 = vmor %vm2197, %vm2198
      %v2200 = vsel %vm2199, %v2192, %v2196
      %v2201 = vand.u32 2147483647, %v2191
      %vm2202 = vcmp.eq.f32.partialorder %v2201, 8.507059e+37
      %v2203 = vand.u32 %v2191, 2147483648
      %v2204 = vor.u32 1.1754944e-38, %v2203
      %v2205 = vsel %vm2202, %v2204, %v2200
      %v2206 = vmul.f32 1.0, %v2205
      %v2207 = vtanh.pop %v2187
      %v2208 = vmul.f32 %v2206, %v1413
      %2210 = vrot.lane.b32.xlu0 %v2207, 64
      %v2211 = vpop.permute.xlu0 %2210
      %v2213 = vmul.f32 %v2206, %v2211
      %2215 = vrot.lane.b32.xlu0 %v2213, 32
      %v2216 = vpop.permute.xlu0 %2215
      %v2218 = vadd.f32 %v2208, %v2216
      %v2219 = vtanh.pop %v2218
      %2221 = vrot.lane.b32.xlu0 %v2219, 64
      %v2222 = vpop.permute.xlu0 %2221
      %v2224 = vmul.f32 %v2206, %v2222
      %v2225 = vpack.c.bf16 %v2224, %v2224
      %v2226 = vld [vmem:[%s5] sm:$0xf]
      %v2227 = vld [vmem:[%s5 + $0x4] sm:$0xf]
      %v2228 = vld [vmem:[%s5 + $0x8] sm:$0xf]
      %v2229 = vld [vmem:[%s5 + $0xc] sm:$0xf]
      %v2230 = vld [vmem:[%s6] sm:$0x1]
      %v2232 = vperm.slane %v2230, 0
      %2235 = vrot.lane.b32.xlu0 %v2225, 32
      %v2236 = vpop.permute.xlu0 %2235
      %v2241 = vunpack.c.l.b16 %v2226
      %v2242 = vunpack.c.l.b16 %v2227
      %v2243 = vunpack.c.l.b16 %v2228
      %v2244 = vunpack.c.l.b16 %v2229
      %v2245 = vpack.c.b16 %v2242, %v2241
      %v2246 = vpack.c.b16 %v2244, %v2243
      %v2250 = vsel %vm626, %v2236, 0
      %2252 = vmatpush.bf16.msra.mxu0 0
      %2253 = vmatpush.bf16.msra.mxu0 0
      %2254 = vmatpush.bf16.msra.mxu0 0
      %2255 = vmatpush.bf16.msra.mxu0 0
      %2256 = vmatpush.bf16.msra.mxu0 0
      %2257 = vmatpush.bf16.msra.mxu0 0
      %2258 = vmatpush.bf16.msra.mxu0 %v2246
      %2259 = vmatpush.bf16.msra.mxu0 %v2245
      %2260 = vmatmul.bf16.gmra.mxu0 %v2250
      %v2261 = vpop.f32.mrf.mxu0
      %v2262 = vadd.f32 %v2232, %v2261
      %v2263 = vpop.f32.mrf.mxu0
      %2264 = vdwg.mxu0
      %v2265 = vmax.f32 %v2262, 0.0
      %v2266 = vpack.c.bf16 %v2265, %v2265
      %v2267 = vld [vmem:[#allocation12] sm:$0xff]
      %v2268 = vld [vmem:[#allocation12 + $0x8] sm:$0xff]
      %v2271 = vunpack.c.l.b16 %v2267
      %v2272 = vunpack.c.h.b16 %v2267
      %v2273 = vunpack.c.l.b16 %v2268
      %v2274 = vunpack.c.h.b16 %v2268
      %v2275 = vpack.c.b16 %v2273, %v2271
      %v2276 = vpack.c.b16 %v2274, %v2272
      %v2280 = vsel %vm657, %v2266, 0
      %2282 = vmatpush.bf16.msra.mxu0 0
      %2283 = vmatpush.bf16.msra.mxu0 0
      %2284 = vmatpush.bf16.msra.mxu0 0
      %2285 = vmatpush.bf16.msra.mxu0 0
      %2286 = vmatpush.bf16.msra.mxu0 0
      %2287 = vmatpush.bf16.msra.mxu0 0
      %2288 = vmatpush.bf16.msra.mxu0 0
      %2289 = vmatpush.bf16.msra.mxu0 %v2275
      %2290 = vmatmul.bf16.gmra.mxu0 %v2280
      %v2291 = vpop.f32.mrf.mxu0
      %v2292 = vadd.f32 0.0, %v2291
      %v2293 = vpop.f32.mrf.mxu0
      %2294 = vdwg.mxu0
      %2295 = vmatpush.bf16.msra.mxu0 0
      %2296 = vmatpush.bf16.msra.mxu0 0
      %2297 = vmatpush.bf16.msra.mxu0 0
      %2298 = vmatpush.bf16.msra.mxu0 0
      %2299 = vmatpush.bf16.msra.mxu0 0
      %2300 = vmatpush.bf16.msra.mxu0 0
      %2301 = vmatpush.bf16.msra.mxu0 0
      %2302 = vmatpush.bf16.msra.mxu0 %v2276
      %2303 = vmatmul.bf16.gmra.mxu0 %v2280
      %v2304 = vpop.f32.mrf.mxu0
      %v2305 = vadd.f32 0.0, %v2304
      %v2306 = vpop.f32.mrf.mxu0
      %2307 = vdwg.mxu0
      %v2309 = vrot.slane %v1769, 4
      %v2311 = vunpack.c.l.bf16 %v2309
      %v2312 = vadd.f32 %v2311, %v2169
      %v2313 = vadd.f32 %v2312, %v1917
      %v2314 = vadd.f32 %v2313, %v2292
      %v2315 = vxor.u32 %v2314, 2147483648
      %v2316 = vmul.f32 %v2315, 1.442695
      %v2317 = vpow.pop %v2316
      %v2318 = vadd.f32 %v2317, 1.0
      %v2319 = vrcp.pop %v2318
      %v2320 = vmul.f32 %v2318, %v2319
      %v2321 = vsub.f32 1.0, %v2320
      %v2322 = vmul.f32 %v2319, %v2321
      %v2323 = vadd.f32 %v2319, %v2322
      %vm2324 = vweird.f32 %v2318
      %vm2325 = vweird.f32 %v2319
      %vm2326 = vmor %vm2324, %vm2325
      %v2327 = vsel %vm2326, %v2319, %v2323
      %v2328 = vand.u32 2147483647, %v2318
      %vm2329 = vcmp.eq.f32.partialorder %v2328, 8.507059e+37
      %v2330 = vand.u32 %v2318, 2147483648
      %v2331 = vor.u32 1.1754944e-38, %v2330
      %v2332 = vsel %vm2329, %v2331, %v2327
      %v2333 = vmul.f32 1.0, %v2332
      %v2334 = vtanh.pop %v2314
      %v2335 = vmul.f32 %v2333, %v1540
      %2337 = vrot.lane.b32.xlu0 %v2334, 64
      %v2338 = vpop.permute.xlu0 %2337
      %v2340 = vmul.f32 %v2333, %v2338
      %2342 = vrot.lane.b32.xlu0 %v2340, 32
      %v2343 = vpop.permute.xlu0 %2342
      %v2345 = vadd.f32 %v2335, %v2343
      %v2346 = vtanh.pop %v2345
      %2348 = vrot.lane.b32.xlu0 %v2346, 64
      %v2349 = vpop.permute.xlu0 %2348
      %v2351 = vmul.f32 %v2333, %v2349
      %v2352 = vpack.c.bf16 %v2351, %v2351
      %v2353 = vld [vmem:[%s732] sm:$0xf]
      %v2354 = vld [vmem:[%s732 + $0x4] sm:$0xf]
      %v2355 = vld [vmem:[%s732 + $0x8] sm:$0xf]
      %v2356 = vld [vmem:[%s732 + $0xc] sm:$0xf]
      %v2357 = vld [vmem:[%s737] sm:$0x1]
      %v2359 = vperm.slane %v2357, 0
      %2362 = vrot.lane.b32.xlu0 %v2352, 32
      %v2363 = vpop.permute.xlu0 %2362
      %v2368 = vunpack.c.l.b16 %v2353
      %v2369 = vunpack.c.l.b16 %v2354
      %v2370 = vunpack.c.l.b16 %v2355
      %v2371 = vunpack.c.l.b16 %v2356
      %v2372 = vpack.c.b16 %v2369, %v2368
      %v2373 = vpack.c.b16 %v2371, %v2370
      %v2377 = vsel %vm626, %v2363, 0
      %2379 = vmatpush.bf16.msra.mxu0 0
      %2380 = vmatpush.bf16.msra.mxu0 0
      %2381 = vmatpush.bf16.msra.mxu0 0
      %2382 = vmatpush.bf16.msra.mxu0 0
      %2383 = vmatpush.bf16.msra.mxu0 0
      %2384 = vmatpush.bf16.msra.mxu0 0
      %2385 = vmatpush.bf16.msra.mxu0 %v2373
      %2386 = vmatpush.bf16.msra.mxu0 %v2372
      %2387 = vmatmul.bf16.gmra.mxu0 %v2377
      %v2388 = vpop.f32.mrf.mxu0
      %v2389 = vadd.f32 %v2359, %v2388
      %v2390 = vpop.f32.mrf.mxu0
      %2391 = vdwg.mxu0
      %v2392 = vmax.f32 %v2389, 0.0
      %v2393 = vpack.c.bf16 %v2392, %v2392
      %v2394 = vld [vmem:[%s775] sm:$0xff]
      %v2395 = vld [vmem:[%s775 + $0x8] sm:$0xff]
      %v2398 = vunpack.c.l.b16 %v2394
      %v2399 = vunpack.c.h.b16 %v2394
      %v2400 = vunpack.c.l.b16 %v2395
      %v2401 = vunpack.c.h.b16 %v2395
      %v2402 = vpack.c.b16 %v2400, %v2398
      %v2403 = vpack.c.b16 %v2401, %v2399
      %v2407 = vsel %vm657, %v2393, 0
      %2409 = vmatpush.bf16.msra.mxu0 0
      %2410 = vmatpush.bf16.msra.mxu0 0
      %2411 = vmatpush.bf16.msra.mxu0 0
      %2412 = vmatpush.bf16.msra.mxu0 0
      %2413 = vmatpush.bf16.msra.mxu0 0
      %2414 = vmatpush.bf16.msra.mxu0 0
      %2415 = vmatpush.bf16.msra.mxu0 0
      %2416 = vmatpush.bf16.msra.mxu0 %v2402
      %2417 = vmatmul.bf16.gmra.mxu0 %v2407
      %v2418 = vpop.f32.mrf.mxu0
      %v2419 = vadd.f32 0.0, %v2418
      %v2420 = vpop.f32.mrf.mxu0
      %2421 = vdwg.mxu0
      %2422 = vmatpush.bf16.msra.mxu0 0
      %2423 = vmatpush.bf16.msra.mxu0 0
      %2424 = vmatpush.bf16.msra.mxu0 0
      %2425 = vmatpush.bf16.msra.mxu0 0
      %2426 = vmatpush.bf16.msra.mxu0 0
      %2427 = vmatpush.bf16.msra.mxu0 0
      %2428 = vmatpush.bf16.msra.mxu0 0
      %2429 = vmatpush.bf16.msra.mxu0 %v2403
      %2430 = vmatmul.bf16.gmra.mxu0 %v2407
      %v2431 = vpop.f32.mrf.mxu0
      %v2432 = vadd.f32 0.0, %v2431
      %v2433 = vpop.f32.mrf.mxu0
      %2434 = vdwg.mxu0
      %v2435 = vld [vmem:[%s4] sm:$0x1]
      %v2437 = vperm.slane %v2435, 0
      %v2439 = vadd.f32 %v2437, %v2182
      %v2440 = vadd.f32 %v2439, %v1930
      %v2441 = vadd.f32 %v2440, %v2419
      %v2442 = vxor.u32 %v2441, 2147483648
      %v2443 = vmul.f32 %v2442, 1.442695
      %v2444 = vpow.pop %v2443
      %v2445 = vadd.f32 %v2444, 1.0
      %v2446 = vrcp.pop %v2445
      %v2447 = vmul.f32 %v2445, %v2446
      %v2448 = vsub.f32 1.0, %v2447
      %v2449 = vmul.f32 %v2446, %v2448
      %v2450 = vadd.f32 %v2446, %v2449
      %vm2451 = vweird.f32 %v2445
      %vm2452 = vweird.f32 %v2446
      %vm2453 = vmor %vm2451, %vm2452
      %v2454 = vsel %vm2453, %v2446, %v2450
      %v2455 = vand.u32 2147483647, %v2445
      %vm2456 = vcmp.eq.f32.partialorder %v2455, 8.507059e+37
      %v2457 = vand.u32 %v2445, 2147483648
      %v2458 = vor.u32 1.1754944e-38, %v2457
      %v2459 = vsel %vm2456, %v2458, %v2454
      %v2460 = vmul.f32 1.0, %v2459
      %v2461 = vtanh.pop %v2441
      %v2462 = vmul.f32 %v2460, %v1667
      %2464 = vrot.lane.b32.xlu0 %v2461, 64
      %v2465 = vpop.permute.xlu0 %2464
      %v2467 = vmul.f32 %v2460, %v2465
      %2469 = vrot.lane.b32.xlu0 %v2467, 32
      %v2470 = vpop.permute.xlu0 %2469
      %v2472 = vadd.f32 %v2462, %v2470
      %v2473 = vtanh.pop %v2472
      %2475 = vrot.lane.b32.xlu0 %v2473, 64
      %v2476 = vpop.permute.xlu0 %2475
      %v2478 = vmul.f32 %v2460, %v2476
      %v2479 = vpack.c.bf16 %v2478, %v2478
      %v2480 = vld [vmem:[%s866] sm:$0xf]
      %v2481 = vld [vmem:[%s866 + $0x4] sm:$0xf]
      %v2482 = vld [vmem:[%s866 + $0x8] sm:$0xf]
      %v2483 = vld [vmem:[%s866 + $0xc] sm:$0xf]
      %v2484 = vld [vmem:[%s871] sm:$0x1]
      %v2486 = vperm.slane %v2484, 0
      %2489 = vrot.lane.b32.xlu0 %v2479, 32
      %v2490 = vpop.permute.xlu0 %2489
      %v2495 = vunpack.c.l.b16 %v2480
      %v2496 = vunpack.c.l.b16 %v2481
      %v2497 = vunpack.c.l.b16 %v2482
      %v2498 = vunpack.c.l.b16 %v2483
      %v2499 = vpack.c.b16 %v2496, %v2495
      %v2500 = vpack.c.b16 %v2498, %v2497
      %v2504 = vsel %vm626, %v2490, 0
      %2506 = vmatpush.bf16.msra.mxu0 0
      %2507 = vmatpush.bf16.msra.mxu0 0
      %2508 = vmatpush.bf16.msra.mxu0 0
      %2509 = vmatpush.bf16.msra.mxu0 0
      %2510 = vmatpush.bf16.msra.mxu0 0
      %2511 = vmatpush.bf16.msra.mxu0 0
      %2512 = vmatpush.bf16.msra.mxu0 %v2500
      %2513 = vmatpush.bf16.msra.mxu0 %v2499
      %2514 = vmatmul.bf16.gmra.mxu0 %v2504
      %v2515 = vpop.f32.mrf.mxu0
      %v2516 = vadd.f32 %v2486, %v2515
      %v2517 = vpop.f32.mrf.mxu0
      %2518 = vdwg.mxu0
      %v2519 = vmax.f32 %v2516, 0.0
      %v2520 = vpack.c.bf16 %v2519, %v2519
      %v2521 = vld [vmem:[%s909] sm:$0xff]
      %v2522 = vld [vmem:[%s909 + $0x8] sm:$0xff]
      %v2525 = vunpack.c.h.b16 %v2521
      %v2526 = vunpack.c.h.b16 %v2522
      %v2527 = vpack.c.b16 %v2526, %v2525
      %v2530 = vsel %vm657, %v2520, 0
      %2532 = vmatpush.bf16.msra.mxu0 0
      %2533 = vmatpush.bf16.msra.mxu0 0
      %2534 = vmatpush.bf16.msra.mxu0 0
      %2535 = vmatpush.bf16.msra.mxu0 0
      %2536 = vmatpush.bf16.msra.mxu0 0
      %2537 = vmatpush.bf16.msra.mxu0 0
      %2538 = vmatpush.bf16.msra.mxu0 0
      %2539 = vmatpush.bf16.msra.mxu0 %v2527
      %2540 = vmatmul.bf16.gmra.mxu0 %v2530
      %v2541 = vpop.f32.mrf.mxu0
      %v2542 = vadd.f32 0.0, %v2541
      %v2543 = vpop.f32.mrf.mxu0
      %2544 = vdwg.mxu0
      %v2545 = vadd.f32 %v2305, %v2432
      %v2546 = vadd.f32 %v2545, %v2542
      %v2547 = vld [vmem:[%s8] sm:$0x1]
      %v2549 = vperm.slane %v2547, 0
      %v2551 = vadd.f32 %v2546, %v2549
      %s2552 = smul.u32 %s1764, 8
      %s2553 = scalar_lea.vmem [#allocation14], %s2552
      %2554 = vst.msk [vmem:[%s2553] sm:$0xff] %vm943, %v2551
      %2556 = vrot.lane.b32.xlu0 %v2224, 32
      %v2557 = vpop.permute.xlu0 %2556
      %2560 = vrot.lane.b32.xlu0 %v2351, 64
      %v2561 = vpop.permute.xlu0 %2560
      %2564 = vrot.lane.b32.xlu0 %v2478, 96
      %v2565 = vpop.permute.xlu0 %2564
      %v2567 = vsel %vm626, %v2557, %v2561
      %v2568 = vsel %vm346, %v2567, %v2565
      %s2569 = sadd.s32 %s127, 3
      %s2570 = smul.u32 %s2569, 4
      %s2571 = smul.addr %s2570, 4
      %s2572 = scalar_lea.vmem [#allocation6], %s2571
      %v2573 = vld [vmem:[%s2572] sm:$0xff]
      %v2574 = vld [vmem:[%s2572 + $0x8] sm:$0xff]
      %v2575 = vpack.c.bf16 %v2568, %v2568
      %v2576 = vld [vmem:[#allocation11] sm:$0xff]
      %v2577 = vld [vmem:[#allocation11 + $0x8] sm:$0xf]
      %v2578 = vld [vmem:[#allocation11 + $0xc] sm:$0xff]
      %v2579 = vld [vmem:[#allocation11 + $0x14] sm:$0xf]
      %v2580 = vld [vmem:[#allocation11 + $0x18] sm:$0xff]
      %v2581 = vld [vmem:[#allocation11 + $0x20] sm:$0xf]
      %v2582 = vld [vmem:[#allocation11 + $0x24] sm:$0xff]
      %v2583 = vld [vmem:[#allocation11 + $0x2c] sm:$0xf]
      %v2584 = vld [vmem:[#allocation11 + $0x30] sm:$0xff]
      %v2585 = vld [vmem:[#allocation11 + $0x38] sm:$0xf]
      %v2586 = vld [vmem:[#allocation11 + $0x3c] sm:$0xff]
      %v2587 = vld [vmem:[#allocation11 + $0x44] sm:$0xf]
      %v2588 = vld [vmem:[#allocation11 + $0x48] sm:$0xff]
      %v2589 = vld [vmem:[#allocation11 + $0x50] sm:$0xf]
      %v2590 = vld [vmem:[#allocation11 + $0x54] sm:$0xff]
      %v2591 = vld [vmem:[#allocation11 + $0x5c] sm:$0xf]
      %v2592 = vld [vmem:[#allocation11 + $0x60] sm:$0xff]
      %v2593 = vld [vmem:[#allocation11 + $0x68] sm:$0xf]
      %v2594 = vld [vmem:[#allocation11 + $0x6c] sm:$0xff]
      %v2595 = vld [vmem:[#allocation11 + $0x74] sm:$0xf]
      %v2596 = vld [vmem:[#allocation11 + $0x78] sm:$0xff]
      %v2597 = vld [vmem:[#allocation11 + $0x80] sm:$0xf]
      %v2598 = vld [vmem:[#allocation11 + $0x84] sm:$0xff]
      %v2599 = vld [vmem:[#allocation11 + $0x8c] sm:$0xf]
      %v2624 = vunpack.c.l.b16 %v2576
      %v2625 = vunpack.c.h.b16 %v2576
      %v2626 = vunpack.c.l.b16 %v2577
      %v2627 = vunpack.c.l.b16 %v2578
      %v2628 = vunpack.c.h.b16 %v2578
      %v2629 = vunpack.c.l.b16 %v2579
      %v2630 = vunpack.c.l.b16 %v2580
      %v2631 = vunpack.c.h.b16 %v2580
      %v2632 = vunpack.c.l.b16 %v2581
      %v2633 = vunpack.c.l.b16 %v2582
      %v2634 = vunpack.c.h.b16 %v2582
      %v2635 = vunpack.c.l.b16 %v2583
      %v2636 = vunpack.c.l.b16 %v2584
      %v2637 = vunpack.c.h.b16 %v2584
      %v2638 = vunpack.c.l.b16 %v2585
      %v2639 = vunpack.c.l.b16 %v2586
      %v2640 = vunpack.c.h.b16 %v2586
      %v2641 = vunpack.c.l.b16 %v2587
      %v2642 = vunpack.c.l.b16 %v2588
      %v2643 = vunpack.c.h.b16 %v2588
      %v2644 = vunpack.c.l.b16 %v2589
      %v2645 = vunpack.c.l.b16 %v2590
      %v2646 = vunpack.c.h.b16 %v2590
      %v2647 = vunpack.c.l.b16 %v2591
      %v2648 = vunpack.c.l.b16 %v2592
      %v2649 = vunpack.c.h.b16 %v2592
      %v2650 = vunpack.c.l.b16 %v2593
      %v2651 = vunpack.c.l.b16 %v2594
      %v2652 = vunpack.c.h.b16 %v2594
      %v2653 = vunpack.c.l.b16 %v2595
      %v2654 = vunpack.c.l.b16 %v2596
      %v2655 = vunpack.c.h.b16 %v2596
      %v2656 = vunpack.c.l.b16 %v2597
      %v2657 = vunpack.c.l.b16 %v2598
      %v2658 = vunpack.c.h.b16 %v2598
      %v2659 = vunpack.c.l.b16 %v2599
      %v2660 = vpack.c.b16 %v2627, %v2624
      %v2661 = vpack.c.b16 %v2628, %v2625
      %v2662 = vpack.c.b16 %v2629, %v2626
      %v2663 = vpack.c.b16 %v2633, %v2630
      %v2664 = vpack.c.b16 %v2634, %v2631
      %v2665 = vpack.c.b16 %v2635, %v2632
      %v2666 = vpack.c.b16 %v2639, %v2636
      %v2667 = vpack.c.b16 %v2640, %v2637
      %v2668 = vpack.c.b16 %v2641, %v2638
      %v2669 = vpack.c.b16 %v2645, %v2642
      %v2670 = vpack.c.b16 %v2646, %v2643
      %v2671 = vpack.c.b16 %v2647, %v2644
      %v2672 = vpack.c.b16 %v2651, %v2648
      %v2673 = vpack.c.b16 %v2652, %v2649
      %v2674 = vpack.c.b16 %v2653, %v2650
      %v2675 = vpack.c.b16 %v2657, %v2654
      %v2676 = vpack.c.b16 %v2658, %v2655
      %v2677 = vpack.c.b16 %v2659, %v2656
      %v2697 = vsel %vm254, %v2575, 0
      %2699 = vmatpush.bf16.msra.mxu0 0
      %2700 = vmatpush.bf16.msra.mxu0 0
      %2701 = vmatpush.bf16.msra.mxu0 %v2675
      %2702 = vmatpush.bf16.msra.mxu0 %v2672
      %2703 = vmatpush.bf16.msra.mxu0 %v2669
      %2704 = vmatpush.bf16.msra.mxu0 %v2666
      %2705 = vmatpush.bf16.msra.mxu0 %v2663
      %2706 = vmatpush.bf16.msra.mxu0 %v2660
      %2707 = vmatmul.bf16.gmra.mxu0 %v2697
      %v2708 = vpop.f32.mrf.mxu0
      %v2709 = vadd.f32 0.0, %v2708
      %v2710 = vpop.f32.mrf.mxu0
      %2711 = vdwg.mxu0
      %2712 = vmatpush.bf16.msra.mxu0 0
      %2713 = vmatpush.bf16.msra.mxu0 0
      %2714 = vmatpush.bf16.msra.mxu0 %v2676
      %2715 = vmatpush.bf16.msra.mxu0 %v2673
      %2716 = vmatpush.bf16.msra.mxu0 %v2670
      %2717 = vmatpush.bf16.msra.mxu0 %v2667
      %2718 = vmatpush.bf16.msra.mxu0 %v2664
      %2719 = vmatpush.bf16.msra.mxu0 %v2661
      %2720 = vmatmul.bf16.gmra.mxu0 %v2697
      %v2721 = vpop.f32.mrf.mxu0
      %v2722 = vadd.f32 0.0, %v2721
      %v2723 = vpop.f32.mrf.mxu0
      %2724 = vdwg.mxu0
      %2725 = vmatpush.bf16.msra.mxu0 0
      %2726 = vmatpush.bf16.msra.mxu0 0
      %2727 = vmatpush.bf16.msra.mxu0 %v2677
      %2728 = vmatpush.bf16.msra.mxu0 %v2674
      %2729 = vmatpush.bf16.msra.mxu0 %v2671
      %2730 = vmatpush.bf16.msra.mxu0 %v2668
      %2731 = vmatpush.bf16.msra.mxu0 %v2665
      %2732 = vmatpush.bf16.msra.mxu0 %v2662
      %2733 = vmatmul.bf16.gmra.mxu0 %v2697
      %v2734 = vpop.f32.mrf.mxu0
      %v2735 = vadd.f32 0.0, %v2734
      %v2736 = vpop.f32.mrf.mxu0
      %2737 = vdwg.mxu0
      %v2738 = vld [vmem:[%s1] sm:$0xff]
      %v2739 = vld [vmem:[%s1 + $0x8] sm:$0xff]
      %v2740 = vld [vmem:[%s1 + $0x10] sm:$0xff]
      %v2741 = vld [vmem:[%s1 + $0x18] sm:$0xff]
      %v2742 = vld [vmem:[%s1 + $0x20] sm:$0xff]
      %v2743 = vld [vmem:[%s1 + $0x28] sm:$0xff]
      %v2744 = vld [vmem:[%s1 + $0x30] sm:$0xff]
      %v2745 = vld [vmem:[%s1 + $0x38] sm:$0xff]
      %v2754 = vunpack.c.l.b16 %v2738
      %v2755 = vunpack.c.h.b16 %v2738
      %v2756 = vunpack.c.l.b16 %v2739
      %v2757 = vunpack.c.h.b16 %v2739
      %v2758 = vunpack.c.l.b16 %v2740
      %v2759 = vunpack.c.h.b16 %v2740
      %v2760 = vunpack.c.l.b16 %v2741
      %v2761 = vunpack.c.h.b16 %v2741
      %v2762 = vunpack.c.l.b16 %v2742
      %v2763 = vunpack.c.h.b16 %v2742
      %v2764 = vunpack.c.l.b16 %v2743
      %v2765 = vunpack.c.h.b16 %v2743
      %v2766 = vunpack.c.l.b16 %v2744
      %v2767 = vunpack.c.h.b16 %v2744
      %v2768 = vunpack.c.l.b16 %v2745
      %v2769 = vunpack.c.h.b16 %v2745
      %v2770 = vpack.c.b16 %v2756, %v2754
      %v2771 = vpack.c.b16 %v2757, %v2755
      %v2772 = vpack.c.b16 %v2760, %v2758
      %v2773 = vpack.c.b16 %v2761, %v2759
      %v2774 = vpack.c.b16 %v2764, %v2762
      %v2775 = vpack.c.b16 %v2765, %v2763
      %v2776 = vpack.c.b16 %v2768, %v2766
      %v2777 = vpack.c.b16 %v2769, %v2767
      %2786 = vmatpush.bf16.msra.mxu0 0
      %2787 = vmatpush.bf16.msra.mxu0 0
      %2788 = vmatpush.bf16.msra.mxu0 0
      %2789 = vmatpush.bf16.msra.mxu0 0
      %2790 = vmatpush.bf16.msra.mxu0 %v2776
      %2791 = vmatpush.bf16.msra.mxu0 %v2774
      %2792 = vmatpush.bf16.msra.mxu0 %v2772
      %2793 = vmatpush.bf16.msra.mxu0 %v2770
      %2794 = vmatmul.bf16.gmra.mxu0 %v2144
      %v2795 = vpop.f32.mrf.mxu0
      %v2796 = vadd.f32 0.0, %v2795
      %v2797 = vpop.f32.mrf.mxu0
      %2798 = vdwg.mxu0
      %2799 = vmatpush.bf16.msra.mxu0 0
      %2800 = vmatpush.bf16.msra.mxu0 0
      %2801 = vmatpush.bf16.msra.mxu0 0
      %2802 = vmatpush.bf16.msra.mxu0 0
      %2803 = vmatpush.bf16.msra.mxu0 %v2777
      %2804 = vmatpush.bf16.msra.mxu0 %v2775
      %2805 = vmatpush.bf16.msra.mxu0 %v2773
      %2806 = vmatpush.bf16.msra.mxu0 %v2771
      %2807 = vmatmul.bf16.gmra.mxu0 %v2144
      %v2808 = vpop.f32.mrf.mxu0
      %v2809 = vadd.f32 0.0, %v2808
      %v2810 = vpop.f32.mrf.mxu0
      %2811 = vdwg.mxu0
      %v2812 = vunpack.c.l.bf16 %v2573
      %v2813 = vunpack.c.h.bf16 %v2573
      %v2814 = vadd.f32 %v2812, %v2796
      %v2815 = vadd.f32 %v2813, %v2809
      %v2816 = vxor.u32 %v2814, 2147483648
      %v2817 = vmul.f32 %v2816, 1.442695
      %v2818 = vpow.pop %v2817
      %v2819 = vadd.f32 %v2818, 1.0
      %v2820 = vrcp.pop %v2819
      %v2821 = vmul.f32 %v2819, %v2820
      %v2822 = vsub.f32 1.0, %v2821
      %v2823 = vmul.f32 %v2820, %v2822
      %v2824 = vadd.f32 %v2820, %v2823
      %vm2825 = vweird.f32 %v2819
      %vm2826 = vweird.f32 %v2820
      %vm2827 = vmor %vm2825, %vm2826
      %v2828 = vsel %vm2827, %v2820, %v2824
      %v2829 = vand.u32 2147483647, %v2819
      %vm2830 = vcmp.eq.f32.partialorder %v2829, 8.507059e+37
      %v2831 = vand.u32 %v2819, 2147483648
      %v2832 = vor.u32 1.1754944e-38, %v2831
      %v2833 = vsel %vm2830, %v2832, %v2828
      %v2834 = vmul.f32 1.0, %v2833
      %v2835 = vtanh.pop %v2815
      %v2836 = vxor.u32 %v2815, 2147483648
      %v2837 = vmul.f32 %v2836, 1.442695
      %v2838 = vpow.pop %v2837
      %v2839 = vadd.f32 %v2838, 1.0
      %v2840 = vrcp.pop %v2839
      %v2841 = vmul.f32 %v2839, %v2840
      %v2842 = vsub.f32 1.0, %v2841
      %v2843 = vmul.f32 %v2840, %v2842
      %v2844 = vadd.f32 %v2840, %v2843
      %vm2845 = vweird.f32 %v2839
      %vm2846 = vweird.f32 %v2840
      %vm2847 = vmor %vm2845, %vm2846
      %v2848 = vsel %vm2847, %v2840, %v2844
      %v2849 = vand.u32 2147483647, %v2839
      %vm2850 = vcmp.eq.f32.partialorder %v2849, 8.507059e+37
      %v2851 = vand.u32 %v2839, 2147483648
      %v2852 = vor.u32 1.1754944e-38, %v2851
      %v2853 = vsel %vm2850, %v2852, %v2848
      %v2854 = vmul.f32 1.0, %v2853
      %v2855 = vmul.f32 %v2834, %v2056
      %v2856 = vmul.f32 %v2834, %v2835
      %2858 = vrot.lane.b32.xlu0 %v2856, 64
      %v2859 = vpop.permute.xlu0 %2858
      %v2861 = vadd.f32 %v2855, %v2859
      %v2862 = vtanh.pop %v2861
      %v2863 = vmul.f32 %v2854, %v2862
      %v2864 = vpack.c.bf16 %v2863, %v2863
      %v2865 = vld [vmem:[#allocation9] sm:$0xff]
      %v2866 = vld [vmem:[#allocation9 + $0x8] sm:$0xf]
      %v2867 = vld [vmem:[#allocation9 + $0xc] sm:$0xff]
      %v2868 = vld [vmem:[#allocation9 + $0x14] sm:$0xf]
      %v2869 = vld [vmem:[#allocation9 + $0x18] sm:$0xff]
      %v2870 = vld [vmem:[#allocation9 + $0x20] sm:$0xf]
      %v2871 = vld [vmem:[#allocation9 + $0x24] sm:$0xff]
      %v2872 = vld [vmem:[#allocation9 + $0x2c] sm:$0xf]
      %v2873 = vld [vmem:[#allocation9 + $0x30] sm:$0xff]
      %v2874 = vld [vmem:[#allocation9 + $0x38] sm:$0xf]
      %v2875 = vld [vmem:[#allocation9 + $0x3c] sm:$0xff]
      %v2876 = vld [vmem:[#allocation9 + $0x44] sm:$0xf]
      %v2877 = vld [vmem:[#allocation9 + $0x48] sm:$0xff]
      %v2878 = vld [vmem:[#allocation9 + $0x50] sm:$0xf]
      %v2879 = vld [vmem:[#allocation9 + $0x54] sm:$0xff]
      %v2880 = vld [vmem:[#allocation9 + $0x5c] sm:$0xf]
      %2882 = vrot.lane.b32.xlu0 %v2864, 64
      %v2883 = vpop.permute.xlu0 %2882
      %v2900 = vunpack.c.l.b16 %v2865
      %v2901 = vunpack.c.h.b16 %v2865
      %v2902 = vunpack.c.l.b16 %v2866
      %v2903 = vunpack.c.l.b16 %v2867
      %v2904 = vunpack.c.h.b16 %v2867
      %v2905 = vunpack.c.l.b16 %v2868
      %v2906 = vunpack.c.l.b16 %v2869
      %v2907 = vunpack.c.h.b16 %v2869
      %v2908 = vunpack.c.l.b16 %v2870
      %v2909 = vunpack.c.l.b16 %v2871
      %v2910 = vunpack.c.h.b16 %v2871
      %v2911 = vunpack.c.l.b16 %v2872
      %v2912 = vunpack.c.l.b16 %v2873
      %v2913 = vunpack.c.h.b16 %v2873
      %v2914 = vunpack.c.l.b16 %v2874
      %v2915 = vunpack.c.l.b16 %v2875
      %v2916 = vunpack.c.h.b16 %v2875
      %v2917 = vunpack.c.l.b16 %v2876
      %v2918 = vunpack.c.l.b16 %v2877
      %v2919 = vunpack.c.h.b16 %v2877
      %v2920 = vunpack.c.l.b16 %v2878
      %v2921 = vunpack.c.l.b16 %v2879
      %v2922 = vunpack.c.h.b16 %v2879
      %v2923 = vunpack.c.l.b16 %v2880
      %v2924 = vpack.c.b16 %v2903, %v2900
      %v2925 = vpack.c.b16 %v2904, %v2901
      %v2926 = vpack.c.b16 %v2905, %v2902
      %v2927 = vpack.c.b16 %v2909, %v2906
      %v2928 = vpack.c.b16 %v2910, %v2907
      %v2929 = vpack.c.b16 %v2911, %v2908
      %v2930 = vpack.c.b16 %v2915, %v2912
      %v2931 = vpack.c.b16 %v2916, %v2913
      %v2932 = vpack.c.b16 %v2917, %v2914
      %v2933 = vpack.c.b16 %v2921, %v2918
      %v2934 = vpack.c.b16 %v2922, %v2919
      %v2935 = vpack.c.b16 %v2923, %v2920
      %v2949 = vsel %vm346, %v2883, 0
      %2951 = vmatpush.bf16.msra.mxu0 0
      %2952 = vmatpush.bf16.msra.mxu0 0
      %2953 = vmatpush.bf16.msra.mxu0 0
      %2954 = vmatpush.bf16.msra.mxu0 0
      %2955 = vmatpush.bf16.msra.mxu0 %v2933
      %2956 = vmatpush.bf16.msra.mxu0 %v2930
      %2957 = vmatpush.bf16.msra.mxu0 %v2927
      %2958 = vmatpush.bf16.msra.mxu0 %v2924
      %2959 = vmatmul.bf16.gmra.mxu0 %v2949
      %v2960 = vpop.f32.mrf.mxu0
      %v2961 = vadd.f32 0.0, %v2960
      %v2962 = vpop.f32.mrf.mxu0
      %2963 = vdwg.mxu0
      %2964 = vmatpush.bf16.msra.mxu0 0
      %2965 = vmatpush.bf16.msra.mxu0 0
      %2966 = vmatpush.bf16.msra.mxu0 0
      %2967 = vmatpush.bf16.msra.mxu0 0
      %2968 = vmatpush.bf16.msra.mxu0 %v2934
      %2969 = vmatpush.bf16.msra.mxu0 %v2931
      %2970 = vmatpush.bf16.msra.mxu0 %v2928
      %2971 = vmatpush.bf16.msra.mxu0 %v2925
      %2972 = vmatmul.bf16.gmra.mxu0 %v2949
      %v2973 = vpop.f32.mrf.mxu0
      %v2974 = vadd.f32 0.0, %v2973
      %v2975 = vpop.f32.mrf.mxu0
      %2976 = vdwg.mxu0
      %2977 = vmatpush.bf16.msra.mxu0 0
      %2978 = vmatpush.bf16.msra.mxu0 0
      %2979 = vmatpush.bf16.msra.mxu0 0
      %2980 = vmatpush.bf16.msra.mxu0 0
      %2981 = vmatpush.bf16.msra.mxu0 %v2935
      %2982 = vmatpush.bf16.msra.mxu0 %v2932
      %2983 = vmatpush.bf16.msra.mxu0 %v2929
      %2984 = vmatpush.bf16.msra.mxu0 %v2926
      %2985 = vmatmul.bf16.gmra.mxu0 %v2949
      %v2986 = vpop.f32.mrf.mxu0
      %v2987 = vadd.f32 0.0, %v2986
      %v2988 = vpop.f32.mrf.mxu0
      %2989 = vdwg.mxu0
      %v2990 = vunpack.c.l.bf16 %v2574
      %v2991 = vadd.f32 %v2990, %v2961
      %v2992 = vadd.f32 %v2991, %v2709
      %v2993 = vxor.u32 %v2992, 2147483648
      %v2994 = vmul.f32 %v2993, 1.442695
      %v2995 = vpow.pop %v2994
      %v2996 = vadd.f32 %v2995, 1.0
      %v2997 = vrcp.pop %v2996
      %v2998 = vmul.f32 %v2996, %v2997
      %v2999 = vsub.f32 1.0, %v2998
      %v3000 = vmul.f32 %v2997, %v2999
      %v3001 = vadd.f32 %v2997, %v3000
      %vm3002 = vweird.f32 %v2996
      %vm3003 = vweird.f32 %v2997
      %vm3004 = vmor %vm3002, %vm3003
      %v3005 = vsel %vm3004, %v2997, %v3001
      %v3006 = vand.u32 2147483647, %v2996
      %vm3007 = vcmp.eq.f32.partialorder %v3006, 8.507059e+37
      %v3008 = vand.u32 %v2996, 2147483648
      %v3009 = vor.u32 1.1754944e-38, %v3008
      %v3010 = vsel %vm3007, %v3009, %v3005
      %v3011 = vmul.f32 1.0, %v3010
      %v3012 = vtanh.pop %v2992
      %v3013 = vmul.f32 %v3011, %v2218
      %3015 = vrot.lane.b32.xlu0 %v3012, 64
      %v3016 = vpop.permute.xlu0 %3015
      %v3018 = vmul.f32 %v3011, %v3016
      %3020 = vrot.lane.b32.xlu0 %v3018, 32
      %v3021 = vpop.permute.xlu0 %3020
      %v3023 = vadd.f32 %v3013, %v3021
      %v3024 = vtanh.pop %v3023
      %3026 = vrot.lane.b32.xlu0 %v3024, 64
      %v3027 = vpop.permute.xlu0 %3026
      %v3029 = vmul.f32 %v3011, %v3027
      %v3030 = vpack.c.bf16 %v3029, %v3029
      %v3031 = vld [vmem:[%s5] sm:$0xf]
      %v3032 = vld [vmem:[%s5 + $0x4] sm:$0xf]
      %v3033 = vld [vmem:[%s5 + $0x8] sm:$0xf]
      %v3034 = vld [vmem:[%s5 + $0xc] sm:$0xf]
      %v3035 = vld [vmem:[%s6] sm:$0x1]
      %v3037 = vperm.slane %v3035, 0
      %3040 = vrot.lane.b32.xlu0 %v3030, 32
      %v3041 = vpop.permute.xlu0 %3040
      %v3046 = vunpack.c.l.b16 %v3031
      %v3047 = vunpack.c.l.b16 %v3032
      %v3048 = vunpack.c.l.b16 %v3033
      %v3049 = vunpack.c.l.b16 %v3034
      %v3050 = vpack.c.b16 %v3047, %v3046
      %v3051 = vpack.c.b16 %v3049, %v3048
      %v3055 = vsel %vm626, %v3041, 0
      %3057 = vmatpush.bf16.msra.mxu0 0
      %3058 = vmatpush.bf16.msra.mxu0 0
      %3059 = vmatpush.bf16.msra.mxu0 0
      %3060 = vmatpush.bf16.msra.mxu0 0
      %3061 = vmatpush.bf16.msra.mxu0 0
      %3062 = vmatpush.bf16.msra.mxu0 0
      %3063 = vmatpush.bf16.msra.mxu0 %v3051
      %3064 = vmatpush.bf16.msra.mxu0 %v3050
      %3065 = vmatmul.bf16.gmra.mxu0 %v3055
      %v3066 = vpop.f32.mrf.mxu0
      %v3067 = vadd.f32 %v3037, %v3066
      %v3068 = vpop.f32.mrf.mxu0
      %3069 = vdwg.mxu0
      %v3070 = vmax.f32 %v3067, 0.0
      %v3071 = vpack.c.bf16 %v3070, %v3070
      %v3072 = vld [vmem:[#allocation12] sm:$0xff]
      %v3073 = vld [vmem:[#allocation12 + $0x8] sm:$0xff]
      %v3076 = vunpack.c.l.b16 %v3072
      %v3077 = vunpack.c.h.b16 %v3072
      %v3078 = vunpack.c.l.b16 %v3073
      %v3079 = vunpack.c.h.b16 %v3073
      %v3080 = vpack.c.b16 %v3078, %v3076
      %v3081 = vpack.c.b16 %v3079, %v3077
      %v3085 = vsel %vm657, %v3071, 0
      %3087 = vmatpush.bf16.msra.mxu0 0
      %3088 = vmatpush.bf16.msra.mxu0 0
      %3089 = vmatpush.bf16.msra.mxu0 0
      %3090 = vmatpush.bf16.msra.mxu0 0
      %3091 = vmatpush.bf16.msra.mxu0 0
      %3092 = vmatpush.bf16.msra.mxu0 0
      %3093 = vmatpush.bf16.msra.mxu0 0
      %3094 = vmatpush.bf16.msra.mxu0 %v3080
      %3095 = vmatmul.bf16.gmra.mxu0 %v3085
      %v3096 = vpop.f32.mrf.mxu0
      %v3097 = vadd.f32 0.0, %v3096
      %v3098 = vpop.f32.mrf.mxu0
      %3099 = vdwg.mxu0
      %3100 = vmatpush.bf16.msra.mxu0 0
      %3101 = vmatpush.bf16.msra.mxu0 0
      %3102 = vmatpush.bf16.msra.mxu0 0
      %3103 = vmatpush.bf16.msra.mxu0 0
      %3104 = vmatpush.bf16.msra.mxu0 0
      %3105 = vmatpush.bf16.msra.mxu0 0
      %3106 = vmatpush.bf16.msra.mxu0 0
      %3107 = vmatpush.bf16.msra.mxu0 %v3081
      %3108 = vmatmul.bf16.gmra.mxu0 %v3085
      %v3109 = vpop.f32.mrf.mxu0
      %v3110 = vadd.f32 0.0, %v3109
      %v3111 = vpop.f32.mrf.mxu0
      %3112 = vdwg.mxu0
      %v3114 = vrot.slane %v2574, 4
      %v3116 = vunpack.c.l.bf16 %v3114
      %v3117 = vadd.f32 %v3116, %v2974
      %v3118 = vadd.f32 %v3117, %v2722
      %v3119 = vadd.f32 %v3118, %v3097
      %v3120 = vxor.u32 %v3119, 2147483648
      %v3121 = vmul.f32 %v3120, 1.442695
      %v3122 = vpow.pop %v3121
      %v3123 = vadd.f32 %v3122, 1.0
      %v3124 = vrcp.pop %v3123
      %v3125 = vmul.f32 %v3123, %v3124
      %v3126 = vsub.f32 1.0, %v3125
      %v3127 = vmul.f32 %v3124, %v3126
      %v3128 = vadd.f32 %v3124, %v3127
      %vm3129 = vweird.f32 %v3123
      %vm3130 = vweird.f32 %v3124
      %vm3131 = vmor %vm3129, %vm3130
      %v3132 = vsel %vm3131, %v3124, %v3128
      %v3133 = vand.u32 2147483647, %v3123
      %vm3134 = vcmp.eq.f32.partialorder %v3133, 8.507059e+37
      %v3135 = vand.u32 %v3123, 2147483648
      %v3136 = vor.u32 1.1754944e-38, %v3135
      %v3137 = vsel %vm3134, %v3136, %v3132
      %v3138 = vmul.f32 1.0, %v3137
      %v3139 = vtanh.pop %v3119
      %v3140 = vmul.f32 %v3138, %v2345
      %3142 = vrot.lane.b32.xlu0 %v3139, 64
      %v3143 = vpop.permute.xlu0 %3142
      %v3145 = vmul.f32 %v3138, %v3143
      %3147 = vrot.lane.b32.xlu0 %v3145, 32
      %v3148 = vpop.permute.xlu0 %3147
      %v3150 = vadd.f32 %v3140, %v3148
      %v3151 = vtanh.pop %v3150
      %3153 = vrot.lane.b32.xlu0 %v3151, 64
      %v3154 = vpop.permute.xlu0 %3153
      %v3156 = vmul.f32 %v3138, %v3154
      %v3157 = vpack.c.bf16 %v3156, %v3156
      %v3158 = vld [vmem:[%s732] sm:$0xf]
      %v3159 = vld [vmem:[%s732 + $0x4] sm:$0xf]
      %v3160 = vld [vmem:[%s732 + $0x8] sm:$0xf]
      %v3161 = vld [vmem:[%s732 + $0xc] sm:$0xf]
      %v3162 = vld [vmem:[%s737] sm:$0x1]
      %v3164 = vperm.slane %v3162, 0
      %3167 = vrot.lane.b32.xlu0 %v3157, 32
      %v3168 = vpop.permute.xlu0 %3167
      %v3173 = vunpack.c.l.b16 %v3158
      %v3174 = vunpack.c.l.b16 %v3159
      %v3175 = vunpack.c.l.b16 %v3160
      %v3176 = vunpack.c.l.b16 %v3161
      %v3177 = vpack.c.b16 %v3174, %v3173
      %v3178 = vpack.c.b16 %v3176, %v3175
      %v3182 = vsel %vm626, %v3168, 0
      %3184 = vmatpush.bf16.msra.mxu0 0
      %3185 = vmatpush.bf16.msra.mxu0 0
      %3186 = vmatpush.bf16.msra.mxu0 0
      %3187 = vmatpush.bf16.msra.mxu0 0
      %3188 = vmatpush.bf16.msra.mxu0 0
      %3189 = vmatpush.bf16.msra.mxu0 0
      %3190 = vmatpush.bf16.msra.mxu0 %v3178
      %3191 = vmatpush.bf16.msra.mxu0 %v3177
      %3192 = vmatmul.bf16.gmra.mxu0 %v3182
      %v3193 = vpop.f32.mrf.mxu0
      %v3194 = vadd.f32 %v3164, %v3193
      %v3195 = vpop.f32.mrf.mxu0
      %3196 = vdwg.mxu0
      %v3197 = vmax.f32 %v3194, 0.0
      %v3198 = vpack.c.bf16 %v3197, %v3197
      %v3199 = vld [vmem:[%s775] sm:$0xff]
      %v3200 = vld [vmem:[%s775 + $0x8] sm:$0xff]
      %v3203 = vunpack.c.l.b16 %v3199
      %v3204 = vunpack.c.h.b16 %v3199
      %v3205 = vunpack.c.l.b16 %v3200
      %v3206 = vunpack.c.h.b16 %v3200
      %v3207 = vpack.c.b16 %v3205, %v3203
      %v3208 = vpack.c.b16 %v3206, %v3204
      %v3212 = vsel %vm657, %v3198, 0
      %3214 = vmatpush.bf16.msra.mxu0 0
      %3215 = vmatpush.bf16.msra.mxu0 0
      %3216 = vmatpush.bf16.msra.mxu0 0
      %3217 = vmatpush.bf16.msra.mxu0 0
      %3218 = vmatpush.bf16.msra.mxu0 0
      %3219 = vmatpush.bf16.msra.mxu0 0
      %3220 = vmatpush.bf16.msra.mxu0 0
      %3221 = vmatpush.bf16.msra.mxu0 %v3207
      %3222 = vmatmul.bf16.gmra.mxu0 %v3212
      %v3223 = vpop.f32.mrf.mxu0
      %v3224 = vadd.f32 0.0, %v3223
      %v3225 = vpop.f32.mrf.mxu0
      %3226 = vdwg.mxu0
      %3227 = vmatpush.bf16.msra.mxu0 0
      %3228 = vmatpush.bf16.msra.mxu0 0
      %3229 = vmatpush.bf16.msra.mxu0 0
      %3230 = vmatpush.bf16.msra.mxu0 0
      %3231 = vmatpush.bf16.msra.mxu0 0
      %3232 = vmatpush.bf16.msra.mxu0 0
      %3233 = vmatpush.bf16.msra.mxu0 0
      %3234 = vmatpush.bf16.msra.mxu0 %v3208
      %3235 = vmatmul.bf16.gmra.mxu0 %v3212
      %v3236 = vpop.f32.mrf.mxu0
      %v3237 = vadd.f32 0.0, %v3236
      %v3238 = vpop.f32.mrf.mxu0
      %3239 = vdwg.mxu0
      %v3240 = vld [vmem:[%s4] sm:$0x1]
      %v3242 = vperm.slane %v3240, 0
      %v3244 = vadd.f32 %v3242, %v2987
      %v3245 = vadd.f32 %v3244, %v2735
      %v3246 = vadd.f32 %v3245, %v3224
      %v3247 = vxor.u32 %v3246, 2147483648
      %v3248 = vmul.f32 %v3247, 1.442695
      %v3249 = vpow.pop %v3248
      %v3250 = vadd.f32 %v3249, 1.0
      %v3251 = vrcp.pop %v3250
      %v3252 = vmul.f32 %v3250, %v3251
      %v3253 = vsub.f32 1.0, %v3252
      %v3254 = vmul.f32 %v3251, %v3253
      %v3255 = vadd.f32 %v3251, %v3254
      %vm3256 = vweird.f32 %v3250
      %vm3257 = vweird.f32 %v3251
      %vm3258 = vmor %vm3256, %vm3257
      %v3259 = vsel %vm3258, %v3251, %v3255
      %v3260 = vand.u32 2147483647, %v3250
      %vm3261 = vcmp.eq.f32.partialorder %v3260, 8.507059e+37
      %v3262 = vand.u32 %v3250, 2147483648
      %v3263 = vor.u32 1.1754944e-38, %v3262
      %v3264 = vsel %vm3261, %v3263, %v3259
      %v3265 = vmul.f32 1.0, %v3264
      %v3266 = vtanh.pop %v3246
      %v3267 = vmul.f32 %v3265, %v2472
      %3269 = vrot.lane.b32.xlu0 %v3266, 64
      %v3270 = vpop.permute.xlu0 %3269
      %v3272 = vmul.f32 %v3265, %v3270
      %3274 = vrot.lane.b32.xlu0 %v3272, 32
      %v3275 = vpop.permute.xlu0 %3274
      %v3277 = vadd.f32 %v3267, %v3275
      %v3278 = vtanh.pop %v3277
      %3280 = vrot.lane.b32.xlu0 %v3278, 64
      %v3281 = vpop.permute.xlu0 %3280
      %v3283 = vmul.f32 %v3265, %v3281
      %v3284 = vpack.c.bf16 %v3283, %v3283
      %v3285 = vld [vmem:[%s866] sm:$0xf]
      %v3286 = vld [vmem:[%s866 + $0x4] sm:$0xf]
      %v3287 = vld [vmem:[%s866 + $0x8] sm:$0xf]
      %v3288 = vld [vmem:[%s866 + $0xc] sm:$0xf]
      %v3289 = vld [vmem:[%s871] sm:$0x1]
      %v3291 = vperm.slane %v3289, 0
      %3294 = vrot.lane.b32.xlu0 %v3284, 32
      %v3295 = vpop.permute.xlu0 %3294
      %v3300 = vunpack.c.l.b16 %v3285
      %v3301 = vunpack.c.l.b16 %v3286
      %v3302 = vunpack.c.l.b16 %v3287
      %v3303 = vunpack.c.l.b16 %v3288
      %v3304 = vpack.c.b16 %v3301, %v3300
      %v3305 = vpack.c.b16 %v3303, %v3302
      %v3309 = vsel %vm626, %v3295, 0
      %3311 = vmatpush.bf16.msra.mxu0 0
      %3312 = vmatpush.bf16.msra.mxu0 0
      %3313 = vmatpush.bf16.msra.mxu0 0
      %3314 = vmatpush.bf16.msra.mxu0 0
      %3315 = vmatpush.bf16.msra.mxu0 0
      %3316 = vmatpush.bf16.msra.mxu0 0
      %3317 = vmatpush.bf16.msra.mxu0 %v3305
      %3318 = vmatpush.bf16.msra.mxu0 %v3304
      %3319 = vmatmul.bf16.gmra.mxu0 %v3309
      %v3320 = vpop.f32.mrf.mxu0
      %v3321 = vadd.f32 %v3291, %v3320
      %v3322 = vpop.f32.mrf.mxu0
      %3323 = vdwg.mxu0
      %v3324 = vmax.f32 %v3321, 0.0
      %v3325 = vpack.c.bf16 %v3324, %v3324
      %v3326 = vld [vmem:[%s909] sm:$0xff]
      %v3327 = vld [vmem:[%s909 + $0x8] sm:$0xff]
      %v3330 = vunpack.c.h.b16 %v3326
      %v3331 = vunpack.c.h.b16 %v3327
      %v3332 = vpack.c.b16 %v3331, %v3330
      %v3335 = vsel %vm657, %v3325, 0
      %3337 = vmatpush.bf16.msra.mxu0 0
      %3338 = vmatpush.bf16.msra.mxu0 0
      %3339 = vmatpush.bf16.msra.mxu0 0
      %3340 = vmatpush.bf16.msra.mxu0 0
      %3341 = vmatpush.bf16.msra.mxu0 0
      %3342 = vmatpush.bf16.msra.mxu0 0
      %3343 = vmatpush.bf16.msra.mxu0 0
      %3344 = vmatpush.bf16.msra.mxu0 %v3332
      %3345 = vmatmul.bf16.gmra.mxu0 %v3335
      %v3346 = vpop.f32.mrf.mxu0
      %v3347 = vadd.f32 0.0, %v3346
      %v3348 = vpop.f32.mrf.mxu0
      %3349 = vdwg.mxu0
      %v3350 = vadd.f32 %v3110, %v3237
      %v3351 = vadd.f32 %v3350, %v3347
      %v3352 = vld [vmem:[%s8] sm:$0x1]
      %v3354 = vperm.slane %v3352, 0
      %v3356 = vadd.f32 %v3351, %v3354
      %s3357 = smul.u32 %s2569, 8
      %s3358 = scalar_lea.vmem [#allocation14], %s3357
      %3359 = vst.msk [vmem:[%s3358] sm:$0xff] %vm943, %v3356
      %3361 = vrot.lane.b32.xlu0 %v3029, 32
      %v3362 = vpop.permute.xlu0 %3361
      %3365 = vrot.lane.b32.xlu0 %v3156, 64
      %v3366 = vpop.permute.xlu0 %3365
      %3369 = vrot.lane.b32.xlu0 %v3283, 96
      %v3370 = vpop.permute.xlu0 %3369
      %v3372 = vsel %vm626, %v3362, %v3366
      %v3373 = vsel %vm346, %v3372, %v3370
      %3375 = vrot.lane.b32.xlu0 %v2863, 64
      %v3376 = vpop.permute.xlu0 %3375
      %3379 = vrot.lane.b32.xlu0 %v2861, 64
      %v3380 = vpop.permute.xlu0 %3379
      %3383 = vrot.lane.b32.xlu0 %v3023, 96
      %v3384 = vpop.permute.xlu0 %3383
      %3387 = vrot.lane.b32.xlu0 %v3277, 96
      %v3388 = vpop.permute.xlu0 %3387
    $region62: #{tpu_custom_call.1} parent=1 // loop_footer
      %s120 = sadd.s32 1, %s116
    $region63: #{tpu_custom_call.1} parent=1 // loop_footer_branch
      %115 = sbr.rel target = $region59
    $region64: #{tpu_custom_call.1} parent=1 // loop_exit
      _
    %vm3390 = vcmask 523264
    %3391 = vst.msk [vmem:[#allocation2] sm:$0xff] %vm3390, %v121
    %3392 = vst.msk [vmem:[#allocation3] sm:$0xff] %vm3390, %v122
    %vm3393 = vcmask 785408
    %3394 = vst.msk [vmem:[#allocation4] sm:$0xff] %vm3393, %v123
    %3396 = vrot.lane.b32.xlu0 %v126, 64
    %v3397 = vpop.permute.xlu0 %3396
    %vm3399 = vcmask 261120
    %v3400 = vsel %vm3399, %v124, %v125
    %v3401 = vsel %vm3390, %v3400, %v3397
    %3402 = vst.msk [vmem:[#allocation5] sm:$0xff] %vm3393, %v3401
    // Predicated region
    $region65: #{tpu_custom_call.1} parent=1 // pred_check
      _
    $region66: #{tpu_custom_call.1} parent=1 // pred_check_branch
      %3404 = sbr.rel (0) target = $region68
    $region67: #{tpu_custom_call.1} parent=1 // pred_region
      %3406 = vsyncadd [#allocation8], 0
      %s3407 = sshll.u32 [#allocation14], 4
      %s3408 = int_to_ptr.vmem [resolvable:$true] %s3407
      %s3409 = sshll.u32 %s9, 4
      %s3410 = int_to_ptr.hbm [resolvable:$true] %s3409
      %3415 = dma.vmem_to_hbm [thread:$0]  %s3408, 1024, %s3410, [#allocation8], 128, 128, 8
    $region68: #{tpu_custom_call.1} parent=1 // pred_fallthru
      _
    // Predicated region
    $region69: #{tpu_custom_call.1} parent=1 // pred_check
      _
    $region70: #{tpu_custom_call.1} parent=1 // pred_check_branch
      %3417 = sbr.rel (0) target = $region72
    $region71: #{tpu_custom_call.1} parent=1 // pred_region
      %3419 = dma.done [#allocation8], 1024
    $region72: #{tpu_custom_call.1} parent=1 // pred_fallthru
      _
    %3420 = vsyncpa [#allocation7], 1
    %3421 = vsyncpa [#allocation10], 1
    %3422 = vsyncpa [#allocation13], 1
    %3423 = vsyncpa [#allocation8], 1

</llo_original>
